<compile_context>
chip_gen: v7x
topology: tpu7x:2x2x1
jax: 0.10.0
libtpu: 0.0.40
codegen_flags: <defaults>
</compile_context>

<pallas_src>
import jax
import jax.numpy as jnp
import numpy as np
from jax.experimental import pallas as pl
from jax.experimental.pallas import tpu as pltpu


def _ceil_div(a, b):
    return -(-a // b)


def _device_config():
    """Per-generation defaults (epilogue dtype, N tile, TC count)."""
    try:
        kind = jax.devices()[0].device_kind.lower()
    except Exception:
        kind = ""
    bf16_vpu = ("v6" in kind) or ("v7" in kind)   # packed bf16 VALU
    return dict(
        ep_dtype=jnp.bfloat16 if bf16_vpu else jnp.float32,
        n_tile=1024 if bf16_vpu else 512,
        multi_core=("v7" in kind),                # v7x: 2 TensorCores / chip
    )


def _tnet_kernel(x_ref, w1, b1, w2, b2, w3, b3,
                 wf1, bf1, wf2, bf2, wf3, bf3, o_ref, pool_ref):
    n = pl.program_id(1)
    bb, tn, k = x_ref.shape
    c3 = pool_ref.shape[1]                 # 1024
    ep = pool_ref.dtype                    # epilogue dtype (bf16 on v6e/v7x)

    @pl.when(n == 0)
    def _init():
        # ReLU(bn3(mlp3(.))) is folded into the running max:
        # max_N relu(y) == max(0, max_N y), so init to 0 instead of -inf.
        pool_ref[...] = jnp.zeros(pool_ref.shape, pool_ref.dtype)

    # ---- conv stage, batch-fused: ONE matmul per layer with M = bb*tn ------
    xm = x_ref[...].reshape(bb * tn, k)                         # free reshape
    h = jnp.maximum(
        jnp.dot(xm, w1[...], preferred_element_type=jnp.float32) + b1[...],
        0.0)                                                    # (M, 64)
    h = jnp.maximum(
        jnp.dot(h.astype(jnp.bfloat16), w2[...],
                preferred_element_type=jnp.float32) + b2[...], 0.0)
    h = h.astype(jnp.bfloat16)                                  # (M, 128)

    # mlp3 chunked over output channels: bounds the f32 temp (v7x VMEM) and
    # lets the (bias + tile-max + running-max) epilogue run in `ep` dtype.
    CH = 256
    for c in range(0, c3, CH):
        ch = min(CH, c3 - c)
        y = jnp.dot(h, w3[:, c:c + ch],
                    preferred_element_type=jnp.float32)          # (M, ch) f32
        y = y.astype(ep) + b3[:, c:c + ch].astype(ep)            # (M, ch) ep
        tile_max = jnp.max(y.reshape(bb, tn, ch), axis=1)        # (bb, ch)
        pool_ref[:, c:c + ch] = jnp.maximum(pool_ref[:, c:c + ch], tile_max)

    # ---- FC head once per batch block, after the last N tile (M = bb) -----
    @pl.when(n == pl.num_programs(1) - 1)
    def _head():
        p = pool_ref[...].astype(jnp.bfloat16)                   # (bb, 1024)
        f = jnp.maximum(
            jnp.dot(p, wf1[...], preferred_element_type=jnp.float32)
            + bf1[...], 0.0)                                     # (bb, 512)
        f = jnp.maximum(
            jnp.dot(f.astype(jnp.bfloat16), wf2[...],
                    preferred_element_type=jnp.float32) + bf2[...], 0.0)
        # fc3 bias already contains the flattened identity.
        out = jnp.dot(f.astype(jnp.bfloat16), wf3[...],
                      preferred_element_type=jnp.float32) + bf3[...]
        o_ref[...] = out.reshape(o_ref.shape)                    # (1, bb, k*k)


def tnet_forward(x_bkn, params, k=3, block_b=8, n_tile=None, ep_dtype=None):
    """x_bkn: (B, k, N) float32, PyTorch Conv1d layout. Returns (B, k, k) f32."""
    B, kk, N = x_bkn.shape
    assert kk == k

    cfg = _device_config()
    if n_tile is None:
        n_tile = cfg["n_tile"]
    if ep_dtype is None:
        ep_dtype = cfg["ep_dtype"]

    # --- batch blocking ------------------------------------------------------
    BB = max(1, min(block_b, B))
    if cfg["multi_core"] and B >= 2 and B // BB < 2:
        # Give both v7x TensorCores at least one "parallel" batch grid step.
        BB = max(1, _ceil_div(B, 2))
    B_pad = _ceil_div(B, BB) * BB
    NB = B_pad // BB

    # --- N tiling (TN multiple of 128 when tiled, else the full padded dim) --
    tn_cap = max(128, (n_tile // 128) * 128)
    if N <= tn_cap:
        N_pad = _ceil_div(N, 8) * 8          # keep sublane tiling clean
        TN = N_pad
    else:
        TN = tn_cap
        N_pad = _ceil_div(N, TN) * TN
    NT = N_pad // TN

    # Channels-last for per-point matmuls; the bf16 cast is fused with the
    # transpose so x is traversed once.  (See TODO(synk) above for the
    # native-layout variant that removes this pass entirely.)
    x = jnp.transpose(x_bkn, (0, 2, 1)).astype(jnp.bfloat16)     # (B, N, k)
    if N_pad != N:
        # Edge-replicated points leave the max-pool result exactly unchanged.
        x = jnp.pad(x, ((0, 0), (0, N_pad - N), (0, 0)), mode="edge")
    if B_pad != B:
        x = jnp.pad(x, ((0, B_pad - B), (0, 0), (0, 0)))

    (w1, b1), (w2, b2), (w3, b3), (wf1, bf1), (wf2, bf2), (wf3, bf3) = params
    # Fold the +identity into fc3's bias.
    bf3 = bf3 + jnp.eye(k, dtype=jnp.float32).reshape(1, k * k)

    bf16 = lambda w: w.astype(jnp.bfloat16)
    row = lambda b: b.reshape(1, -1).astype(jnp.float32)
    weight_args = [bf16(w1), row(b1), bf16(w2), row(b2), bf16(w3), row(b3),
                   bf16(wf1), row(bf1), bf16(wf2), row(bf2), bf16(wf3), row(bf3)]
    c3 = w3.shape[1]                                             # 1024

    out = pl.pallas_call(
        _tnet_kernel,
        out_shape=jax.ShapeDtypeStruct((NB, BB, k * k), jnp.float32),
        grid_spec=pltpu.PrefetchScalarGridSpec(
            num_scalar_prefetch=0,
            grid=(NB, NT),
            in_specs=[pl.BlockSpec((BB, TN, k), lambda b, n: (b, n, 0))]
                     + [pl.BlockSpec(a.shape, lambda b, n: (0, 0))
                        for a in weight_args],
            out_specs=pl.BlockSpec((1, BB, k * k), lambda b, n: (b, 0, 0)),
            scratch_shapes=[pltpu.VMEM((BB, c3), ep_dtype)],
        ),
        compiler_params=pltpu.CompilerParams(
            dimension_semantics=("parallel", "arbitrary"),
            vmem_limit_bytes=48 * 1024 * 1024),
    )(x, *weight_args)

    out = out.reshape(B_pad, k * k)[:B]
    return out.reshape(B, k, k)


def _tnet_reference(x_bkn, params, k=3, ep_dtype=jnp.float32):
    """Pure-JAX reference mirroring the kernel's dtypes / fold decisions."""
    (w1, b1), (w2, b2), (w3, b3), (wf1, bf1), (wf2, bf2), (wf3, bf3) = params
    bf3 = bf3 + jnp.eye(k, dtype=jnp.float32).reshape(1, k * k)
    x = jnp.transpose(x_bkn, (0, 2, 1)).astype(jnp.bfloat16)     # (B, N, k)

    def layer(h, w, b, relu=True):
        y = jnp.einsum("...ij,jk->...ik", h.astype(jnp.bfloat16),
                       w.astype(jnp.bfloat16),
                       preferred_element_type=jnp.float32) + b
        return jnp.maximum(y, 0.0) if relu else y

    h = layer(x, w1, b1)
    h = layer(h, w2, b2)
    y = jnp.einsum("...ij,jk->...ik", h.astype(jnp.bfloat16),
                   w3.astype(jnp.bfloat16),
                   preferred_element_type=jnp.float32)
    y = y.astype(ep_dtype) + b3.astype(ep_dtype)
    pooled = jnp.maximum(jnp.max(y, axis=1), 0.0)                # relu folded
    f = layer(pooled, wf1, bf1)
    f = layer(f, wf2, bf2)
    out = layer(f, wf3, bf3, relu=False)                          # (B, k*k)
    return out.reshape(-1, k, k)


def _fold_bn(w, b, gamma, beta, mean, var, eps=1e-5):
    """Fold inference-mode BatchNorm into the preceding (Cin, Cout) matmul."""
    scale = gamma / jnp.sqrt(var + eps)
    return w * scale[None, :], (b - mean) * scale + beta


def init_params(key, k=3):
    """Deterministic synthetic parameters (BN folded into matmul weights)."""
    dims = [(k, 64), (64, 128), (128, 1024), (1024, 512), (512, 128), (128, k * k)]
    keys = jax.random.split(key, 4 * len(dims))
    params = []
    for i, (cin, cout) in enumerate(dims):
        kw, kb, kg, km = keys[4 * i:4 * i + 4]
        w = jax.random.normal(kw, (cin, cout), jnp.float32) / jnp.sqrt(float(cin))
        b = 0.01 * jax.random.normal(kb, (cout,), jnp.float32)
        if i < 5:  # bn1..bn5 (fc3 has no BatchNorm)
            gamma = 1.0 + 0.1 * jax.random.normal(kg, (cout,), jnp.float32)
            beta = 0.05 * jax.random.normal(km, (cout,), jnp.float32)
            mean = 0.05 * jax.random.normal(kb, (cout,), jnp.float32)
            var = 0.5 + jax.random.uniform(kg, (cout,), jnp.float32)
            w, b = _fold_bn(w, b, gamma, beta, mean, var)
        params.append((w, b.reshape(1, cout)))
    return params


if __name__ == "__main__":
    key = jax.random.PRNGKey(0)
    k_dim, B, N = 3, 2, 16
    kx, kp = jax.random.split(key)
    # PyTorch-convention input: (batch, channels=k, num_points)
    x = jax.random.normal(kx, (B, k_dim, N), jnp.float32)
    params = init_params(kp, k=k_dim)

    matrix = tnet_forward(x, params, k=k_dim)
    jax.block_until_ready(matrix)
    assert matrix.shape == (B, k_dim, k_dim)

    ref = _tnet_reference(x, params, k=k_dim,
                          ep_dtype=_device_config()["ep_dtype"])
    np.testing.assert_allclose(np.asarray(matrix), np.asarray(ref),
                               rtol=2e-2, atol=2e-2)
    print("KERNEL_OK")
</pallas_src>

<mosaic_0001>
module attributes {stable_mosaic.version = 11 : i64} {
  func.func @_tnet_kernel(%arg0: i32, %arg1: i32, %arg2: memref<2x16x3xbf16, #tpu.memory_space<vmem>>, %arg3: memref<3x64xbf16, #tpu.memory_space<vmem>>, %arg4: memref<1x64xf32, #tpu.memory_space<vmem>>, %arg5: memref<64x128xbf16, #tpu.memory_space<vmem>>, %arg6: memref<1x128xf32, #tpu.memory_space<vmem>>, %arg7: memref<128x1024xbf16, #tpu.memory_space<vmem>>, %arg8: memref<1x1024xf32, #tpu.memory_space<vmem>>, %arg9: memref<1024x512xbf16, #tpu.memory_space<vmem>>, %arg10: memref<1x512xf32, #tpu.memory_space<vmem>>, %arg11: memref<512x128xbf16, #tpu.memory_space<vmem>>, %arg12: memref<1x128xf32, #tpu.memory_space<vmem>>, %arg13: memref<128x9xbf16, #tpu.memory_space<vmem>>, %arg14: memref<1x9xf32, #tpu.memory_space<vmem>>, %arg15: memref<1x2x9xf32, #tpu.memory_space<vmem>>, %arg16: memref<2x1024xf32, #tpu.memory_space<vmem>>) attributes {dimension_semantics = [#tpu.dimension_semantics<parallel>, #tpu.dimension_semantics<arbitrary>], iteration_bounds = array<i64: 1, 1>, scalar_prefetch = 0 : i64, scratch_operands = 1 : i64, tpu.core_type = #tpu.core_type<tc>, window_params = [{transform_indices = @transform_0, window_bounds = array<i64: 2, 16, 3>}, {pipeline_mode = #tpu.pipeline_mode<synchronous>, transform_indices = @transform_1, window_bounds = array<i64: 3, 64>}, {pipeline_mode = #tpu.pipeline_mode<synchronous>, transform_indices = @transform_2, window_bounds = array<i64: 1, 64>}, {pipeline_mode = #tpu.pipeline_mode<synchronous>, transform_indices = @transform_3, window_bounds = array<i64: 64, 128>}, {pipeline_mode = #tpu.pipeline_mode<synchronous>, transform_indices = @transform_4, window_bounds = array<i64: 1, 128>}, {pipeline_mode = #tpu.pipeline_mode<synchronous>, transform_indices = @transform_5, window_bounds = array<i64: 128, 1024>}, {pipeline_mode = #tpu.pipeline_mode<synchronous>, transform_indices = @transform_6, window_bounds = array<i64: 1, 1024>}, {pipeline_mode = #tpu.pipeline_mode<synchronous>, transform_indices = @transform_7, window_bounds = array<i64: 1024, 512>}, {pipeline_mode = #tpu.pipeline_mode<synchronous>, transform_indices = @transform_8, window_bounds = array<i64: 1, 512>}, {pipeline_mode = #tpu.pipeline_mode<synchronous>, transform_indices = @transform_9, window_bounds = array<i64: 512, 128>}, {pipeline_mode = #tpu.pipeline_mode<synchronous>, transform_indices = @transform_10, window_bounds = array<i64: 1, 128>}, {pipeline_mode = #tpu.pipeline_mode<synchronous>, transform_indices = @transform_11, window_bounds = array<i64: 128, 9>}, {pipeline_mode = #tpu.pipeline_mode<synchronous>, transform_indices = @transform_12, window_bounds = array<i64: 1, 9>}, {transform_indices = @transform_13, window_bounds = array<i64: 1, 2, 9>}]} {
    %c0_i32 = arith.constant 0 : i32
    %0 = arith.cmpi eq, %arg1, %c0_i32 : i32
    %1 = arith.extui %0 : i1 to i32
    %c0_i32_0 = arith.constant 0 : i32
    %2 = arith.cmpi ne, %1, %c0_i32_0 : i32
    scf.if %2 {
      %cst_53 = arith.constant 0.000000e+00 : f32
      %64 = vector.broadcast %cst_53 : f32 to vector<2x1024xf32>
      %c0_54 = arith.constant 0 : index
      %c0_55 = arith.constant 0 : index
      %65 = vector.load %arg16[%c0_54, %c0_55] : memref<2x1024xf32, #tpu.memory_space<vmem>>, vector<2x1024xf32>
      tpu.vector_store %arg16[%c0_54, %c0_55], %64 {strides = array<i32>} : memref<2x1024xf32, #tpu.memory_space<vmem>>, vector<2x1024xf32>,
    } else {
    }
    %c0 = arith.constant 0 : index
    %c0_1 = arith.constant 0 : index
    %c0_2 = arith.constant 0 : index
    %3 = vector.load %arg2[%c0, %c0_1, %c0_2] : memref<2x16x3xbf16, #tpu.memory_space<vmem>>, vector<2x16x3xbf16>
    %4 = vector.shape_cast %3 : vector<2x16x3xbf16> to vector<32x3xbf16>
    %c0_3 = arith.constant 0 : index
    %c0_4 = arith.constant 0 : index
    %5 = vector.load %arg3[%c0_3, %c0_4] : memref<3x64xbf16, #tpu.memory_space<vmem>>, vector<3x64xbf16>
    %cst = arith.constant dense<0.000000e+00> : vector<32x64xf32>
    %6 = tpu.matmul %4, %5, %cst {dimension_numbers = #tpu.dot_dimension_numbers<[1], [0], [0], [1], [0, 0, 1, 1], [], []>} : vector<32x3xbf16>, vector<3x64xbf16>, vector<32x64xf32> -> vector<32x64xf32>
    %c0_5 = arith.constant 0 : index
    %c0_6 = arith.constant 0 : index
    %7 = vector.load %arg4[%c0_5, %c0_6] : memref<1x64xf32, #tpu.memory_space<vmem>>, vector<1x64xf32>
    %8 = vector.broadcast %7 : vector<1x64xf32> to vector<32x64xf32>
    %9 = arith.addf %6, %8 : vector<32x64xf32>
    %cst_7 = arith.constant 0.000000e+00 : f32
    %10 = vector.broadcast %cst_7 : f32 to vector<32x64xf32>
    %11 = arith.maximumf %9, %10 : vector<32x64xf32>
    %12 = arith.truncf %11 : vector<32x64xf32> to vector<32x64xbf16>
    %c0_8 = arith.constant 0 : index
    %c0_9 = arith.constant 0 : index
    %13 = vector.load %arg5[%c0_8, %c0_9] : memref<64x128xbf16, #tpu.memory_space<vmem>>, vector<64x128xbf16>
    %cst_10 = arith.constant dense<0.000000e+00> : vector<32x128xf32>
    %14 = tpu.matmul %12, %13, %cst_10 {dimension_numbers = #tpu.dot_dimension_numbers<[1], [0], [0], [1], [0, 0, 1, 1], [], []>} : vector<32x64xbf16>, vector<64x128xbf16>, vector<32x128xf32> -> vector<32x128xf32>
    %c0_11 = arith.constant 0 : index
    %c0_12 = arith.constant 0 : index
    %15 = vector.load %arg6[%c0_11, %c0_12] : memref<1x128xf32, #tpu.memory_space<vmem>>, vector<1x128xf32>
    %16 = vector.broadcast %15 : vector<1x128xf32> to vector<32x128xf32>
    %17 = arith.addf %14, %16 : vector<32x128xf32>
    %cst_13 = arith.constant 0.000000e+00 : f32
    %18 = vector.broadcast %cst_13 : f32 to vector<32x128xf32>
    %19 = arith.maximumf %17, %18 : vector<32x128xf32>
    %20 = arith.truncf %19 : vector<32x128xf32> to vector<32x128xbf16>
    %c0_14 = arith.constant 0 : index
    %c0_15 = arith.constant 0 : index
    %21 = vector.load %arg7[%c0_14, %c0_15] : memref<128x1024xbf16, #tpu.memory_space<vmem>>, vector<128x256xbf16>
    %cst_16 = arith.constant dense<0.000000e+00> : vector<32x256xf32>
    %22 = tpu.matmul %20, %21, %cst_16 {dimension_numbers = #tpu.dot_dimension_numbers<[1], [0], [0], [1], [0, 0, 1, 1], [], []>} : vector<32x128xbf16>, vector<128x256xbf16>, vector<32x256xf32> -> vector<32x256xf32>
    %c0_17 = arith.constant 0 : index
    %c0_18 = arith.constant 0 : index
    %23 = vector.load %arg8[%c0_17, %c0_18] : memref<1x1024xf32, #tpu.memory_space<vmem>>, vector<1x256xf32>
    %24 = vector.broadcast %23 : vector<1x256xf32> to vector<32x256xf32>
    %25 = arith.addf %22, %24 : vector<32x256xf32>
    %26 = vector.shape_cast %25 : vector<32x256xf32> to vector<2x16x256xf32>
    %cst_19 = arith.constant dense<0xFF800000> : vector<2x256xf32>
    %27 = vector.multi_reduction <maximumf>, %26, %cst_19 [1] : vector<2x16x256xf32> to vector<2x256xf32>
    %c0_20 = arith.constant 0 : index
    %c0_21 = arith.constant 0 : index
    %28 = vector.load %arg16[%c0_20, %c0_21] : memref<2x1024xf32, #tpu.memory_space<vmem>>, vector<2x256xf32>
    %29 = arith.maximumf %28, %27 : vector<2x256xf32>
    %c0_22 = arith.constant 0 : index
    %c0_23 = arith.constant 0 : index
    %30 = vector.load %arg16[%c0_22, %c0_23] : memref<2x1024xf32, #tpu.memory_space<vmem>>, vector<2x256xf32>
    tpu.vector_store %arg16[%c0_22, %c0_23], %29 {strides = array<i32>} : memref<2x1024xf32, #tpu.memory_space<vmem>>, vector<2x256xf32>,
    %c0_24 = arith.constant 0 : index
    %c256 = arith.constant 256 : index
    %31 = vector.load %arg7[%c0_24, %c256] : memref<128x1024xbf16, #tpu.memory_space<vmem>>, vector<128x256xbf16>
    %cst_25 = arith.constant dense<0.000000e+00> : vector<32x256xf32>
    %32 = tpu.matmul %20, %31, %cst_25 {dimension_numbers = #tpu.dot_dimension_numbers<[1], [0], [0], [1], [0, 0, 1, 1], [], []>} : vector<32x128xbf16>, vector<128x256xbf16>, vector<32x256xf32> -> vector<32x256xf32>
    %c0_26 = arith.constant 0 : index
    %c256_27 = arith.constant 256 : index
    %33 = vector.load %arg8[%c0_26, %c256_27] : memref<1x1024xf32, #tpu.memory_space<vmem>>, vector<1x256xf32>
    %34 = vector.broadcast %33 : vector<1x256xf32> to vector<32x256xf32>
    %35 = arith.addf %32, %34 : vector<32x256xf32>
    %36 = vector.shape_cast %35 : vector<32x256xf32> to vector<2x16x256xf32>
    %cst_28 = arith.constant dense<0xFF800000> : vector<2x256xf32>
    %37 = vector.multi_reduction <maximumf>, %36, %cst_28 [1] : vector<2x16x256xf32> to vector<2x256xf32>
    %c0_29 = arith.constant 0 : index
    %c256_30 = arith.constant 256 : index
    %38 = vector.load %arg16[%c0_29, %c256_30] : memref<2x1024xf32, #tpu.memory_space<vmem>>, vector<2x256xf32>
    %39 = arith.maximumf %38, %37 : vector<2x256xf32>
    %c0_31 = arith.constant 0 : index
    %c256_32 = arith.constant 256 : index
    %40 = vector.load %arg16[%c0_31, %c256_32] : memref<2x1024xf32, #tpu.memory_space<vmem>>, vector<2x256xf32>
    tpu.vector_store %arg16[%c0_31, %c256_32], %39 {strides = array<i32>} : memref<2x1024xf32, #tpu.memory_space<vmem>>, vector<2x256xf32>,
    %c0_33 = arith.constant 0 : index
    %c512 = arith.constant 512 : index
    %41 = vector.load %arg7[%c0_33, %c512] : memref<128x1024xbf16, #tpu.memory_space<vmem>>, vector<128x256xbf16>
    %cst_34 = arith.constant dense<0.000000e+00> : vector<32x256xf32>
    %42 = tpu.matmul %20, %41, %cst_34 {dimension_numbers = #tpu.dot_dimension_numbers<[1], [0], [0], [1], [0, 0, 1, 1], [], []>} : vector<32x128xbf16>, vector<128x256xbf16>, vector<32x256xf32> -> vector<32x256xf32>
    %c0_35 = arith.constant 0 : index
    %c512_36 = arith.constant 512 : index
    %43 = vector.load %arg8[%c0_35, %c512_36] : memref<1x1024xf32, #tpu.memory_space<vmem>>, vector<1x256xf32>
    %44 = vector.broadcast %43 : vector<1x256xf32> to vector<32x256xf32>
    %45 = arith.addf %42, %44 : vector<32x256xf32>
    %46 = vector.shape_cast %45 : vector<32x256xf32> to vector<2x16x256xf32>
    %cst_37 = arith.constant dense<0xFF800000> : vector<2x256xf32>
    %47 = vector.multi_reduction <maximumf>, %46, %cst_37 [1] : vector<2x16x256xf32> to vector<2x256xf32>
    %c0_38 = arith.constant 0 : index
    %c512_39 = arith.constant 512 : index
    %48 = vector.load %arg16[%c0_38, %c512_39] : memref<2x1024xf32, #tpu.memory_space<vmem>>, vector<2x256xf32>
    %49 = arith.maximumf %48, %47 : vector<2x256xf32>
    %c0_40 = arith.constant 0 : index
    %c512_41 = arith.constant 512 : index
    %50 = vector.load %arg16[%c0_40, %c512_41] : memref<2x1024xf32, #tpu.memory_space<vmem>>, vector<2x256xf32>
    tpu.vector_store %arg16[%c0_40, %c512_41], %49 {strides = array<i32>} : memref<2x1024xf32, #tpu.memory_space<vmem>>, vector<2x256xf32>,
    %c0_42 = arith.constant 0 : index
    %c768 = arith.constant 768 : index
    %51 = vector.load %arg7[%c0_42, %c768] : memref<128x1024xbf16, #tpu.memory_space<vmem>>, vector<128x256xbf16>
    %cst_43 = arith.constant dense<0.000000e+00> : vector<32x256xf32>
    %52 = tpu.matmul %20, %51, %cst_43 {dimension_numbers = #tpu.dot_dimension_numbers<[1], [0], [0], [1], [0, 0, 1, 1], [], []>} : vector<32x128xbf16>, vector<128x256xbf16>, vector<32x256xf32> -> vector<32x256xf32>
    %c0_44 = arith.constant 0 : index
    %c768_45 = arith.constant 768 : index
    %53 = vector.load %arg8[%c0_44, %c768_45] : memref<1x1024xf32, #tpu.memory_space<vmem>>, vector<1x256xf32>
    %54 = vector.broadcast %53 : vector<1x256xf32> to vector<32x256xf32>
    %55 = arith.addf %52, %54 : vector<32x256xf32>
    %56 = vector.shape_cast %55 : vector<32x256xf32> to vector<2x16x256xf32>
    %cst_46 = arith.constant dense<0xFF800000> : vector<2x256xf32>
    %57 = vector.multi_reduction <maximumf>, %56, %cst_46 [1] : vector<2x16x256xf32> to vector<2x256xf32>
    %c0_47 = arith.constant 0 : index
    %c768_48 = arith.constant 768 : index
    %58 = vector.load %arg16[%c0_47, %c768_48] : memref<2x1024xf32, #tpu.memory_space<vmem>>, vector<2x256xf32>
    %59 = arith.maximumf %58, %57 : vector<2x256xf32>
    %c0_49 = arith.constant 0 : index
    %c768_50 = arith.constant 768 : index
    %60 = vector.load %arg16[%c0_49, %c768_50] : memref<2x1024xf32, #tpu.memory_space<vmem>>, vector<2x256xf32>
    tpu.vector_store %arg16[%c0_49, %c768_50], %59 {strides = array<i32>} : memref<2x1024xf32, #tpu.memory_space<vmem>>, vector<2x256xf32>,
    %c0_i32_51 = arith.constant 0 : i32
    %61 = arith.cmpi eq, %arg1, %c0_i32_51 : i32
    %62 = arith.extui %61 : i1 to i32
    %c0_i32_52 = arith.constant 0 : i32
    %63 = arith.cmpi ne, %62, %c0_i32_52 : i32
    scf.if %63 {
      %c0_53 = arith.constant 0 : index
      %c0_54 = arith.constant 0 : index
      %64 = vector.load %arg16[%c0_53, %c0_54] : memref<2x1024xf32, #tpu.memory_space<vmem>>, vector<2x1024xf32>
      %65 = arith.truncf %64 : vector<2x1024xf32> to vector<2x1024xbf16>
      %c0_55 = arith.constant 0 : index
      %c0_56 = arith.constant 0 : index
      %66 = vector.load %arg9[%c0_55, %c0_56] : memref<1024x512xbf16, #tpu.memory_space<vmem>>, vector<1024x512xbf16>
      %cst_57 = arith.constant dense<0.000000e+00> : vector<2x512xf32>
      %67 = tpu.matmul %65, %66, %cst_57 {dimension_numbers = #tpu.dot_dimension_numbers<[1], [0], [0], [1], [0, 0, 1, 1], [], []>} : vector<2x1024xbf16>, vector<1024x512xbf16>, vector<2x512xf32> -> vector<2x512xf32>
      %c0_58 = arith.constant 0 : index
      %c0_59 = arith.constant 0 : index
      %68 = vector.load %arg10[%c0_58, %c0_59] : memref<1x512xf32, #tpu.memory_space<vmem>>, vector<1x512xf32>
      %69 = vector.broadcast %68 : vector<1x512xf32> to vector<2x512xf32>
      %70 = arith.addf %67, %69 : vector<2x512xf32>
      %cst_60 = arith.constant 0.000000e+00 : f32
      %71 = vector.broadcast %cst_60 : f32 to vector<2x512xf32>
      %72 = arith.maximumf %70, %71 : vector<2x512xf32>
      %73 = arith.truncf %72 : vector<2x512xf32> to vector<2x512xbf16>
      %c0_61 = arith.constant 0 : index
      %c0_62 = arith.constant 0 : index
      %74 = vector.load %arg11[%c0_61, %c0_62] : memref<512x128xbf16, #tpu.memory_space<vmem>>, vector<512x128xbf16>
      %cst_63 = arith.constant dense<0.000000e+00> : vector<2x128xf32>
      %75 = tpu.matmul %73, %74, %cst_63 {dimension_numbers = #tpu.dot_dimension_numbers<[1], [0], [0], [1], [0, 0, 1, 1], [], []>} : vector<2x512xbf16>, vector<512x128xbf16>, vector<2x128xf32> -> vector<2x128xf32>
      %c0_64 = arith.constant 0 : index
      %c0_65 = arith.constant 0 : index
      %76 = vector.load %arg12[%c0_64, %c0_65] : memref<1x128xf32, #tpu.memory_space<vmem>>, vector<1x128xf32>
      %77 = vector.broadcast %76 : vector<1x128xf32> to vector<2x128xf32>
      %78 = arith.addf %75, %77 : vector<2x128xf32>
      %cst_66 = arith.constant 0.000000e+00 : f32
      %79 = vector.broadcast %cst_66 : f32 to vector<2x128xf32>
      %80 = arith.maximumf %78, %79 : vector<2x128xf32>
      %81 = arith.truncf %80 : vector<2x128xf32> to vector<2x128xbf16>
      %c0_67 = arith.constant 0 : index
      %c0_68 = arith.constant 0 : index
      %82 = vector.load %arg13[%c0_67, %c0_68] : memref<128x9xbf16, #tpu.memory_space<vmem>>, vector<128x9xbf16>
      %cst_69 = arith.constant dense<0.000000e+00> : vector<2x9xf32>
      %83 = tpu.matmul %81, %82, %cst_69 {dimension_numbers = #tpu.dot_dimension_numbers<[1], [0], [0], [1], [0, 0, 1, 1], [], []>} : vector<2x128xbf16>, vector<128x9xbf16>, vector<2x9xf32> -> vector<2x9xf32>
      %c0_70 = arith.constant 0 : index
      %c0_71 = arith.constant 0 : index
      %84 = vector.load %arg14[%c0_70, %c0_71] : memref<1x9xf32, #tpu.memory_space<vmem>>, vector<1x9xf32>
      %85 = vector.broadcast %84 : vector<1x9xf32> to vector<2x9xf32>
      %86 = arith.addf %83, %85 : vector<2x9xf32>
      %87 = vector.shape_cast %86 : vector<2x9xf32> to vector<1x2x9xf32>
      %c0_72 = arith.constant 0 : index
      %c0_73 = arith.constant 0 : index
      %c0_74 = arith.constant 0 : index
      %88 = vector.load %arg15[%c0_72, %c0_73, %c0_74] : memref<1x2x9xf32, #tpu.memory_space<vmem>>, vector<1x2x9xf32>
      tpu.vector_store %arg15[%c0_72, %c0_73, %c0_74], %87 {strides = array<i32>} : memref<1x2x9xf32, #tpu.memory_space<vmem>>, vector<1x2x9xf32>,
    } else {
    }
    return
  }
  func.func @transform_0(%arg0: i32, %arg1: i32) -> (i32, i32, i32) {
    %c0_i32 = arith.constant 0 : i32
    %c0_i32_0 = arith.constant 0 : i32
    return %arg0, %arg1, %c0_i32 : i32, i32, i32
  }
  func.func @transform_1(%arg0: i32, %arg1: i32) -> (i32, i32) {
    %c0_i32 = arith.constant 0 : i32
    %c0_i32_0 = arith.constant 0 : i32
    %c0_i32_1 = arith.constant 0 : i32
    return %c0_i32, %c0_i32_0 : i32, i32
  }
  func.func @transform_2(%arg0: i32, %arg1: i32) -> (i32, i32) {
    %c0_i32 = arith.constant 0 : i32
    %c0_i32_0 = arith.constant 0 : i32
    %c0_i32_1 = arith.constant 0 : i32
    return %c0_i32, %c0_i32_0 : i32, i32
  }
  func.func @transform_3(%arg0: i32, %arg1: i32) -> (i32, i32) {
    %c0_i32 = arith.constant 0 : i32
    %c0_i32_0 = arith.constant 0 : i32
    %c0_i32_1 = arith.constant 0 : i32
    return %c0_i32, %c0_i32_0 : i32, i32
  }
  func.func @transform_4(%arg0: i32, %arg1: i32) -> (i32, i32) {
    %c0_i32 = arith.constant 0 : i32
    %c0_i32_0 = arith.constant 0 : i32
    %c0_i32_1 = arith.constant 0 : i32
    return %c0_i32, %c0_i32_0 : i32, i32
  }
  func.func @transform_5(%arg0: i32, %arg1: i32) -> (i32, i32) {
    %c0_i32 = arith.constant 0 : i32
    %c0_i32_0 = arith.constant 0 : i32
    %c0_i32_1 = arith.constant 0 : i32
    return %c0_i32, %c0_i32_0 : i32, i32
  }
  func.func @transform_6(%arg0: i32, %arg1: i32) -> (i32, i32) {
    %c0_i32 = arith.constant 0 : i32
    %c0_i32_0 = arith.constant 0 : i32
    %c0_i32_1 = arith.constant 0 : i32
    return %c0_i32, %c0_i32_0 : i32, i32
  }
  func.func @transform_7(%arg0: i32, %arg1: i32) -> (i32, i32) {
    %c0_i32 = arith.constant 0 : i32
    %c0_i32_0 = arith.constant 0 : i32
    %c0_i32_1 = arith.constant 0 : i32
    return %c0_i32, %c0_i32_0 : i32, i32
  }
  func.func @transform_8(%arg0: i32, %arg1: i32) -> (i32, i32) {
    %c0_i32 = arith.constant 0 : i32
    %c0_i32_0 = arith.constant 0 : i32
    %c0_i32_1 = arith.constant 0 : i32
    return %c0_i32, %c0_i32_0 : i32, i32
  }
  func.func @transform_9(%arg0: i32, %arg1: i32) -> (i32, i32) {
    %c0_i32 = arith.constant 0 : i32
    %c0_i32_0 = arith.constant 0 : i32
    %c0_i32_1 = arith.constant 0 : i32
    return %c0_i32, %c0_i32_0 : i32, i32
  }
  func.func @transform_10(%arg0: i32, %arg1: i32) -> (i32, i32) {
    %c0_i32 = arith.constant 0 : i32
    %c0_i32_0 = arith.constant 0 : i32
    %c0_i32_1 = arith.constant 0 : i32
    return %c0_i32, %c0_i32_0 : i32, i32
  }
  func.func @transform_11(%arg0: i32, %arg1: i32) -> (i32, i32) {
    %c0_i32 = arith.constant 0 : i32
    %c0_i32_0 = arith.constant 0 : i32
    %c0_i32_1 = arith.constant 0 : i32
    return %c0_i32, %c0_i32_0 : i32, i32
  }
  func.func @transform_12(%arg0: i32, %arg1: i32) -> (i32, i32) {
    %c0_i32 = arith.constant 0 : i32
    %c0_i32_0 = arith.constant 0 : i32
    %c0_i32_1 = arith.constant 0 : i32
    return %c0_i32, %c0_i32_0 : i32, i32
  }
  func.func @transform_13(%arg0: i32, %arg1: i32) -> (i32, i32, i32) {
    %c0_i32 = arith.constant 0 : i32
    %c0_i32_0 = arith.constant 0 : i32
    %c0_i32_1 = arith.constant 0 : i32
    return %arg0, %c0_i32, %c0_i32_0 : i32, i32, i32
  }
}

</mosaic_0001>

<llo_original>
// kernel: tpu_custom_call.1
$region0: #{tpu_custom_call.1}
  #allocation0 [shape = 'u32[]', space=smem, size = 0x4, offset = 0x4, fixed_abs, tag = 'smem constant byte address 0x4 - core index']
  #allocation1 [shape = 'u32[144,128]{1,0:T(1,128)}', space=vmem, size = 0x12000, scoped, tag = 'internal scratch']
  #allocation2 [shape = 'f32[2,1024]{1,0:T(2,128)}', space=vmem, size = 0x2000, scoped, tag = 'scratch operand']
  %s0 = inlined_call_operand.vmem [shape: bf16[2,16,3], index: 0, kind: input, shape index: {}]
  %s1 = inlined_call_operand.vmem [shape: bf16[3,64], index: 1, kind: input, shape index: {}]
  %s2 = inlined_call_operand.vmem [shape: f32[1,64], index: 2, kind: input, shape index: {}]
  %s3 = inlined_call_operand.vmem [shape: bf16[64,128], index: 3, kind: input, shape index: {}]
  %s4 = inlined_call_operand.vmem [shape: f32[1,128], index: 4, kind: input, shape index: {}]
  %s5 = inlined_call_operand.hbm [shape: bf16[128,1024], index: 5, kind: input, shape index: {}]
  %s6 = inlined_call_operand.vmem [shape: f32[1,1024], index: 6, kind: input, shape index: {}]
  %s7 = inlined_call_operand.hbm [shape: bf16[1024,512], index: 7, kind: input, shape index: {}]
  %s8 = inlined_call_operand.vmem [shape: f32[1,512], index: 8, kind: input, shape index: {}]
  %s9 = inlined_call_operand.hbm [shape: bf16[512,128], index: 9, kind: input, shape index: {}]
  %s10 = inlined_call_operand.vmem [shape: f32[1,128], index: 10, kind: input, shape index: {}]
  %s11 = inlined_call_operand.vmem [shape: bf16[128,9], index: 11, kind: input, shape index: {}]
  %s12 = inlined_call_operand.vmem [shape: f32[1,9], index: 12, kind: input, shape index: {}]
  %s13 = inlined_call_operand.hbm [shape: f32[1,2,9], index: 13, kind: output, shape index: {}]
  %s14 = sld [smem:[#allocation0]]
  $region82: #{tpu_custom_call.1} parent=0
    _
  %s16 = ssub.s32 1, %s14
  %s17 = scalar_select 0, %s16, %s14
  $region1: #{tpu_custom_call.1} parent=0
    #allocation3 [shape = 'u8[262144]{0}', space=vmem, size = 0x40000, scoped, tag = 'input window, operand 5, single buffered']
    #allocation4 [shape = 's32[1]{0}', space=sflag, size = 0x4, scoped, tag = 'scoped memory for tpu_custom_call.1']
    #allocation5 [shape = 's32[1]{0}', space=sflag, size = 0x4, scoped, tag = 'scoped memory for tpu_custom_call.1']
    #allocation6 [shape = 'u8[1048576]{0}', space=vmem, size = 0x100000, scoped, tag = 'input window, operand 7, single buffered']
    #allocation7 [shape = 's32[1]{0}', space=sflag, size = 0x4, scoped, tag = 'scoped memory for tpu_custom_call.1']
    #allocation8 [shape = 'u8[131072]{0}', space=vmem, size = 0x20000, scoped, tag = 'input window, operand 9, single buffered']
    #allocation9 [shape = 'u8[1024]{0}', space=vmem, size = 0x400, scoped, tag = 'output window, operand 0, single buffered']
    %18 = vsyncpa [#allocation4], 0
    %19 = vsyncpa [#allocation7], 0
    %20 = vsyncpa [#allocation5], 0
    // Predicated region
    $region2: #{tpu_custom_call.1} parent=1 // pred_check
      _
    $region3: #{tpu_custom_call.1} parent=1 // pred_check_branch
      %22 = sbr.rel (0) target = $region5
    $region4: #{tpu_custom_call.1} parent=1 // pred_region
      _
    $region5: #{tpu_custom_call.1} parent=1 // pred_fallthru
      _
    // Predicated region
    $region6: #{tpu_custom_call.1} parent=1 // pred_check
      _
    $region7: #{tpu_custom_call.1} parent=1 // pred_check_branch
      %24 = sbr.rel (0) target = $region9
    $region8: #{tpu_custom_call.1} parent=1 // pred_region
      _
    $region9: #{tpu_custom_call.1} parent=1 // pred_fallthru
      _
    // Predicated region
    $region10: #{tpu_custom_call.1} parent=1 // pred_check
      _
    $region11: #{tpu_custom_call.1} parent=1 // pred_check_branch
      %26 = sbr.rel (0) target = $region13
    $region12: #{tpu_custom_call.1} parent=1 // pred_region
      _
    $region13: #{tpu_custom_call.1} parent=1 // pred_fallthru
      _
    // Predicated region
    $region14: #{tpu_custom_call.1} parent=1 // pred_check
      _
    $region15: #{tpu_custom_call.1} parent=1 // pred_check_branch
      %28 = sbr.rel (0) target = $region17
    $region16: #{tpu_custom_call.1} parent=1 // pred_region
      _
    $region17: #{tpu_custom_call.1} parent=1 // pred_fallthru
      _
    // Predicated region
    $region18: #{tpu_custom_call.1} parent=1 // pred_check
      _
    $region19: #{tpu_custom_call.1} parent=1 // pred_check_branch
      %30 = sbr.rel (0) target = $region21
    $region20: #{tpu_custom_call.1} parent=1 // pred_region
      _
    $region21: #{tpu_custom_call.1} parent=1 // pred_fallthru
      _
    // Predicated region
    $region22: #{tpu_custom_call.1} parent=1 // pred_check
      _
    $region23: #{tpu_custom_call.1} parent=1 // pred_check_branch
      %32 = sbr.rel (0) target = $region25
    $region24: #{tpu_custom_call.1} parent=1 // pred_region
      %s34 = ssub.s32 8192, 8192
      %35 = vsyncadd [#allocation4], %s34
      %s36 = sshll.u32 [#allocation3], 4
      %s37 = int_to_ptr.vmem [resolvable:$true] %s36
      %42 = dma.hbm_to_vmem [thread:$0]  %s5, 8192, %s37, [#allocation4], 512, 512, 32
    $region25: #{tpu_custom_call.1} parent=1 // pred_fallthru
      _
    // Predicated region
    $region26: #{tpu_custom_call.1} parent=1 // pred_check
      _
    $region27: #{tpu_custom_call.1} parent=1 // pred_check_branch
      %44 = sbr.rel (0) target = $region29
    $region28: #{tpu_custom_call.1} parent=1 // pred_region
      _
    $region29: #{tpu_custom_call.1} parent=1 // pred_fallthru
      _
    // Predicated region
    $region30: #{tpu_custom_call.1} parent=1 // pred_check
      _
    $region31: #{tpu_custom_call.1} parent=1 // pred_check_branch
      %46 = sbr.rel (0) target = $region33
    $region32: #{tpu_custom_call.1} parent=1 // pred_region
      %s48 = ssub.s32 32768, 32768
      %49 = vsyncadd [#allocation7], %s48
      %s50 = sshll.u32 [#allocation6], 4
      %s51 = int_to_ptr.vmem [resolvable:$true] %s50
      %56 = dma.hbm_to_vmem [thread:$0]  %s7, 32768, %s51, [#allocation7], 256, 256, 16
    $region33: #{tpu_custom_call.1} parent=1 // pred_fallthru
      _
    // Predicated region
    $region34: #{tpu_custom_call.1} parent=1 // pred_check
      _
    $region35: #{tpu_custom_call.1} parent=1 // pred_check_branch
      %58 = sbr.rel (0) target = $region37
    $region36: #{tpu_custom_call.1} parent=1 // pred_region
      _
    $region37: #{tpu_custom_call.1} parent=1 // pred_fallthru
      _
    // Predicated region
    $region38: #{tpu_custom_call.1} parent=1 // pred_check
      _
    $region39: #{tpu_custom_call.1} parent=1 // pred_check_branch
      %60 = sbr.rel (0) target = $region41
    $region40: #{tpu_custom_call.1} parent=1 // pred_region
      %s62 = ssub.s32 4096, 4096
      %63 = vsyncadd [#allocation7], %s62
      %s64 = sshll.u32 [#allocation8], 4
      %s65 = int_to_ptr.vmem [resolvable:$true] %s64
      %70 = dma.hbm_to_vmem [thread:$0]  %s9, 4096, %s65, [#allocation7], 64, 64, 4
    $region41: #{tpu_custom_call.1} parent=1 // pred_fallthru
      _
    // Predicated region
    $region42: #{tpu_custom_call.1} parent=1 // pred_check
      _
    $region43: #{tpu_custom_call.1} parent=1 // pred_check_branch
      %72 = sbr.rel (0) target = $region45
    $region44: #{tpu_custom_call.1} parent=1 // pred_region
      _
    $region45: #{tpu_custom_call.1} parent=1 // pred_fallthru
      _
    // Predicated region
    $region46: #{tpu_custom_call.1} parent=1 // pred_check
      _
    $region47: #{tpu_custom_call.1} parent=1 // pred_check_branch
      %74 = sbr.rel (0) target = $region49
    $region48: #{tpu_custom_call.1} parent=1 // pred_region
      _
    $region49: #{tpu_custom_call.1} parent=1 // pred_fallthru
      _
    // Predicated region
    $region50: #{tpu_custom_call.1} parent=1 // pred_check
      _
    $region51: #{tpu_custom_call.1} parent=1 // pred_check_branch
      %76 = sbr.rel (0) target = $region53
    $region52: #{tpu_custom_call.1} parent=1 // pred_region
      _
    $region53: #{tpu_custom_call.1} parent=1 // pred_fallthru
      _
    // Predicated region
    $region54: #{tpu_custom_call.1} parent=1 // pred_check
      _
    $region55: #{tpu_custom_call.1} parent=1 // pred_check_branch
      %78 = sbr.rel (0) target = $region57
    $region56: #{tpu_custom_call.1} parent=1 // pred_region
      %79 = dma.done [#allocation4], 8192
    $region57: #{tpu_custom_call.1} parent=1 // pred_fallthru
      _
    // Predicated region
    $region58: #{tpu_custom_call.1} parent=1 // pred_check
      _
    $region59: #{tpu_custom_call.1} parent=1 // pred_check_branch
      %81 = sbr.rel (0) target = $region61
    $region60: #{tpu_custom_call.1} parent=1 // pred_region
      %82 = dma.done [#allocation7], 32768
    $region61: #{tpu_custom_call.1} parent=1 // pred_fallthru
      _
    // Predicated region
    $region62: #{tpu_custom_call.1} parent=1 // pred_check
      _
    $region63: #{tpu_custom_call.1} parent=1 // pred_check_branch
      %84 = sbr.rel (0) target = $region65
    $region64: #{tpu_custom_call.1} parent=1 // pred_region
      %85 = dma.done [#allocation7], 4096
    $region65: #{tpu_custom_call.1} parent=1 // pred_fallthru
      _
    %p87 = scmp.eq.s32.totalorder 0, 0
    // Predicated region
    $region66: #{tpu_custom_call.1} parent=1 // pred_check
      %p88 = pneg %p87
    $region67: #{tpu_custom_call.1} parent=1 // pred_check_branch
      %90 = sbr.rel (%p88) target = $region69
    $region68: #{tpu_custom_call.1} parent=1 // pred_region
      %91 = vst [vmem:[#allocation2] sm:$0xff] 0.0
      %92 = vst [vmem:[#allocation2 + $0x8] sm:$0xff] 0.0
    $region69: #{tpu_custom_call.1} parent=1 // pred_fallthru
      _
    %v93 = vld [vmem:[%s0] sm:$0xf]
    %v94 = vld [vmem:[%s0 + $0x4] sm:$0xf]
    %v95 = vld [vmem:[%s0 + $0x8] sm:$0xf]
    %v96 = vld [vmem:[%s0 + $0xc] sm:$0xf]
    %v97 = vld [vmem:[%s1] sm:$0x3]
    %v98 = vld [vmem:[%s2] sm:$0x1]
    %v100 = vlaneseq
    %v101 = vshrl.u32 %v100, 7
    %v102 = vsub.s32 0, %v101
    %v103 = vrot.slane %v98, %v102
    %v109 = vunpack.c.l.b16 %v93
    %v110 = vunpack.c.l.b16 %v94
    %v111 = vunpack.c.l.b16 %v95
    %v112 = vunpack.c.l.b16 %v96
    %v113 = vpack.c.b16 %v110, %v109
    %v114 = vpack.c.b16 %v112, %v111
    %vm115 = vcmask 23552
    %v117 = vsel %vm115, %v113, 0
    %v120 = vsel %vm115, %v114, 0
    %vm122 = vcmask 1040384
    %vm123 = vcmask 1041408
    %v124 = vsel %vm122, 4294967295, 65535
    %v125 = vsel %vm123, %v124, 0
    %v127 = vand.u32 %v97, %v125
    %129 = vmatprep.subr.bf16.mxu0 0
    %130 = vmatpush1.bf16.msra.mxu0 %v127
    %131 = vmatprep.subr.bf16.mxu0 0
    %132 = vmatpush1.bf16.msra.mxu0 0
    %133 = vmatprep.subr.bf16.mxu0 0
    %134 = vmatpush1.bf16.msra.mxu0 0
    %135 = vmatprep.subr.bf16.mxu0 0
    %136 = vmatpush1.bf16.msra.mxu0 0
    %137 = vmatprep.subr.bf16.mxu0 0
    %138 = vmatpush1.bf16.msra.mxu0 0
    %139 = vmatprep.subr.bf16.mxu0 0
    %140 = vmatpush1.bf16.msra.mxu0 0
    %141 = vmatprep.subr.bf16.mxu0 0
    %142 = vmatpush1.bf16.msra.mxu0 0
    %143 = vmatprep.subr.bf16.mxu0 0
    %144 = vmatpush1.bf16.msra.mxu0 0
    %145 = vmatprep.subr.bf16.mxu0 0
    %146 = vmatpush1.bf16.msra.mxu0 0
    %147 = vmatprep.subr.bf16.mxu0 0
    %148 = vmatpush1.bf16.msra.mxu0 0
    %149 = vmatprep.subr.bf16.mxu0 0
    %150 = vmatpush1.bf16.msra.mxu0 0
    %151 = vmatprep.subr.bf16.mxu0 0
    %152 = vmatpush1.bf16.msra.mxu0 0
    %153 = vmatprep.subr.bf16.mxu0 0
    %154 = vmatpush1.bf16.msra.mxu0 0
    %155 = vmatprep.subr.bf16.mxu0 0
    %156 = vmatpush1.bf16.msra.mxu0 0
    %157 = vmatprep.subr.bf16.mxu0 0
    %158 = vmatpush1.bf16.msra.mxu0 0
    %159 = vmatprep.subr.bf16.mxu0 0
    %160 = vmatpush1.bf16.msra.mxu0 0
    %161 = vmatprep.mubr.bf16.mxu0 0
    %162 = vmatmul.mubr.bf16.gmra.mrb[0].mxu0 %v117
    %v163 = vpop.f32.mrb[0].mxu0
    %v164 = vadd.f32 %v103, %v163
    %v165 = vpop.f32.mrb[0].mxu0
    %v166 = vpop.f32.mrb[0].mxu0
    %v167 = vadd.f32 %v103, %v166
    %v168 = vpop.f32.mrb[0].mxu0
    %169 = vmatprep.mubr.bf16.mxu0 0
    %170 = vmatmul.mubr.bf16.gmra.mrb[0].mxu0 %v120
    %v171 = vpop.f32.mrb[0].mxu0
    %v172 = vadd.f32 %v103, %v171
    %v173 = vpop.f32.mrb[0].mxu0
    %v174 = vpop.f32.mrb[0].mxu0
    %v175 = vadd.f32 %v103, %v174
    %v176 = vpop.f32.mrb[0].mxu0
    %177 = vdwg.mxu0
    %v178 = vmax.f32 %v164, 0.0
    %v179 = vmax.f32 %v167, 0.0
    %v180 = vmax.f32 %v172, 0.0
    %v181 = vmax.f32 %v175, 0.0
    %v182 = vpack.c.bf16 %v179, %v178
    %v183 = vpack.c.bf16 %v181, %v180
    %v184 = vld [vmem:[%s3] sm:$0xf]
    %v185 = vld [vmem:[%s3 + $0x4] sm:$0xf]
    %v186 = vld [vmem:[%s3 + $0x8] sm:$0xf]
    %v187 = vld [vmem:[%s3 + $0xc] sm:$0xf]
    %v188 = vld [vmem:[%s3 + $0x10] sm:$0xf]
    %v189 = vld [vmem:[%s3 + $0x14] sm:$0xf]
    %v190 = vld [vmem:[%s3 + $0x18] sm:$0xf]
    %v191 = vld [vmem:[%s3 + $0x1c] sm:$0xf]
    %v192 = vld [vmem:[%s4] sm:$0x1]
    %v194 = vlaneseq
    %v195 = vshrl.u32 %v194, 7
    %v196 = vsub.s32 0, %v195
    %v197 = vrot.slane %v192, %v196
    %v207 = vunpack.c.l.b16 %v184
    %v208 = vunpack.c.l.b16 %v185
    %v209 = vunpack.c.l.b16 %v186
    %v210 = vunpack.c.l.b16 %v187
    %v211 = vunpack.c.l.b16 %v188
    %v212 = vunpack.c.l.b16 %v189
    %v213 = vunpack.c.l.b16 %v190
    %v214 = vunpack.c.l.b16 %v191
    %v215 = vpack.c.b16 %v208, %v207
    %v216 = vpack.c.b16 %v210, %v209
    %v217 = vpack.c.b16 %v212, %v211
    %v218 = vpack.c.b16 %v214, %v213
    %vm223 = vcmask 523264
    %v225 = vsel %vm223, %v182, 0
    %v228 = vsel %vm223, %v183, 0
    %230 = vmatprep.subr.bf16.mxu0 0
    %231 = vmatpush1.bf16.msra.mxu0 %v215
    %232 = vmatprep.subr.bf16.mxu0 0
    %233 = vmatpush1.bf16.msra.mxu0 %v216
    %234 = vmatprep.subr.bf16.mxu0 0
    %235 = vmatpush1.bf16.msra.mxu0 %v217
    %236 = vmatprep.subr.bf16.mxu0 0
    %237 = vmatpush1.bf16.msra.mxu0 %v218
    %238 = vmatprep.subr.bf16.mxu0 0
    %239 = vmatpush1.bf16.msra.mxu0 0
    %240 = vmatprep.subr.bf16.mxu0 0
    %241 = vmatpush1.bf16.msra.mxu0 0
    %242 = vmatprep.subr.bf16.mxu0 0
    %243 = vmatpush1.bf16.msra.mxu0 0
    %244 = vmatprep.subr.bf16.mxu0 0
    %245 = vmatpush1.bf16.msra.mxu0 0
    %246 = vmatprep.subr.bf16.mxu0 0
    %247 = vmatpush1.bf16.msra.mxu0 0
    %248 = vmatprep.subr.bf16.mxu0 0
    %249 = vmatpush1.bf16.msra.mxu0 0
    %250 = vmatprep.subr.bf16.mxu0 0
    %251 = vmatpush1.bf16.msra.mxu0 0
    %252 = vmatprep.subr.bf16.mxu0 0
    %253 = vmatpush1.bf16.msra.mxu0 0
    %254 = vmatprep.subr.bf16.mxu0 0
    %255 = vmatpush1.bf16.msra.mxu0 0
    %256 = vmatprep.subr.bf16.mxu0 0
    %257 = vmatpush1.bf16.msra.mxu0 0
    %258 = vmatprep.subr.bf16.mxu0 0
    %259 = vmatpush1.bf16.msra.mxu0 0
    %260 = vmatprep.subr.bf16.mxu0 0
    %261 = vmatpush1.bf16.msra.mxu0 0
    %262 = vmatprep.mubr.bf16.mxu0 0
    %263 = vmatmul.mubr.bf16.gmra.mrb[0].mxu0 %v225
    %v264 = vpop.f32.mrb[0].mxu0
    %v265 = vadd.f32 %v197, %v264
    %v266 = vpop.f32.mrb[0].mxu0
    %v267 = vpop.f32.mrb[0].mxu0
    %v268 = vadd.f32 %v197, %v267
    %v269 = vpop.f32.mrb[0].mxu0
    %270 = vmatprep.mubr.bf16.mxu0 0
    %271 = vmatmul.mubr.bf16.gmra.mrb[0].mxu0 %v228
    %v272 = vpop.f32.mrb[0].mxu0
    %v273 = vadd.f32 %v197, %v272
    %v274 = vpop.f32.mrb[0].mxu0
    %v275 = vpop.f32.mrb[0].mxu0
    %v276 = vadd.f32 %v197, %v275
    %v277 = vpop.f32.mrb[0].mxu0
    %278 = vdwg.mxu0
    %v279 = vmax.f32 %v265, 0.0
    %v280 = vmax.f32 %v268, 0.0
    %v281 = vmax.f32 %v273, 0.0
    %v282 = vmax.f32 %v276, 0.0
    %v283 = vpack.c.bf16 %v280, %v279
    %v284 = vpack.c.bf16 %v282, %v281
    %v285 = vld [vmem:[#allocation3] sm:$0xff]
    %v286 = vld [vmem:[#allocation3 + $0x20] sm:$0xff]
    %v287 = vld [vmem:[#allocation3 + $0x40] sm:$0xff]
    %v288 = vld [vmem:[#allocation3 + $0x60] sm:$0xff]
    %v289 = vld [vmem:[#allocation3 + $0x80] sm:$0xff]
    %v290 = vld [vmem:[#allocation3 + $0xa0] sm:$0xff]
    %v291 = vld [vmem:[#allocation3 + $0xc0] sm:$0xff]
    %v292 = vld [vmem:[#allocation3 + $0xe0] sm:$0xff]
    %v293 = vld [vmem:[#allocation3 + $0x100] sm:$0xff]
    %v294 = vld [vmem:[#allocation3 + $0x120] sm:$0xff]
    %v295 = vld [vmem:[#allocation3 + $0x140] sm:$0xff]
    %v296 = vld [vmem:[#allocation3 + $0x160] sm:$0xff]
    %v297 = vld [vmem:[#allocation3 + $0x180] sm:$0xff]
    %v298 = vld [vmem:[#allocation3 + $0x1a0] sm:$0xff]
    %v299 = vld [vmem:[#allocation3 + $0x1c0] sm:$0xff]
    %v300 = vld [vmem:[#allocation3 + $0x1e0] sm:$0xff]
    %v301 = vld [vmem:[%s6] sm:$0x3]
    %v303 = vlaneseq
    %v304 = vshrl.u32 %v303, 7
    %v305 = vsub.s32 0, %v304
    %v306 = vrot.slane %v301, %v305
    %v307 = vlaneseq
    %v308 = vshrl.u32 %v307, 7
    %v309 = vsub.s32 1, %v308
    %v310 = vrot.slane %v301, %v309
    %v329 = vunpack.c.l.b16 %v285
    %v330 = vunpack.c.h.b16 %v285
    %v331 = vunpack.c.l.b16 %v286
    %v332 = vunpack.c.h.b16 %v286
    %v333 = vunpack.c.l.b16 %v287
    %v334 = vunpack.c.h.b16 %v287
    %v335 = vunpack.c.l.b16 %v288
    %v336 = vunpack.c.h.b16 %v288
    %v337 = vunpack.c.l.b16 %v289
    %v338 = vunpack.c.h.b16 %v289
    %v339 = vunpack.c.l.b16 %v290
    %v340 = vunpack.c.h.b16 %v290
    %v341 = vunpack.c.l.b16 %v291
    %v342 = vunpack.c.h.b16 %v291
    %v343 = vunpack.c.l.b16 %v292
    %v344 = vunpack.c.h.b16 %v292
    %v345 = vunpack.c.l.b16 %v293
    %v346 = vunpack.c.h.b16 %v293
    %v347 = vunpack.c.l.b16 %v294
    %v348 = vunpack.c.h.b16 %v294
    %v349 = vunpack.c.l.b16 %v295
    %v350 = vunpack.c.h.b16 %v295
    %v351 = vunpack.c.l.b16 %v296
    %v352 = vunpack.c.h.b16 %v296
    %v353 = vunpack.c.l.b16 %v297
    %v354 = vunpack.c.h.b16 %v297
    %v355 = vunpack.c.l.b16 %v298
    %v356 = vunpack.c.h.b16 %v298
    %v357 = vunpack.c.l.b16 %v299
    %v358 = vunpack.c.h.b16 %v299
    %v359 = vunpack.c.l.b16 %v300
    %v360 = vunpack.c.h.b16 %v300
    %v361 = vpack.c.b16 %v331, %v329
    %v362 = vpack.c.b16 %v332, %v330
    %v363 = vpack.c.b16 %v335, %v333
    %v364 = vpack.c.b16 %v336, %v334
    %v365 = vpack.c.b16 %v339, %v337
    %v366 = vpack.c.b16 %v340, %v338
    %v367 = vpack.c.b16 %v343, %v341
    %v368 = vpack.c.b16 %v344, %v342
    %v369 = vpack.c.b16 %v347, %v345
    %v370 = vpack.c.b16 %v348, %v346
    %v371 = vpack.c.b16 %v351, %v349
    %v372 = vpack.c.b16 %v352, %v350
    %v373 = vpack.c.b16 %v355, %v353
    %v374 = vpack.c.b16 %v356, %v354
    %v375 = vpack.c.b16 %v359, %v357
    %v376 = vpack.c.b16 %v360, %v358
    %393 = vmatprep.subr.bf16.mxu0 %v362
    %394 = vmatpush1.bf16.msra.mxu0 %v361
    %395 = vmatprep.subr.bf16.mxu0 %v364
    %396 = vmatpush1.bf16.msra.mxu0 %v363
    %397 = vmatprep.subr.bf16.mxu0 %v366
    %398 = vmatpush1.bf16.msra.mxu0 %v365
    %399 = vmatprep.subr.bf16.mxu0 %v368
    %400 = vmatpush1.bf16.msra.mxu0 %v367
    %401 = vmatprep.subr.bf16.mxu0 %v370
    %402 = vmatpush1.bf16.msra.mxu0 %v369
    %403 = vmatprep.subr.bf16.mxu0 %v372
    %404 = vmatpush1.bf16.msra.mxu0 %v371
    %405 = vmatprep.subr.bf16.mxu0 %v374
    %406 = vmatpush1.bf16.msra.mxu0 %v373
    %407 = vmatprep.subr.bf16.mxu0 %v376
    %408 = vmatpush1.bf16.msra.mxu0 %v375
    %409 = vmatprep.subr.bf16.mxu0 0
    %410 = vmatpush1.bf16.msra.mxu0 0
    %411 = vmatprep.subr.bf16.mxu0 0
    %412 = vmatpush1.bf16.msra.mxu0 0
    %413 = vmatprep.subr.bf16.mxu0 0
    %414 = vmatpush1.bf16.msra.mxu0 0
    %415 = vmatprep.subr.bf16.mxu0 0
    %416 = vmatpush1.bf16.msra.mxu0 0
    %417 = vmatprep.subr.bf16.mxu0 0
    %418 = vmatpush1.bf16.msra.mxu0 0
    %419 = vmatprep.subr.bf16.mxu0 0
    %420 = vmatpush1.bf16.msra.mxu0 0
    %421 = vmatprep.subr.bf16.mxu0 0
    %422 = vmatpush1.bf16.msra.mxu0 0
    %423 = vmatprep.subr.bf16.mxu0 0
    %424 = vmatpush1.bf16.msra.mxu0 0
    %425 = vmatprep.mubr.bf16.mxu0 0
    %426 = vmatmul.mubr.bf16.gmra.mrb[0].mxu0 %v283
    %v427 = vpop.f32.mrb[0].mxu0
    %v428 = vadd.f32 %v306, %v427
    %v429 = vpop.f32.mrb[0].mxu0
    %v430 = vadd.f32 %v310, %v429
    %v431 = vpop.f32.mrb[0].mxu0
    %v432 = vadd.f32 %v306, %v431
    %v433 = vpop.f32.mrb[0].mxu0
    %v434 = vadd.f32 %v310, %v433
    %435 = vmatprep.mubr.bf16.mxu0 0
    %436 = vmatmul.mubr.bf16.gmra.mrb[0].mxu0 %v284
    %v437 = vpop.f32.mrb[0].mxu0
    %v438 = vadd.f32 %v306, %v437
    %v439 = vpop.f32.mrb[0].mxu0
    %v440 = vadd.f32 %v310, %v439
    %v441 = vpop.f32.mrb[0].mxu0
    %v442 = vadd.f32 %v306, %v441
    %v443 = vpop.f32.mrb[0].mxu0
    %v444 = vadd.f32 %v310, %v443
    %445 = vdwg.mxu0
    %v446 = vmax.f32 %v428, %v432
    %v447 = vrot.slane %v446, 4
    %v448 = vmax.f32 %v446, %v447
    %v449 = vrot.slane %v448, 2
    %v450 = vmax.f32 %v448, %v449
    %v451 = vrot.slane %v450, 1
    %v452 = vmax.f32 %v450, %v451
    %v453 = vmax.f32 %v430, %v434
    %v454 = vrot.slane %v453, 4
    %v455 = vmax.f32 %v453, %v454
    %v456 = vrot.slane %v455, 2
    %v457 = vmax.f32 %v455, %v456
    %v458 = vrot.slane %v457, 1
    %v459 = vmax.f32 %v457, %v458
    %v460 = vmax.f32 %v438, %v442
    %v461 = vrot.slane %v460, 4
    %v462 = vmax.f32 %v460, %v461
    %v463 = vrot.slane %v462, 2
    %v464 = vmax.f32 %v462, %v463
    %v465 = vrot.slane %v464, 1
    %v466 = vmax.f32 %v464, %v465
    %v467 = vmax.f32 %v440, %v444
    %v468 = vrot.slane %v467, 4
    %v469 = vmax.f32 %v467, %v468
    %v470 = vrot.slane %v469, 2
    %v471 = vmax.f32 %v469, %v470
    %v472 = vrot.slane %v471, 1
    %v473 = vmax.f32 %v471, %v472
    %v474 = vld [vmem:[#allocation2] sm:$0xf]
    %v479 = vcombine.low %v452, %v459
    %v481 = vunpack.c.l.s4 1983009808
    %v482 = vunpack.c.0.s8 %v481
    %v483 = vlaneseq
    %v484 = vshrl.u32 %v483, 7
    %v485 = vsub.s32 %v482, %v484
    %v486 = vrot.slane %v479, %v485
    %v487 = vcombine.low %v466, %v473
    %v489 = vunpack.c.l.s4 1983009808
    %v490 = vunpack.c.0.s8 %v489
    %v491 = vlaneseq
    %v492 = vshrl.u32 %v491, 7
    %v493 = vsub.s32 %v490, %v492
    %v494 = vrot.slane %v487, %v493
    %vm495 = vcmask 1044484
    %v496 = vsel %vm495, %v486, %v486
    %vm497 = vcmask 1046534
    %v498 = vsel %vm497, %v486, %v496
    %v499 = vrot.slane %v494, 7
    %vm500 = vcmask 1041409
    %v501 = vsel %vm500, %v499, %v498
    %vm502 = vcmask 1043459
    %v503 = vsel %vm502, %v499, %v501
    %vm504 = vcmask 1045509
    %v505 = vsel %vm504, %v499, %v503
    %vm506 = vcmask 1047559
    %v507 = vsel %vm506, %v499, %v505
    %v509 = vmax.f32 %v474, %v507
    %510 = vst [vmem:[#allocation2] sm:$0xf] %v509
    %v511 = vld [vmem:[#allocation3 + $0x8] sm:$0xff]
    %v512 = vld [vmem:[#allocation3 + $0x28] sm:$0xff]
    %v513 = vld [vmem:[#allocation3 + $0x48] sm:$0xff]
    %v514 = vld [vmem:[#allocation3 + $0x68] sm:$0xff]
    %v515 = vld [vmem:[#allocation3 + $0x88] sm:$0xff]
    %v516 = vld [vmem:[#allocation3 + $0xa8] sm:$0xff]
    %v517 = vld [vmem:[#allocation3 + $0xc8] sm:$0xff]
    %v518 = vld [vmem:[#allocation3 + $0xe8] sm:$0xff]
    %v519 = vld [vmem:[#allocation3 + $0x108] sm:$0xff]
    %v520 = vld [vmem:[#allocation3 + $0x128] sm:$0xff]
    %v521 = vld [vmem:[#allocation3 + $0x148] sm:$0xff]
    %v522 = vld [vmem:[#allocation3 + $0x168] sm:$0xff]
    %v523 = vld [vmem:[#allocation3 + $0x188] sm:$0xff]
    %v524 = vld [vmem:[#allocation3 + $0x1a8] sm:$0xff]
    %v525 = vld [vmem:[#allocation3 + $0x1c8] sm:$0xff]
    %v526 = vld [vmem:[#allocation3 + $0x1e8] sm:$0xff]
    %v527 = vld [vmem:[%s6 + $0x2] sm:$0x3]
    %v529 = vlaneseq
    %v530 = vshrl.u32 %v529, 7
    %v531 = vsub.s32 0, %v530
    %v532 = vrot.slane %v527, %v531
    %v533 = vlaneseq
    %v534 = vshrl.u32 %v533, 7
    %v535 = vsub.s32 1, %v534
    %v536 = vrot.slane %v527, %v535
    %v555 = vunpack.c.l.b16 %v511
    %v556 = vunpack.c.h.b16 %v511
    %v557 = vunpack.c.l.b16 %v512
    %v558 = vunpack.c.h.b16 %v512
    %v559 = vunpack.c.l.b16 %v513
    %v560 = vunpack.c.h.b16 %v513
    %v561 = vunpack.c.l.b16 %v514
    %v562 = vunpack.c.h.b16 %v514
    %v563 = vunpack.c.l.b16 %v515
    %v564 = vunpack.c.h.b16 %v515
    %v565 = vunpack.c.l.b16 %v516
    %v566 = vunpack.c.h.b16 %v516
    %v567 = vunpack.c.l.b16 %v517
    %v568 = vunpack.c.h.b16 %v517
    %v569 = vunpack.c.l.b16 %v518
    %v570 = vunpack.c.h.b16 %v518
    %v571 = vunpack.c.l.b16 %v519
    %v572 = vunpack.c.h.b16 %v519
    %v573 = vunpack.c.l.b16 %v520
    %v574 = vunpack.c.h.b16 %v520
    %v575 = vunpack.c.l.b16 %v521
    %v576 = vunpack.c.h.b16 %v521
    %v577 = vunpack.c.l.b16 %v522
    %v578 = vunpack.c.h.b16 %v522
    %v579 = vunpack.c.l.b16 %v523
    %v580 = vunpack.c.h.b16 %v523
    %v581 = vunpack.c.l.b16 %v524
    %v582 = vunpack.c.h.b16 %v524
    %v583 = vunpack.c.l.b16 %v525
    %v584 = vunpack.c.h.b16 %v525
    %v585 = vunpack.c.l.b16 %v526
    %v586 = vunpack.c.h.b16 %v526
    %v587 = vpack.c.b16 %v557, %v555
    %v588 = vpack.c.b16 %v558, %v556
    %v589 = vpack.c.b16 %v561, %v559
    %v590 = vpack.c.b16 %v562, %v560
    %v591 = vpack.c.b16 %v565, %v563
    %v592 = vpack.c.b16 %v566, %v564
    %v593 = vpack.c.b16 %v569, %v567
    %v594 = vpack.c.b16 %v570, %v568
    %v595 = vpack.c.b16 %v573, %v571
    %v596 = vpack.c.b16 %v574, %v572
    %v597 = vpack.c.b16 %v577, %v575
    %v598 = vpack.c.b16 %v578, %v576
    %v599 = vpack.c.b16 %v581, %v579
    %v600 = vpack.c.b16 %v582, %v580
    %v601 = vpack.c.b16 %v585, %v583
    %v602 = vpack.c.b16 %v586, %v584
    %619 = vmatprep.subr.bf16.mxu0 %v588
    %620 = vmatpush1.bf16.msra.mxu0 %v587
    %621 = vmatprep.subr.bf16.mxu0 %v590
    %622 = vmatpush1.bf16.msra.mxu0 %v589
    %623 = vmatprep.subr.bf16.mxu0 %v592
    %624 = vmatpush1.bf16.msra.mxu0 %v591
    %625 = vmatprep.subr.bf16.mxu0 %v594
    %626 = vmatpush1.bf16.msra.mxu0 %v593
    %627 = vmatprep.subr.bf16.mxu0 %v596
    %628 = vmatpush1.bf16.msra.mxu0 %v595
    %629 = vmatprep.subr.bf16.mxu0 %v598
    %630 = vmatpush1.bf16.msra.mxu0 %v597
    %631 = vmatprep.subr.bf16.mxu0 %v600
    %632 = vmatpush1.bf16.msra.mxu0 %v599
    %633 = vmatprep.subr.bf16.mxu0 %v602
    %634 = vmatpush1.bf16.msra.mxu0 %v601
    %635 = vmatprep.subr.bf16.mxu0 0
    %636 = vmatpush1.bf16.msra.mxu0 0
    %637 = vmatprep.subr.bf16.mxu0 0
    %638 = vmatpush1.bf16.msra.mxu0 0
    %639 = vmatprep.subr.bf16.mxu0 0
    %640 = vmatpush1.bf16.msra.mxu0 0
    %641 = vmatprep.subr.bf16.mxu0 0
    %642 = vmatpush1.bf16.msra.mxu0 0
    %643 = vmatprep.subr.bf16.mxu0 0
    %644 = vmatpush1.bf16.msra.mxu0 0
    %645 = vmatprep.subr.bf16.mxu0 0
    %646 = vmatpush1.bf16.msra.mxu0 0
    %647 = vmatprep.subr.bf16.mxu0 0
    %648 = vmatpush1.bf16.msra.mxu0 0
    %649 = vmatprep.subr.bf16.mxu0 0
    %650 = vmatpush1.bf16.msra.mxu0 0
    %651 = vmatprep.mubr.bf16.mxu0 0
    %652 = vmatmul.mubr.bf16.gmra.mrb[0].mxu0 %v283
    %v653 = vpop.f32.mrb[0].mxu0
    %v654 = vadd.f32 %v532, %v653
    %v655 = vpop.f32.mrb[0].mxu0
    %v656 = vadd.f32 %v536, %v655
    %v657 = vpop.f32.mrb[0].mxu0
    %v658 = vadd.f32 %v532, %v657
    %v659 = vpop.f32.mrb[0].mxu0
    %v660 = vadd.f32 %v536, %v659
    %661 = vmatprep.mubr.bf16.mxu0 0
    %662 = vmatmul.mubr.bf16.gmra.mrb[0].mxu0 %v284
    %v663 = vpop.f32.mrb[0].mxu0
    %v664 = vadd.f32 %v532, %v663
    %v665 = vpop.f32.mrb[0].mxu0
    %v666 = vadd.f32 %v536, %v665
    %v667 = vpop.f32.mrb[0].mxu0
    %v668 = vadd.f32 %v532, %v667
    %v669 = vpop.f32.mrb[0].mxu0
    %v670 = vadd.f32 %v536, %v669
    %671 = vdwg.mxu0
    %v672 = vmax.f32 %v654, %v658
    %v673 = vrot.slane %v672, 4
    %v674 = vmax.f32 %v672, %v673
    %v675 = vrot.slane %v674, 2
    %v676 = vmax.f32 %v674, %v675
    %v677 = vrot.slane %v676, 1
    %v678 = vmax.f32 %v676, %v677
    %v679 = vmax.f32 %v656, %v660
    %v680 = vrot.slane %v679, 4
    %v681 = vmax.f32 %v679, %v680
    %v682 = vrot.slane %v681, 2
    %v683 = vmax.f32 %v681, %v682
    %v684 = vrot.slane %v683, 1
    %v685 = vmax.f32 %v683, %v684
    %v686 = vmax.f32 %v664, %v668
    %v687 = vrot.slane %v686, 4
    %v688 = vmax.f32 %v686, %v687
    %v689 = vrot.slane %v688, 2
    %v690 = vmax.f32 %v688, %v689
    %v691 = vrot.slane %v690, 1
    %v692 = vmax.f32 %v690, %v691
    %v693 = vmax.f32 %v666, %v670
    %v694 = vrot.slane %v693, 4
    %v695 = vmax.f32 %v693, %v694
    %v696 = vrot.slane %v695, 2
    %v697 = vmax.f32 %v695, %v696
    %v698 = vrot.slane %v697, 1
    %v699 = vmax.f32 %v697, %v698
    %v700 = vld [vmem:[#allocation2 + $0x4] sm:$0xf]
    %v705 = vcombine.low %v678, %v685
    %v707 = vunpack.c.l.s4 1983009808
    %v708 = vunpack.c.0.s8 %v707
    %v709 = vlaneseq
    %v710 = vshrl.u32 %v709, 7
    %v711 = vsub.s32 %v708, %v710
    %v712 = vrot.slane %v705, %v711
    %v713 = vcombine.low %v692, %v699
    %v715 = vunpack.c.l.s4 1983009808
    %v716 = vunpack.c.0.s8 %v715
    %v717 = vlaneseq
    %v718 = vshrl.u32 %v717, 7
    %v719 = vsub.s32 %v716, %v718
    %v720 = vrot.slane %v713, %v719
    %v721 = vsel %vm495, %v712, %v712
    %v722 = vsel %vm497, %v712, %v721
    %v723 = vrot.slane %v720, 7
    %v724 = vsel %vm500, %v723, %v722
    %v725 = vsel %vm502, %v723, %v724
    %v726 = vsel %vm504, %v723, %v725
    %v727 = vsel %vm506, %v723, %v726
    %v729 = vmax.f32 %v700, %v727
    %730 = vst [vmem:[#allocation2 + $0x4] sm:$0xf] %v729
    %v731 = vld [vmem:[#allocation3 + $0x10] sm:$0xff]
    %v732 = vld [vmem:[#allocation3 + $0x30] sm:$0xff]
    %v733 = vld [vmem:[#allocation3 + $0x50] sm:$0xff]
    %v734 = vld [vmem:[#allocation3 + $0x70] sm:$0xff]
    %v735 = vld [vmem:[#allocation3 + $0x90] sm:$0xff]
    %v736 = vld [vmem:[#allocation3 + $0xb0] sm:$0xff]
    %v737 = vld [vmem:[#allocation3 + $0xd0] sm:$0xff]
    %v738 = vld [vmem:[#allocation3 + $0xf0] sm:$0xff]
    %v739 = vld [vmem:[#allocation3 + $0x110] sm:$0xff]
    %v740 = vld [vmem:[#allocation3 + $0x130] sm:$0xff]
    %v741 = vld [vmem:[#allocation3 + $0x150] sm:$0xff]
    %v742 = vld [vmem:[#allocation3 + $0x170] sm:$0xff]
    %v743 = vld [vmem:[#allocation3 + $0x190] sm:$0xff]
    %v744 = vld [vmem:[#allocation3 + $0x1b0] sm:$0xff]
    %v745 = vld [vmem:[#allocation3 + $0x1d0] sm:$0xff]
    %v746 = vld [vmem:[#allocation3 + $0x1f0] sm:$0xff]
    %v747 = vld [vmem:[%s6 + $0x4] sm:$0x3]
    %v749 = vlaneseq
    %v750 = vshrl.u32 %v749, 7
    %v751 = vsub.s32 0, %v750
    %v752 = vrot.slane %v747, %v751
    %v753 = vlaneseq
    %v754 = vshrl.u32 %v753, 7
    %v755 = vsub.s32 1, %v754
    %v756 = vrot.slane %v747, %v755
    %v775 = vunpack.c.l.b16 %v731
    %v776 = vunpack.c.h.b16 %v731
    %v777 = vunpack.c.l.b16 %v732
    %v778 = vunpack.c.h.b16 %v732
    %v779 = vunpack.c.l.b16 %v733
    %v780 = vunpack.c.h.b16 %v733
    %v781 = vunpack.c.l.b16 %v734
    %v782 = vunpack.c.h.b16 %v734
    %v783 = vunpack.c.l.b16 %v735
    %v784 = vunpack.c.h.b16 %v735
    %v785 = vunpack.c.l.b16 %v736
    %v786 = vunpack.c.h.b16 %v736
    %v787 = vunpack.c.l.b16 %v737
    %v788 = vunpack.c.h.b16 %v737
    %v789 = vunpack.c.l.b16 %v738
    %v790 = vunpack.c.h.b16 %v738
    %v791 = vunpack.c.l.b16 %v739
    %v792 = vunpack.c.h.b16 %v739
    %v793 = vunpack.c.l.b16 %v740
    %v794 = vunpack.c.h.b16 %v740
    %v795 = vunpack.c.l.b16 %v741
    %v796 = vunpack.c.h.b16 %v741
    %v797 = vunpack.c.l.b16 %v742
    %v798 = vunpack.c.h.b16 %v742
    %v799 = vunpack.c.l.b16 %v743
    %v800 = vunpack.c.h.b16 %v743
    %v801 = vunpack.c.l.b16 %v744
    %v802 = vunpack.c.h.b16 %v744
    %v803 = vunpack.c.l.b16 %v745
    %v804 = vunpack.c.h.b16 %v745
    %v805 = vunpack.c.l.b16 %v746
    %v806 = vunpack.c.h.b16 %v746
    %v807 = vpack.c.b16 %v777, %v775
    %v808 = vpack.c.b16 %v778, %v776
    %v809 = vpack.c.b16 %v781, %v779
    %v810 = vpack.c.b16 %v782, %v780
    %v811 = vpack.c.b16 %v785, %v783
    %v812 = vpack.c.b16 %v786, %v784
    %v813 = vpack.c.b16 %v789, %v787
    %v814 = vpack.c.b16 %v790, %v788
    %v815 = vpack.c.b16 %v793, %v791
    %v816 = vpack.c.b16 %v794, %v792
    %v817 = vpack.c.b16 %v797, %v795
    %v818 = vpack.c.b16 %v798, %v796
    %v819 = vpack.c.b16 %v801, %v799
    %v820 = vpack.c.b16 %v802, %v800
    %v821 = vpack.c.b16 %v805, %v803
    %v822 = vpack.c.b16 %v806, %v804
    %839 = vmatprep.subr.bf16.mxu0 %v808
    %840 = vmatpush1.bf16.msra.mxu0 %v807
    %841 = vmatprep.subr.bf16.mxu0 %v810
    %842 = vmatpush1.bf16.msra.mxu0 %v809
    %843 = vmatprep.subr.bf16.mxu0 %v812
    %844 = vmatpush1.bf16.msra.mxu0 %v811
    %845 = vmatprep.subr.bf16.mxu0 %v814
    %846 = vmatpush1.bf16.msra.mxu0 %v813
    %847 = vmatprep.subr.bf16.mxu0 %v816
    %848 = vmatpush1.bf16.msra.mxu0 %v815
    %849 = vmatprep.subr.bf16.mxu0 %v818
    %850 = vmatpush1.bf16.msra.mxu0 %v817
    %851 = vmatprep.subr.bf16.mxu0 %v820
    %852 = vmatpush1.bf16.msra.mxu0 %v819
    %853 = vmatprep.subr.bf16.mxu0 %v822
    %854 = vmatpush1.bf16.msra.mxu0 %v821
    %855 = vmatprep.subr.bf16.mxu0 0
    %856 = vmatpush1.bf16.msra.mxu0 0
    %857 = vmatprep.subr.bf16.mxu0 0
    %858 = vmatpush1.bf16.msra.mxu0 0
    %859 = vmatprep.subr.bf16.mxu0 0
    %860 = vmatpush1.bf16.msra.mxu0 0
    %861 = vmatprep.subr.bf16.mxu0 0
    %862 = vmatpush1.bf16.msra.mxu0 0
    %863 = vmatprep.subr.bf16.mxu0 0
    %864 = vmatpush1.bf16.msra.mxu0 0
    %865 = vmatprep.subr.bf16.mxu0 0
    %866 = vmatpush1.bf16.msra.mxu0 0
    %867 = vmatprep.subr.bf16.mxu0 0
    %868 = vmatpush1.bf16.msra.mxu0 0
    %869 = vmatprep.subr.bf16.mxu0 0
    %870 = vmatpush1.bf16.msra.mxu0 0
    %871 = vmatprep.mubr.bf16.mxu0 0
    %872 = vmatmul.mubr.bf16.gmra.mrb[0].mxu0 %v283
    %v873 = vpop.f32.mrb[0].mxu0
    %v874 = vadd.f32 %v752, %v873
    %v875 = vpop.f32.mrb[0].mxu0
    %v876 = vadd.f32 %v756, %v875
    %v877 = vpop.f32.mrb[0].mxu0
    %v878 = vadd.f32 %v752, %v877
    %v879 = vpop.f32.mrb[0].mxu0
    %v880 = vadd.f32 %v756, %v879
    %881 = vmatprep.mubr.bf16.mxu0 0
    %882 = vmatmul.mubr.bf16.gmra.mrb[0].mxu0 %v284
    %v883 = vpop.f32.mrb[0].mxu0
    %v884 = vadd.f32 %v752, %v883
    %v885 = vpop.f32.mrb[0].mxu0
    %v886 = vadd.f32 %v756, %v885
    %v887 = vpop.f32.mrb[0].mxu0
    %v888 = vadd.f32 %v752, %v887
    %v889 = vpop.f32.mrb[0].mxu0
    %v890 = vadd.f32 %v756, %v889
    %891 = vdwg.mxu0
    %v892 = vmax.f32 %v874, %v878
    %v893 = vrot.slane %v892, 4
    %v894 = vmax.f32 %v892, %v893
    %v895 = vrot.slane %v894, 2
    %v896 = vmax.f32 %v894, %v895
    %v897 = vrot.slane %v896, 1
    %v898 = vmax.f32 %v896, %v897
    %v899 = vmax.f32 %v876, %v880
    %v900 = vrot.slane %v899, 4
    %v901 = vmax.f32 %v899, %v900
    %v902 = vrot.slane %v901, 2
    %v903 = vmax.f32 %v901, %v902
    %v904 = vrot.slane %v903, 1
    %v905 = vmax.f32 %v903, %v904
    %v906 = vmax.f32 %v884, %v888
    %v907 = vrot.slane %v906, 4
    %v908 = vmax.f32 %v906, %v907
    %v909 = vrot.slane %v908, 2
    %v910 = vmax.f32 %v908, %v909
    %v911 = vrot.slane %v910, 1
    %v912 = vmax.f32 %v910, %v911
    %v913 = vmax.f32 %v886, %v890
    %v914 = vrot.slane %v913, 4
    %v915 = vmax.f32 %v913, %v914
    %v916 = vrot.slane %v915, 2
    %v917 = vmax.f32 %v915, %v916
    %v918 = vrot.slane %v917, 1
    %v919 = vmax.f32 %v917, %v918
    %v920 = vld [vmem:[#allocation2 + $0x8] sm:$0xf]
    %v925 = vcombine.low %v898, %v905
    %v927 = vunpack.c.l.s4 1983009808
    %v928 = vunpack.c.0.s8 %v927
    %v929 = vlaneseq
    %v930 = vshrl.u32 %v929, 7
    %v931 = vsub.s32 %v928, %v930
    %v932 = vrot.slane %v925, %v931
    %v933 = vcombine.low %v912, %v919
    %v935 = vunpack.c.l.s4 1983009808
    %v936 = vunpack.c.0.s8 %v935
    %v937 = vlaneseq
    %v938 = vshrl.u32 %v937, 7
    %v939 = vsub.s32 %v936, %v938
    %v940 = vrot.slane %v933, %v939
    %v941 = vsel %vm495, %v932, %v932
    %v942 = vsel %vm497, %v932, %v941
    %v943 = vrot.slane %v940, 7
    %v944 = vsel %vm500, %v943, %v942
    %v945 = vsel %vm502, %v943, %v944
    %v946 = vsel %vm504, %v943, %v945
    %v947 = vsel %vm506, %v943, %v946
    %v949 = vmax.f32 %v920, %v947
    %950 = vst [vmem:[#allocation2 + $0x8] sm:$0xf] %v949
    %v951 = vld [vmem:[#allocation3 + $0x18] sm:$0xff]
    %v952 = vld [vmem:[#allocation3 + $0x38] sm:$0xff]
    %v953 = vld [vmem:[#allocation3 + $0x58] sm:$0xff]
    %v954 = vld [vmem:[#allocation3 + $0x78] sm:$0xff]
    %v955 = vld [vmem:[#allocation3 + $0x98] sm:$0xff]
    %v956 = vld [vmem:[#allocation3 + $0xb8] sm:$0xff]
    %v957 = vld [vmem:[#allocation3 + $0xd8] sm:$0xff]
    %v958 = vld [vmem:[#allocation3 + $0xf8] sm:$0xff]
    %v959 = vld [vmem:[#allocation3 + $0x118] sm:$0xff]
    %v960 = vld [vmem:[#allocation3 + $0x138] sm:$0xff]
    %v961 = vld [vmem:[#allocation3 + $0x158] sm:$0xff]
    %v962 = vld [vmem:[#allocation3 + $0x178] sm:$0xff]
    %v963 = vld [vmem:[#allocation3 + $0x198] sm:$0xff]
    %v964 = vld [vmem:[#allocation3 + $0x1b8] sm:$0xff]
    %v965 = vld [vmem:[#allocation3 + $0x1d8] sm:$0xff]
    %v966 = vld [vmem:[#allocation3 + $0x1f8] sm:$0xff]
    %v967 = vld [vmem:[%s6 + $0x6] sm:$0x3]
    %v969 = vlaneseq
    %v970 = vshrl.u32 %v969, 7
    %v971 = vsub.s32 0, %v970
    %v972 = vrot.slane %v967, %v971
    %v973 = vlaneseq
    %v974 = vshrl.u32 %v973, 7
    %v975 = vsub.s32 1, %v974
    %v976 = vrot.slane %v967, %v975
    %v995 = vunpack.c.l.b16 %v951
    %v996 = vunpack.c.h.b16 %v951
    %v997 = vunpack.c.l.b16 %v952
    %v998 = vunpack.c.h.b16 %v952
    %v999 = vunpack.c.l.b16 %v953
    %v1000 = vunpack.c.h.b16 %v953
    %v1001 = vunpack.c.l.b16 %v954
    %v1002 = vunpack.c.h.b16 %v954
    %v1003 = vunpack.c.l.b16 %v955
    %v1004 = vunpack.c.h.b16 %v955
    %v1005 = vunpack.c.l.b16 %v956
    %v1006 = vunpack.c.h.b16 %v956
    %v1007 = vunpack.c.l.b16 %v957
    %v1008 = vunpack.c.h.b16 %v957
    %v1009 = vunpack.c.l.b16 %v958
    %v1010 = vunpack.c.h.b16 %v958
    %v1011 = vunpack.c.l.b16 %v959
    %v1012 = vunpack.c.h.b16 %v959
    %v1013 = vunpack.c.l.b16 %v960
    %v1014 = vunpack.c.h.b16 %v960
    %v1015 = vunpack.c.l.b16 %v961
    %v1016 = vunpack.c.h.b16 %v961
    %v1017 = vunpack.c.l.b16 %v962
    %v1018 = vunpack.c.h.b16 %v962
    %v1019 = vunpack.c.l.b16 %v963
    %v1020 = vunpack.c.h.b16 %v963
    %v1021 = vunpack.c.l.b16 %v964
    %v1022 = vunpack.c.h.b16 %v964
    %v1023 = vunpack.c.l.b16 %v965
    %v1024 = vunpack.c.h.b16 %v965
    %v1025 = vunpack.c.l.b16 %v966
    %v1026 = vunpack.c.h.b16 %v966
    %v1027 = vpack.c.b16 %v997, %v995
    %v1028 = vpack.c.b16 %v998, %v996
    %v1029 = vpack.c.b16 %v1001, %v999
    %v1030 = vpack.c.b16 %v1002, %v1000
    %v1031 = vpack.c.b16 %v1005, %v1003
    %v1032 = vpack.c.b16 %v1006, %v1004
    %v1033 = vpack.c.b16 %v1009, %v1007
    %v1034 = vpack.c.b16 %v1010, %v1008
    %v1035 = vpack.c.b16 %v1013, %v1011
    %v1036 = vpack.c.b16 %v1014, %v1012
    %v1037 = vpack.c.b16 %v1017, %v1015
    %v1038 = vpack.c.b16 %v1018, %v1016
    %v1039 = vpack.c.b16 %v1021, %v1019
    %v1040 = vpack.c.b16 %v1022, %v1020
    %v1041 = vpack.c.b16 %v1025, %v1023
    %v1042 = vpack.c.b16 %v1026, %v1024
    %1059 = vmatprep.subr.bf16.mxu0 %v1028
    %1060 = vmatpush1.bf16.msra.mxu0 %v1027
    %1061 = vmatprep.subr.bf16.mxu0 %v1030
    %1062 = vmatpush1.bf16.msra.mxu0 %v1029
    %1063 = vmatprep.subr.bf16.mxu0 %v1032
    %1064 = vmatpush1.bf16.msra.mxu0 %v1031
    %1065 = vmatprep.subr.bf16.mxu0 %v1034
    %1066 = vmatpush1.bf16.msra.mxu0 %v1033
    %1067 = vmatprep.subr.bf16.mxu0 %v1036
    %1068 = vmatpush1.bf16.msra.mxu0 %v1035
    %1069 = vmatprep.subr.bf16.mxu0 %v1038
    %1070 = vmatpush1.bf16.msra.mxu0 %v1037
    %1071 = vmatprep.subr.bf16.mxu0 %v1040
    %1072 = vmatpush1.bf16.msra.mxu0 %v1039
    %1073 = vmatprep.subr.bf16.mxu0 %v1042
    %1074 = vmatpush1.bf16.msra.mxu0 %v1041
    %1075 = vmatprep.subr.bf16.mxu0 0
    %1076 = vmatpush1.bf16.msra.mxu0 0
    %1077 = vmatprep.subr.bf16.mxu0 0
    %1078 = vmatpush1.bf16.msra.mxu0 0
    %1079 = vmatprep.subr.bf16.mxu0 0
    %1080 = vmatpush1.bf16.msra.mxu0 0
    %1081 = vmatprep.subr.bf16.mxu0 0
    %1082 = vmatpush1.bf16.msra.mxu0 0
    %1083 = vmatprep.subr.bf16.mxu0 0
    %1084 = vmatpush1.bf16.msra.mxu0 0
    %1085 = vmatprep.subr.bf16.mxu0 0
    %1086 = vmatpush1.bf16.msra.mxu0 0
    %1087 = vmatprep.subr.bf16.mxu0 0
    %1088 = vmatpush1.bf16.msra.mxu0 0
    %1089 = vmatprep.subr.bf16.mxu0 0
    %1090 = vmatpush1.bf16.msra.mxu0 0
    %1091 = vmatprep.mubr.bf16.mxu0 0
    %1092 = vmatmul.mubr.bf16.gmra.mrb[0].mxu0 %v283
    %v1093 = vpop.f32.mrb[0].mxu0
    %v1094 = vadd.f32 %v972, %v1093
    %v1095 = vpop.f32.mrb[0].mxu0
    %v1096 = vadd.f32 %v976, %v1095
    %v1097 = vpop.f32.mrb[0].mxu0
    %v1098 = vadd.f32 %v972, %v1097
    %v1099 = vpop.f32.mrb[0].mxu0
    %v1100 = vadd.f32 %v976, %v1099
    %1101 = vmatprep.mubr.bf16.mxu0 0
    %1102 = vmatmul.mubr.bf16.gmra.mrb[0].mxu0 %v284
    %v1103 = vpop.f32.mrb[0].mxu0
    %v1104 = vadd.f32 %v972, %v1103
    %v1105 = vpop.f32.mrb[0].mxu0
    %v1106 = vadd.f32 %v976, %v1105
    %v1107 = vpop.f32.mrb[0].mxu0
    %v1108 = vadd.f32 %v972, %v1107
    %v1109 = vpop.f32.mrb[0].mxu0
    %v1110 = vadd.f32 %v976, %v1109
    %1111 = vdwg.mxu0
    %v1112 = vmax.f32 %v1094, %v1098
    %v1113 = vrot.slane %v1112, 4
    %v1114 = vmax.f32 %v1112, %v1113
    %v1115 = vrot.slane %v1114, 2
    %v1116 = vmax.f32 %v1114, %v1115
    %v1117 = vrot.slane %v1116, 1
    %v1118 = vmax.f32 %v1116, %v1117
    %v1119 = vmax.f32 %v1096, %v1100
    %v1120 = vrot.slane %v1119, 4
    %v1121 = vmax.f32 %v1119, %v1120
    %v1122 = vrot.slane %v1121, 2
    %v1123 = vmax.f32 %v1121, %v1122
    %v1124 = vrot.slane %v1123, 1
    %v1125 = vmax.f32 %v1123, %v1124
    %v1126 = vmax.f32 %v1104, %v1108
    %v1127 = vrot.slane %v1126, 4
    %v1128 = vmax.f32 %v1126, %v1127
    %v1129 = vrot.slane %v1128, 2
    %v1130 = vmax.f32 %v1128, %v1129
    %v1131 = vrot.slane %v1130, 1
    %v1132 = vmax.f32 %v1130, %v1131
    %v1133 = vmax.f32 %v1106, %v1110
    %v1134 = vrot.slane %v1133, 4
    %v1135 = vmax.f32 %v1133, %v1134
    %v1136 = vrot.slane %v1135, 2
    %v1137 = vmax.f32 %v1135, %v1136
    %v1138 = vrot.slane %v1137, 1
    %v1139 = vmax.f32 %v1137, %v1138
    %v1140 = vld [vmem:[#allocation2 + $0xc] sm:$0xf]
    %v1145 = vcombine.low %v1118, %v1125
    %v1147 = vunpack.c.l.s4 1983009808
    %v1148 = vunpack.c.0.s8 %v1147
    %v1149 = vlaneseq
    %v1150 = vshrl.u32 %v1149, 7
    %v1151 = vsub.s32 %v1148, %v1150
    %v1152 = vrot.slane %v1145, %v1151
    %v1153 = vcombine.low %v1132, %v1139
    %v1155 = vunpack.c.l.s4 1983009808
    %v1156 = vunpack.c.0.s8 %v1155
    %v1157 = vlaneseq
    %v1158 = vshrl.u32 %v1157, 7
    %v1159 = vsub.s32 %v1156, %v1158
    %v1160 = vrot.slane %v1153, %v1159
    %v1161 = vsel %vm495, %v1152, %v1152
    %v1162 = vsel %vm497, %v1152, %v1161
    %v1163 = vrot.slane %v1160, 7
    %v1164 = vsel %vm500, %v1163, %v1162
    %v1165 = vsel %vm502, %v1163, %v1164
    %v1166 = vsel %vm504, %v1163, %v1165
    %v1167 = vsel %vm506, %v1163, %v1166
    %v1169 = vmax.f32 %v1140, %v1167
    %1170 = vst [vmem:[#allocation2 + $0xc] sm:$0xf] %v1169
    // Predicated region
    $region70: #{tpu_custom_call.1} parent=1 // pred_check
      %p1171 = pneg %p87
    $region71: #{tpu_custom_call.1} parent=1 // pred_check_branch
      %1173 = sbr.rel (%p1171) target = $region73
    $region72: #{tpu_custom_call.1} parent=1 // pred_region
      %v1174 = vld [vmem:[#allocation2] sm:$0xff]
      %v1175 = vld [vmem:[#allocation2 + $0x8] sm:$0xff]
      %v1178 = vcombine.high %v1174, %v1174
      %v1180 = vunpack.c.l.s4 1983009808
      %v1181 = vunpack.c.0.s8 %v1180
      %v1182 = vlaneseq
      %v1183 = vshrl.u32 %v1182, 7
      %v1184 = vsub.s32 %v1181, %v1183
      %v1185 = vrot.slane %v1174, %v1184
      %v1187 = vunpack.c.l.s4 1983009808
      %v1188 = vunpack.c.0.s8 %v1187
      %v1189 = vlaneseq
      %v1190 = vshrl.u32 %v1189, 7
      %v1191 = vsub.s32 %v1188, %v1190
      %v1192 = vrot.slane %v1178, %v1191
      %v1193 = vcombine.high %v1185, %v1185
      %v1194 = vcombine.high %v1192, %v1192
      %v1195 = vcombine.high %v1175, %v1175
      %v1197 = vunpack.c.l.s4 1983009808
      %v1198 = vunpack.c.0.s8 %v1197
      %v1199 = vlaneseq
      %v1200 = vshrl.u32 %v1199, 7
      %v1201 = vsub.s32 %v1198, %v1200
      %v1202 = vrot.slane %v1175, %v1201
      %v1204 = vunpack.c.l.s4 1983009808
      %v1205 = vunpack.c.0.s8 %v1204
      %v1206 = vlaneseq
      %v1207 = vshrl.u32 %v1206, 7
      %v1208 = vsub.s32 %v1205, %v1207
      %v1209 = vrot.slane %v1195, %v1208
      %v1210 = vcombine.high %v1202, %v1202
      %v1211 = vcombine.high %v1209, %v1209
      %v1220 = vpack.c.bf16 %v1185, %v1185
      %v1221 = vpack.c.bf16 %v1193, %v1193
      %v1222 = vpack.c.bf16 %v1192, %v1192
      %v1223 = vpack.c.bf16 %v1194, %v1194
      %v1224 = vpack.c.bf16 %v1202, %v1202
      %v1225 = vpack.c.bf16 %v1210, %v1210
      %v1226 = vpack.c.bf16 %v1209, %v1209
      %v1227 = vpack.c.bf16 %v1211, %v1211
      %v1228 = vld [vmem:[#allocation6] sm:$0xff]
      %v1229 = vld [vmem:[#allocation6 + $0x8] sm:$0xff]
      %v1230 = vld [vmem:[#allocation6 + $0x10] sm:$0xff]
      %v1231 = vld [vmem:[#allocation6 + $0x18] sm:$0xff]
      %v1232 = vld [vmem:[#allocation6 + $0x20] sm:$0xff]
      %v1233 = vld [vmem:[#allocation6 + $0x28] sm:$0xff]
      %v1234 = vld [vmem:[#allocation6 + $0x30] sm:$0xff]
      %v1235 = vld [vmem:[#allocation6 + $0x38] sm:$0xff]
      %v1236 = vld [vmem:[#allocation6 + $0x40] sm:$0xff]
      %v1237 = vld [vmem:[#allocation6 + $0x48] sm:$0xff]
      %v1238 = vld [vmem:[#allocation6 + $0x50] sm:$0xff]
      %v1239 = vld [vmem:[#allocation6 + $0x58] sm:$0xff]
      %v1240 = vld [vmem:[#allocation6 + $0x60] sm:$0xff]
      %v1241 = vld [vmem:[#allocation6 + $0x68] sm:$0xff]
      %v1242 = vld [vmem:[#allocation6 + $0x70] sm:$0xff]
      %v1243 = vld [vmem:[#allocation6 + $0x78] sm:$0xff]
      %v1244 = vld [vmem:[#allocation6 + $0x80] sm:$0xff]
      %v1245 = vld [vmem:[#allocation6 + $0x88] sm:$0xff]
      %v1246 = vld [vmem:[#allocation6 + $0x90] sm:$0xff]
      %v1247 = vld [vmem:[#allocation6 + $0x98] sm:$0xff]
      %v1248 = vld [vmem:[#allocation6 + $0xa0] sm:$0xff]
      %v1249 = vld [vmem:[#allocation6 + $0xa8] sm:$0xff]
      %v1250 = vld [vmem:[#allocation6 + $0xb0] sm:$0xff]
      %v1251 = vld [vmem:[#allocation6 + $0xb8] sm:$0xff]
      %v1252 = vld [vmem:[#allocation6 + $0xc0] sm:$0xff]
      %v1253 = vld [vmem:[#allocation6 + $0xc8] sm:$0xff]
      %v1254 = vld [vmem:[#allocation6 + $0xd0] sm:$0xff]
      %v1255 = vld [vmem:[#allocation6 + $0xd8] sm:$0xff]
      %v1256 = vld [vmem:[#allocation6 + $0xe0] sm:$0xff]
      %v1257 = vld [vmem:[#allocation6 + $0xe8] sm:$0xff]
      %v1258 = vld [vmem:[#allocation6 + $0xf0] sm:$0xff]
      %v1259 = vld [vmem:[#allocation6 + $0xf8] sm:$0xff]
      %v1260 = vld [vmem:[#allocation6 + $0x100] sm:$0xff]
      %v1261 = vld [vmem:[#allocation6 + $0x108] sm:$0xff]
      %v1262 = vld [vmem:[#allocation6 + $0x110] sm:$0xff]
      %v1263 = vld [vmem:[#allocation6 + $0x118] sm:$0xff]
      %v1264 = vld [vmem:[#allocation6 + $0x120] sm:$0xff]
      %v1265 = vld [vmem:[#allocation6 + $0x128] sm:$0xff]
      %v1266 = vld [vmem:[#allocation6 + $0x130] sm:$0xff]
      %v1267 = vld [vmem:[#allocation6 + $0x138] sm:$0xff]
      %v1268 = vld [vmem:[#allocation6 + $0x140] sm:$0xff]
      %v1269 = vld [vmem:[#allocation6 + $0x148] sm:$0xff]
      %v1270 = vld [vmem:[#allocation6 + $0x150] sm:$0xff]
      %v1271 = vld [vmem:[#allocation6 + $0x158] sm:$0xff]
      %v1272 = vld [vmem:[#allocation6 + $0x160] sm:$0xff]
      %v1273 = vld [vmem:[#allocation6 + $0x168] sm:$0xff]
      %v1274 = vld [vmem:[#allocation6 + $0x170] sm:$0xff]
      %v1275 = vld [vmem:[#allocation6 + $0x178] sm:$0xff]
      %v1276 = vld [vmem:[#allocation6 + $0x180] sm:$0xff]
      %v1277 = vld [vmem:[#allocation6 + $0x188] sm:$0xff]
      %v1278 = vld [vmem:[#allocation6 + $0x190] sm:$0xff]
      %v1279 = vld [vmem:[#allocation6 + $0x198] sm:$0xff]
      %v1280 = vld [vmem:[#allocation6 + $0x1a0] sm:$0xff]
      %v1281 = vld [vmem:[#allocation6 + $0x1a8] sm:$0xff]
      %v1282 = vld [vmem:[#allocation6 + $0x1b0] sm:$0xff]
      %v1283 = vld [vmem:[#allocation6 + $0x1b8] sm:$0xff]
      %v1284 = vld [vmem:[#allocation6 + $0x1c0] sm:$0xff]
      %v1285 = vld [vmem:[#allocation6 + $0x1c8] sm:$0xff]
      %v1286 = vld [vmem:[#allocation6 + $0x1d0] sm:$0xff]
      %v1287 = vld [vmem:[#allocation6 + $0x1d8] sm:$0xff]
      %v1288 = vld [vmem:[#allocation6 + $0x1e0] sm:$0xff]
      %v1289 = vld [vmem:[#allocation6 + $0x1e8] sm:$0xff]
      %v1290 = vld [vmem:[#allocation6 + $0x1f0] sm:$0xff]
      %v1291 = vld [vmem:[#allocation6 + $0x1f8] sm:$0xff]
      %v1292 = vld [vmem:[#allocation6 + $0x200] sm:$0xff]
      %v1293 = vld [vmem:[#allocation6 + $0x208] sm:$0xff]
      %v1294 = vld [vmem:[#allocation6 + $0x210] sm:$0xff]
      %v1295 = vld [vmem:[#allocation6 + $0x218] sm:$0xff]
      %v1296 = vld [vmem:[#allocation6 + $0x220] sm:$0xff]
      %v1297 = vld [vmem:[#allocation6 + $0x228] sm:$0xff]
      %v1298 = vld [vmem:[#allocation6 + $0x230] sm:$0xff]
      %v1299 = vld [vmem:[#allocation6 + $0x238] sm:$0xff]
      %v1300 = vld [vmem:[#allocation6 + $0x240] sm:$0xff]
      %v1301 = vld [vmem:[#allocation6 + $0x248] sm:$0xff]
      %v1302 = vld [vmem:[#allocation6 + $0x250] sm:$0xff]
      %v1303 = vld [vmem:[#allocation6 + $0x258] sm:$0xff]
      %v1304 = vld [vmem:[#allocation6 + $0x260] sm:$0xff]
      %v1305 = vld [vmem:[#allocation6 + $0x268] sm:$0xff]
      %v1306 = vld [vmem:[#allocation6 + $0x270] sm:$0xff]
      %v1307 = vld [vmem:[#allocation6 + $0x278] sm:$0xff]
      %v1308 = vld [vmem:[#allocation6 + $0x280] sm:$0xff]
      %v1309 = vld [vmem:[#allocation6 + $0x288] sm:$0xff]
      %v1310 = vld [vmem:[#allocation6 + $0x290] sm:$0xff]
      %v1311 = vld [vmem:[#allocation6 + $0x298] sm:$0xff]
      %v1312 = vld [vmem:[#allocation6 + $0x2a0] sm:$0xff]
      %v1313 = vld [vmem:[#allocation6 + $0x2a8] sm:$0xff]
      %v1314 = vld [vmem:[#allocation6 + $0x2b0] sm:$0xff]
      %v1315 = vld [vmem:[#allocation6 + $0x2b8] sm:$0xff]
      %v1316 = vld [vmem:[#allocation6 + $0x2c0] sm:$0xff]
      %v1317 = vld [vmem:[#allocation6 + $0x2c8] sm:$0xff]
      %v1318 = vld [vmem:[#allocation6 + $0x2d0] sm:$0xff]
      %v1319 = vld [vmem:[#allocation6 + $0x2d8] sm:$0xff]
      %v1320 = vld [vmem:[#allocation6 + $0x2e0] sm:$0xff]
      %v1321 = vld [vmem:[#allocation6 + $0x2e8] sm:$0xff]
      %v1322 = vld [vmem:[#allocation6 + $0x2f0] sm:$0xff]
      %v1323 = vld [vmem:[#allocation6 + $0x2f8] sm:$0xff]
      %v1324 = vld [vmem:[#allocation6 + $0x300] sm:$0xff]
      %v1325 = vld [vmem:[#allocation6 + $0x308] sm:$0xff]
      %v1326 = vld [vmem:[#allocation6 + $0x310] sm:$0xff]
      %v1327 = vld [vmem:[#allocation6 + $0x318] sm:$0xff]
      %v1328 = vld [vmem:[#allocation6 + $0x320] sm:$0xff]
      %v1329 = vld [vmem:[#allocation6 + $0x328] sm:$0xff]
      %v1330 = vld [vmem:[#allocation6 + $0x330] sm:$0xff]
      %v1331 = vld [vmem:[#allocation6 + $0x338] sm:$0xff]
      %v1332 = vld [vmem:[#allocation6 + $0x340] sm:$0xff]
      %v1333 = vld [vmem:[#allocation6 + $0x348] sm:$0xff]
      %v1334 = vld [vmem:[#allocation6 + $0x350] sm:$0xff]
      %v1335 = vld [vmem:[#allocation6 + $0x358] sm:$0xff]
      %v1336 = vld [vmem:[#allocation6 + $0x360] sm:$0xff]
      %v1337 = vld [vmem:[#allocation6 + $0x368] sm:$0xff]
      %v1338 = vld [vmem:[#allocation6 + $0x370] sm:$0xff]
      %v1339 = vld [vmem:[#allocation6 + $0x378] sm:$0xff]
      %v1340 = vld [vmem:[#allocation6 + $0x380] sm:$0xff]
      %v1341 = vld [vmem:[#allocation6 + $0x388] sm:$0xff]
      %v1342 = vld [vmem:[#allocation6 + $0x390] sm:$0xff]
      %v1343 = vld [vmem:[#allocation6 + $0x398] sm:$0xff]
      %v1344 = vld [vmem:[#allocation6 + $0x3a0] sm:$0xff]
      %v1345 = vld [vmem:[#allocation6 + $0x3a8] sm:$0xff]
      %v1346 = vld [vmem:[#allocation6 + $0x3b0] sm:$0xff]
      %v1347 = vld [vmem:[#allocation6 + $0x3b8] sm:$0xff]
      %v1348 = vld [vmem:[#allocation6 + $0x3c0] sm:$0xff]
      %v1349 = vld [vmem:[#allocation6 + $0x3c8] sm:$0xff]
      %v1350 = vld [vmem:[#allocation6 + $0x3d0] sm:$0xff]
      %v1351 = vld [vmem:[#allocation6 + $0x3d8] sm:$0xff]
      %v1352 = vld [vmem:[#allocation6 + $0x3e0] sm:$0xff]
      %v1353 = vld [vmem:[#allocation6 + $0x3e8] sm:$0xff]
      %v1354 = vld [vmem:[#allocation6 + $0x3f0] sm:$0xff]
      %v1355 = vld [vmem:[#allocation6 + $0x3f8] sm:$0xff]
      %v1356 = vld [vmem:[#allocation6 + $0x400] sm:$0xff]
      %v1357 = vld [vmem:[#allocation6 + $0x408] sm:$0xff]
      %v1358 = vld [vmem:[#allocation6 + $0x410] sm:$0xff]
      %v1359 = vld [vmem:[#allocation6 + $0x418] sm:$0xff]
      %v1360 = vld [vmem:[#allocation6 + $0x420] sm:$0xff]
      %v1361 = vld [vmem:[#allocation6 + $0x428] sm:$0xff]
      %v1362 = vld [vmem:[#allocation6 + $0x430] sm:$0xff]
      %v1363 = vld [vmem:[#allocation6 + $0x438] sm:$0xff]
      %v1364 = vld [vmem:[#allocation6 + $0x440] sm:$0xff]
      %v1365 = vld [vmem:[#allocation6 + $0x448] sm:$0xff]
      %v1366 = vld [vmem:[#allocation6 + $0x450] sm:$0xff]
      %v1367 = vld [vmem:[#allocation6 + $0x458] sm:$0xff]
      %v1368 = vld [vmem:[#allocation6 + $0x460] sm:$0xff]
      %v1369 = vld [vmem:[#allocation6 + $0x468] sm:$0xff]
      %v1370 = vld [vmem:[#allocation6 + $0x470] sm:$0xff]
      %v1371 = vld [vmem:[#allocation6 + $0x478] sm:$0xff]
      %v1372 = vld [vmem:[#allocation6 + $0x480] sm:$0xff]
      %v1373 = vld [vmem:[#allocation6 + $0x488] sm:$0xff]
      %v1374 = vld [vmem:[#allocation6 + $0x490] sm:$0xff]
      %v1375 = vld [vmem:[#allocation6 + $0x498] sm:$0xff]
      %v1376 = vld [vmem:[#allocation6 + $0x4a0] sm:$0xff]
      %v1377 = vld [vmem:[#allocation6 + $0x4a8] sm:$0xff]
      %v1378 = vld [vmem:[#allocation6 + $0x4b0] sm:$0xff]
      %v1379 = vld [vmem:[#allocation6 + $0x4b8] sm:$0xff]
      %v1380 = vld [vmem:[#allocation6 + $0x4c0] sm:$0xff]
      %v1381 = vld [vmem:[#allocation6 + $0x4c8] sm:$0xff]
      %v1382 = vld [vmem:[#allocation6 + $0x4d0] sm:$0xff]
      %v1383 = vld [vmem:[#allocation6 + $0x4d8] sm:$0xff]
      %v1384 = vld [vmem:[#allocation6 + $0x4e0] sm:$0xff]
      %v1385 = vld [vmem:[#allocation6 + $0x4e8] sm:$0xff]
      %v1386 = vld [vmem:[#allocation6 + $0x4f0] sm:$0xff]
      %v1387 = vld [vmem:[#allocation6 + $0x4f8] sm:$0xff]
      %v1388 = vld [vmem:[#allocation6 + $0x500] sm:$0xff]
      %v1389 = vld [vmem:[#allocation6 + $0x508] sm:$0xff]
      %v1390 = vld [vmem:[#allocation6 + $0x510] sm:$0xff]
      %v1391 = vld [vmem:[#allocation6 + $0x518] sm:$0xff]
      %v1392 = vld [vmem:[#allocation6 + $0x520] sm:$0xff]
      %v1393 = vld [vmem:[#allocation6 + $0x528] sm:$0xff]
      %v1394 = vld [vmem:[#allocation6 + $0x530] sm:$0xff]
      %v1395 = vld [vmem:[#allocation6 + $0x538] sm:$0xff]
      %v1396 = vld [vmem:[#allocation6 + $0x540] sm:$0xff]
      %v1397 = vld [vmem:[#allocation6 + $0x548] sm:$0xff]
      %v1398 = vld [vmem:[#allocation6 + $0x550] sm:$0xff]
      %v1399 = vld [vmem:[#allocation6 + $0x558] sm:$0xff]
      %v1400 = vld [vmem:[#allocation6 + $0x560] sm:$0xff]
      %v1401 = vld [vmem:[#allocation6 + $0x568] sm:$0xff]
      %v1402 = vld [vmem:[#allocation6 + $0x570] sm:$0xff]
      %v1403 = vld [vmem:[#allocation6 + $0x578] sm:$0xff]
      %v1404 = vld [vmem:[#allocation6 + $0x580] sm:$0xff]
      %v1405 = vld [vmem:[#allocation6 + $0x588] sm:$0xff]
      %v1406 = vld [vmem:[#allocation6 + $0x590] sm:$0xff]
      %v1407 = vld [vmem:[#allocation6 + $0x598] sm:$0xff]
      %v1408 = vld [vmem:[#allocation6 + $0x5a0] sm:$0xff]
      %v1409 = vld [vmem:[#allocation6 + $0x5a8] sm:$0xff]
      %v1410 = vld [vmem:[#allocation6 + $0x5b0] sm:$0xff]
      %v1411 = vld [vmem:[#allocation6 + $0x5b8] sm:$0xff]
      %v1412 = vld [vmem:[#allocation6 + $0x5c0] sm:$0xff]
      %v1413 = vld [vmem:[#allocation6 + $0x5c8] sm:$0xff]
      %v1414 = vld [vmem:[#allocation6 + $0x5d0] sm:$0xff]
      %v1415 = vld [vmem:[#allocation6 + $0x5d8] sm:$0xff]
      %v1416 = vld [vmem:[#allocation6 + $0x5e0] sm:$0xff]
      %v1417 = vld [vmem:[#allocation6 + $0x5e8] sm:$0xff]
      %v1418 = vld [vmem:[#allocation6 + $0x5f0] sm:$0xff]
      %v1419 = vld [vmem:[#allocation6 + $0x5f8] sm:$0xff]
      %v1420 = vld [vmem:[#allocation6 + $0x600] sm:$0xff]
      %v1421 = vld [vmem:[#allocation6 + $0x608] sm:$0xff]
      %v1422 = vld [vmem:[#allocation6 + $0x610] sm:$0xff]
      %v1423 = vld [vmem:[#allocation6 + $0x618] sm:$0xff]
      %v1424 = vld [vmem:[#allocation6 + $0x620] sm:$0xff]
      %v1425 = vld [vmem:[#allocation6 + $0x628] sm:$0xff]
      %v1426 = vld [vmem:[#allocation6 + $0x630] sm:$0xff]
      %v1427 = vld [vmem:[#allocation6 + $0x638] sm:$0xff]
      %v1428 = vld [vmem:[#allocation6 + $0x640] sm:$0xff]
      %v1429 = vld [vmem:[#allocation6 + $0x648] sm:$0xff]
      %v1430 = vld [vmem:[#allocation6 + $0x650] sm:$0xff]
      %v1431 = vld [vmem:[#allocation6 + $0x658] sm:$0xff]
      %v1432 = vld [vmem:[#allocation6 + $0x660] sm:$0xff]
      %v1433 = vld [vmem:[#allocation6 + $0x668] sm:$0xff]
      %v1434 = vld [vmem:[#allocation6 + $0x670] sm:$0xff]
      %v1435 = vld [vmem:[#allocation6 + $0x678] sm:$0xff]
      %v1436 = vld [vmem:[#allocation6 + $0x680] sm:$0xff]
      %v1437 = vld [vmem:[#allocation6 + $0x688] sm:$0xff]
      %v1438 = vld [vmem:[#allocation6 + $0x690] sm:$0xff]
      %v1439 = vld [vmem:[#allocation6 + $0x698] sm:$0xff]
      %v1440 = vld [vmem:[#allocation6 + $0x6a0] sm:$0xff]
      %v1441 = vld [vmem:[#allocation6 + $0x6a8] sm:$0xff]
      %v1442 = vld [vmem:[#allocation6 + $0x6b0] sm:$0xff]
      %v1443 = vld [vmem:[#allocation6 + $0x6b8] sm:$0xff]
      %v1444 = vld [vmem:[#allocation6 + $0x6c0] sm:$0xff]
      %v1445 = vld [vmem:[#allocation6 + $0x6c8] sm:$0xff]
      %v1446 = vld [vmem:[#allocation6 + $0x6d0] sm:$0xff]
      %v1447 = vld [vmem:[#allocation6 + $0x6d8] sm:$0xff]
      %v1448 = vld [vmem:[#allocation6 + $0x6e0] sm:$0xff]
      %v1449 = vld [vmem:[#allocation6 + $0x6e8] sm:$0xff]
      %v1450 = vld [vmem:[#allocation6 + $0x6f0] sm:$0xff]
      %v1451 = vld [vmem:[#allocation6 + $0x6f8] sm:$0xff]
      %v1452 = vld [vmem:[#allocation6 + $0x700] sm:$0xff]
      %v1453 = vld [vmem:[#allocation6 + $0x708] sm:$0xff]
      %v1454 = vld [vmem:[#allocation6 + $0x710] sm:$0xff]
      %v1455 = vld [vmem:[#allocation6 + $0x718] sm:$0xff]
      %v1456 = vld [vmem:[#allocation6 + $0x720] sm:$0xff]
      %v1457 = vld [vmem:[#allocation6 + $0x728] sm:$0xff]
      %v1458 = vld [vmem:[#allocation6 + $0x730] sm:$0xff]
      %v1459 = vld [vmem:[#allocation6 + $0x738] sm:$0xff]
      %v1460 = vld [vmem:[#allocation6 + $0x740] sm:$0xff]
      %v1461 = vld [vmem:[#allocation6 + $0x748] sm:$0xff]
      %v1462 = vld [vmem:[#allocation6 + $0x750] sm:$0xff]
      %v1463 = vld [vmem:[#allocation6 + $0x758] sm:$0xff]
      %v1464 = vld [vmem:[#allocation6 + $0x760] sm:$0xff]
      %v1465 = vld [vmem:[#allocation6 + $0x768] sm:$0xff]
      %v1466 = vld [vmem:[#allocation6 + $0x770] sm:$0xff]
      %v1467 = vld [vmem:[#allocation6 + $0x778] sm:$0xff]
      %v1468 = vld [vmem:[#allocation6 + $0x780] sm:$0xff]
      %v1469 = vld [vmem:[#allocation6 + $0x788] sm:$0xff]
      %v1470 = vld [vmem:[#allocation6 + $0x790] sm:$0xff]
      %v1471 = vld [vmem:[#allocation6 + $0x798] sm:$0xff]
      %v1472 = vld [vmem:[#allocation6 + $0x7a0] sm:$0xff]
      %v1473 = vld [vmem:[#allocation6 + $0x7a8] sm:$0xff]
      %v1474 = vld [vmem:[#allocation6 + $0x7b0] sm:$0xff]
      %v1475 = vld [vmem:[#allocation6 + $0x7b8] sm:$0xff]
      %v1476 = vld [vmem:[#allocation6 + $0x7c0] sm:$0xff]
      %v1477 = vld [vmem:[#allocation6 + $0x7c8] sm:$0xff]
      %v1478 = vld [vmem:[#allocation6 + $0x7d0] sm:$0xff]
      %v1479 = vld [vmem:[#allocation6 + $0x7d8] sm:$0xff]
      %v1480 = vld [vmem:[#allocation6 + $0x7e0] sm:$0xff]
      %v1481 = vld [vmem:[#allocation6 + $0x7e8] sm:$0xff]
      %v1482 = vld [vmem:[#allocation6 + $0x7f0] sm:$0xff]
      %v1483 = vld [vmem:[#allocation6 + $0x7f8] sm:$0xff]
      %v1484 = vld [vmem:[%s8] sm:$0xf]
      %v1486 = vlaneseq
      %v1487 = vshrl.u32 %v1486, 7
      %v1488 = vsub.s32 0, %v1487
      %v1489 = vrot.slane %v1484, %v1488
      %v1490 = vlaneseq
      %v1491 = vshrl.u32 %v1490, 7
      %v1492 = vsub.s32 1, %v1491
      %v1493 = vrot.slane %v1484, %v1492
      %v1494 = vlaneseq
      %v1495 = vshrl.u32 %v1494, 7
      %v1496 = vsub.s32 2, %v1495
      %v1497 = vrot.slane %v1484, %v1496
      %v1498 = vlaneseq
      %v1499 = vshrl.u32 %v1498, 7
      %v1500 = vsub.s32 3, %v1499
      %v1501 = vrot.slane %v1484, %v1500
      %v1762 = vunpack.c.l.b16 %v1228
      %v1763 = vunpack.c.h.b16 %v1228
      %v1764 = vunpack.c.l.b16 %v1229
      %v1765 = vunpack.c.h.b16 %v1229
      %v1766 = vunpack.c.l.b16 %v1230
      %v1767 = vunpack.c.h.b16 %v1230
      %v1768 = vunpack.c.l.b16 %v1231
      %v1769 = vunpack.c.h.b16 %v1231
      %v1770 = vunpack.c.l.b16 %v1232
      %v1771 = vunpack.c.h.b16 %v1232
      %v1772 = vunpack.c.l.b16 %v1233
      %v1773 = vunpack.c.h.b16 %v1233
      %v1774 = vunpack.c.l.b16 %v1234
      %v1775 = vunpack.c.h.b16 %v1234
      %v1776 = vunpack.c.l.b16 %v1235
      %v1777 = vunpack.c.h.b16 %v1235
      %v1778 = vunpack.c.l.b16 %v1236
      %v1779 = vunpack.c.h.b16 %v1236
      %v1780 = vunpack.c.l.b16 %v1237
      %v1781 = vunpack.c.h.b16 %v1237
      %v1782 = vunpack.c.l.b16 %v1238
      %v1783 = vunpack.c.h.b16 %v1238
      %v1784 = vunpack.c.l.b16 %v1239
      %v1785 = vunpack.c.h.b16 %v1239
      %v1786 = vunpack.c.l.b16 %v1240
      %v1787 = vunpack.c.h.b16 %v1240
      %v1788 = vunpack.c.l.b16 %v1241
      %v1789 = vunpack.c.h.b16 %v1241
      %v1790 = vunpack.c.l.b16 %v1242
      %v1791 = vunpack.c.h.b16 %v1242
      %v1792 = vunpack.c.l.b16 %v1243
      %v1793 = vunpack.c.h.b16 %v1243
      %v1794 = vunpack.c.l.b16 %v1244
      %v1795 = vunpack.c.h.b16 %v1244
      %v1796 = vunpack.c.l.b16 %v1245
      %v1797 = vunpack.c.h.b16 %v1245
      %v1798 = vunpack.c.l.b16 %v1246
      %v1799 = vunpack.c.h.b16 %v1246
      %v1800 = vunpack.c.l.b16 %v1247
      %v1801 = vunpack.c.h.b16 %v1247
      %v1802 = vunpack.c.l.b16 %v1248
      %v1803 = vunpack.c.h.b16 %v1248
      %v1804 = vunpack.c.l.b16 %v1249
      %v1805 = vunpack.c.h.b16 %v1249
      %v1806 = vunpack.c.l.b16 %v1250
      %v1807 = vunpack.c.h.b16 %v1250
      %v1808 = vunpack.c.l.b16 %v1251
      %v1809 = vunpack.c.h.b16 %v1251
      %v1810 = vunpack.c.l.b16 %v1252
      %v1811 = vunpack.c.h.b16 %v1252
      %v1812 = vunpack.c.l.b16 %v1253
      %v1813 = vunpack.c.h.b16 %v1253
      %v1814 = vunpack.c.l.b16 %v1254
      %v1815 = vunpack.c.h.b16 %v1254
      %v1816 = vunpack.c.l.b16 %v1255
      %v1817 = vunpack.c.h.b16 %v1255
      %v1818 = vunpack.c.l.b16 %v1256
      %v1819 = vunpack.c.h.b16 %v1256
      %v1820 = vunpack.c.l.b16 %v1257
      %v1821 = vunpack.c.h.b16 %v1257
      %v1822 = vunpack.c.l.b16 %v1258
      %v1823 = vunpack.c.h.b16 %v1258
      %v1824 = vunpack.c.l.b16 %v1259
      %v1825 = vunpack.c.h.b16 %v1259
      %v1826 = vunpack.c.l.b16 %v1260
      %v1827 = vunpack.c.h.b16 %v1260
      %v1828 = vunpack.c.l.b16 %v1261
      %v1829 = vunpack.c.h.b16 %v1261
      %v1830 = vunpack.c.l.b16 %v1262
      %v1831 = vunpack.c.h.b16 %v1262
      %v1832 = vunpack.c.l.b16 %v1263
      %v1833 = vunpack.c.h.b16 %v1263
      %v1834 = vunpack.c.l.b16 %v1264
      %v1835 = vunpack.c.h.b16 %v1264
      %v1836 = vunpack.c.l.b16 %v1265
      %v1837 = vunpack.c.h.b16 %v1265
      %v1838 = vunpack.c.l.b16 %v1266
      %v1839 = vunpack.c.h.b16 %v1266
      %v1840 = vunpack.c.l.b16 %v1267
      %v1841 = vunpack.c.h.b16 %v1267
      %v1842 = vunpack.c.l.b16 %v1268
      %v1843 = vunpack.c.h.b16 %v1268
      %v1844 = vunpack.c.l.b16 %v1269
      %v1845 = vunpack.c.h.b16 %v1269
      %v1846 = vunpack.c.l.b16 %v1270
      %v1847 = vunpack.c.h.b16 %v1270
      %v1848 = vunpack.c.l.b16 %v1271
      %v1849 = vunpack.c.h.b16 %v1271
      %v1850 = vunpack.c.l.b16 %v1272
      %v1851 = vunpack.c.h.b16 %v1272
      %v1852 = vunpack.c.l.b16 %v1273
      %v1853 = vunpack.c.h.b16 %v1273
      %v1854 = vunpack.c.l.b16 %v1274
      %v1855 = vunpack.c.h.b16 %v1274
      %v1856 = vunpack.c.l.b16 %v1275
      %v1857 = vunpack.c.h.b16 %v1275
      %v1858 = vunpack.c.l.b16 %v1276
      %v1859 = vunpack.c.h.b16 %v1276
      %v1860 = vunpack.c.l.b16 %v1277
      %v1861 = vunpack.c.h.b16 %v1277
      %v1862 = vunpack.c.l.b16 %v1278
      %v1863 = vunpack.c.h.b16 %v1278
      %v1864 = vunpack.c.l.b16 %v1279
      %v1865 = vunpack.c.h.b16 %v1279
      %v1866 = vunpack.c.l.b16 %v1280
      %v1867 = vunpack.c.h.b16 %v1280
      %v1868 = vunpack.c.l.b16 %v1281
      %v1869 = vunpack.c.h.b16 %v1281
      %v1870 = vunpack.c.l.b16 %v1282
      %v1871 = vunpack.c.h.b16 %v1282
      %v1872 = vunpack.c.l.b16 %v1283
      %v1873 = vunpack.c.h.b16 %v1283
      %v1874 = vunpack.c.l.b16 %v1284
      %v1875 = vunpack.c.h.b16 %v1284
      %v1876 = vunpack.c.l.b16 %v1285
      %v1877 = vunpack.c.h.b16 %v1285
      %v1878 = vunpack.c.l.b16 %v1286
      %v1879 = vunpack.c.h.b16 %v1286
      %v1880 = vunpack.c.l.b16 %v1287
      %v1881 = vunpack.c.h.b16 %v1287
      %v1882 = vunpack.c.l.b16 %v1288
      %v1883 = vunpack.c.h.b16 %v1288
      %v1884 = vunpack.c.l.b16 %v1289
      %v1885 = vunpack.c.h.b16 %v1289
      %v1886 = vunpack.c.l.b16 %v1290
      %v1887 = vunpack.c.h.b16 %v1290
      %v1888 = vunpack.c.l.b16 %v1291
      %v1889 = vunpack.c.h.b16 %v1291
      %v1890 = vunpack.c.l.b16 %v1292
      %v1891 = vunpack.c.h.b16 %v1292
      %v1892 = vunpack.c.l.b16 %v1293
      %v1893 = vunpack.c.h.b16 %v1293
      %v1894 = vunpack.c.l.b16 %v1294
      %v1895 = vunpack.c.h.b16 %v1294
      %v1896 = vunpack.c.l.b16 %v1295
      %v1897 = vunpack.c.h.b16 %v1295
      %v1898 = vunpack.c.l.b16 %v1296
      %v1899 = vunpack.c.h.b16 %v1296
      %v1900 = vunpack.c.l.b16 %v1297
      %v1901 = vunpack.c.h.b16 %v1297
      %v1902 = vunpack.c.l.b16 %v1298
      %v1903 = vunpack.c.h.b16 %v1298
      %v1904 = vunpack.c.l.b16 %v1299
      %v1905 = vunpack.c.h.b16 %v1299
      %v1906 = vunpack.c.l.b16 %v1300
      %v1907 = vunpack.c.h.b16 %v1300
      %v1908 = vunpack.c.l.b16 %v1301
      %v1909 = vunpack.c.h.b16 %v1301
      %v1910 = vunpack.c.l.b16 %v1302
      %v1911 = vunpack.c.h.b16 %v1302
      %v1912 = vunpack.c.l.b16 %v1303
      %v1913 = vunpack.c.h.b16 %v1303
      %v1914 = vunpack.c.l.b16 %v1304
      %v1915 = vunpack.c.h.b16 %v1304
      %v1916 = vunpack.c.l.b16 %v1305
      %v1917 = vunpack.c.h.b16 %v1305
      %v1918 = vunpack.c.l.b16 %v1306
      %v1919 = vunpack.c.h.b16 %v1306
      %v1920 = vunpack.c.l.b16 %v1307
      %v1921 = vunpack.c.h.b16 %v1307
      %v1922 = vunpack.c.l.b16 %v1308
      %v1923 = vunpack.c.h.b16 %v1308
      %v1924 = vunpack.c.l.b16 %v1309
      %v1925 = vunpack.c.h.b16 %v1309
      %v1926 = vunpack.c.l.b16 %v1310
      %v1927 = vunpack.c.h.b16 %v1310
      %v1928 = vunpack.c.l.b16 %v1311
      %v1929 = vunpack.c.h.b16 %v1311
      %v1930 = vunpack.c.l.b16 %v1312
      %v1931 = vunpack.c.h.b16 %v1312
      %v1932 = vunpack.c.l.b16 %v1313
      %v1933 = vunpack.c.h.b16 %v1313
      %v1934 = vunpack.c.l.b16 %v1314
      %v1935 = vunpack.c.h.b16 %v1314
      %v1936 = vunpack.c.l.b16 %v1315
      %v1937 = vunpack.c.h.b16 %v1315
      %v1938 = vunpack.c.l.b16 %v1316
      %v1939 = vunpack.c.h.b16 %v1316
      %v1940 = vunpack.c.l.b16 %v1317
      %v1941 = vunpack.c.h.b16 %v1317
      %v1942 = vunpack.c.l.b16 %v1318
      %v1943 = vunpack.c.h.b16 %v1318
      %v1944 = vunpack.c.l.b16 %v1319
      %v1945 = vunpack.c.h.b16 %v1319
      %v1946 = vunpack.c.l.b16 %v1320
      %v1947 = vunpack.c.h.b16 %v1320
      %v1948 = vunpack.c.l.b16 %v1321
      %v1949 = vunpack.c.h.b16 %v1321
      %v1950 = vunpack.c.l.b16 %v1322
      %v1951 = vunpack.c.h.b16 %v1322
      %v1952 = vunpack.c.l.b16 %v1323
      %v1953 = vunpack.c.h.b16 %v1323
      %v1954 = vunpack.c.l.b16 %v1324
      %v1955 = vunpack.c.h.b16 %v1324
      %v1956 = vunpack.c.l.b16 %v1325
      %v1957 = vunpack.c.h.b16 %v1325
      %v1958 = vunpack.c.l.b16 %v1326
      %v1959 = vunpack.c.h.b16 %v1326
      %v1960 = vunpack.c.l.b16 %v1327
      %v1961 = vunpack.c.h.b16 %v1327
      %v1962 = vunpack.c.l.b16 %v1328
      %v1963 = vunpack.c.h.b16 %v1328
      %v1964 = vunpack.c.l.b16 %v1329
      %v1965 = vunpack.c.h.b16 %v1329
      %v1966 = vunpack.c.l.b16 %v1330
      %v1967 = vunpack.c.h.b16 %v1330
      %v1968 = vunpack.c.l.b16 %v1331
      %v1969 = vunpack.c.h.b16 %v1331
      %v1970 = vunpack.c.l.b16 %v1332
      %v1971 = vunpack.c.h.b16 %v1332
      %v1972 = vunpack.c.l.b16 %v1333
      %v1973 = vunpack.c.h.b16 %v1333
      %v1974 = vunpack.c.l.b16 %v1334
      %v1975 = vunpack.c.h.b16 %v1334
      %v1976 = vunpack.c.l.b16 %v1335
      %v1977 = vunpack.c.h.b16 %v1335
      %v1978 = vunpack.c.l.b16 %v1336
      %v1979 = vunpack.c.h.b16 %v1336
      %v1980 = vunpack.c.l.b16 %v1337
      %v1981 = vunpack.c.h.b16 %v1337
      %v1982 = vunpack.c.l.b16 %v1338
      %v1983 = vunpack.c.h.b16 %v1338
      %v1984 = vunpack.c.l.b16 %v1339
      %v1985 = vunpack.c.h.b16 %v1339
      %v1986 = vunpack.c.l.b16 %v1340
      %v1987 = vunpack.c.h.b16 %v1340
      %v1988 = vunpack.c.l.b16 %v1341
      %v1989 = vunpack.c.h.b16 %v1341
      %v1990 = vunpack.c.l.b16 %v1342
      %v1991 = vunpack.c.h.b16 %v1342
      %v1992 = vunpack.c.l.b16 %v1343
      %v1993 = vunpack.c.h.b16 %v1343
      %v1994 = vunpack.c.l.b16 %v1344
      %v1995 = vunpack.c.h.b16 %v1344
      %v1996 = vunpack.c.l.b16 %v1345
      %v1997 = vunpack.c.h.b16 %v1345
      %v1998 = vunpack.c.l.b16 %v1346
      %v1999 = vunpack.c.h.b16 %v1346
      %v2000 = vunpack.c.l.b16 %v1347
      %v2001 = vunpack.c.h.b16 %v1347
      %v2002 = vunpack.c.l.b16 %v1348
      %v2003 = vunpack.c.h.b16 %v1348
      %v2004 = vunpack.c.l.b16 %v1349
      %v2005 = vunpack.c.h.b16 %v1349
      %v2006 = vunpack.c.l.b16 %v1350
      %v2007 = vunpack.c.h.b16 %v1350
      %v2008 = vunpack.c.l.b16 %v1351
      %v2009 = vunpack.c.h.b16 %v1351
      %v2010 = vunpack.c.l.b16 %v1352
      %v2011 = vunpack.c.h.b16 %v1352
      %v2012 = vunpack.c.l.b16 %v1353
      %v2013 = vunpack.c.h.b16 %v1353
      %v2014 = vunpack.c.l.b16 %v1354
      %v2015 = vunpack.c.h.b16 %v1354
      %v2016 = vunpack.c.l.b16 %v1355
      %v2017 = vunpack.c.h.b16 %v1355
      %v2018 = vunpack.c.l.b16 %v1356
      %v2019 = vunpack.c.h.b16 %v1356
      %v2020 = vunpack.c.l.b16 %v1357
      %v2021 = vunpack.c.h.b16 %v1357
      %v2022 = vunpack.c.l.b16 %v1358
      %v2023 = vunpack.c.h.b16 %v1358
      %v2024 = vunpack.c.l.b16 %v1359
      %v2025 = vunpack.c.h.b16 %v1359
      %v2026 = vunpack.c.l.b16 %v1360
      %v2027 = vunpack.c.h.b16 %v1360
      %v2028 = vunpack.c.l.b16 %v1361
      %v2029 = vunpack.c.h.b16 %v1361
      %v2030 = vunpack.c.l.b16 %v1362
      %v2031 = vunpack.c.h.b16 %v1362
      %v2032 = vunpack.c.l.b16 %v1363
      %v2033 = vunpack.c.h.b16 %v1363
      %v2034 = vunpack.c.l.b16 %v1364
      %v2035 = vunpack.c.h.b16 %v1364
      %v2036 = vunpack.c.l.b16 %v1365
      %v2037 = vunpack.c.h.b16 %v1365
      %v2038 = vunpack.c.l.b16 %v1366
      %v2039 = vunpack.c.h.b16 %v1366
      %v2040 = vunpack.c.l.b16 %v1367
      %v2041 = vunpack.c.h.b16 %v1367
      %v2042 = vunpack.c.l.b16 %v1368
      %v2043 = vunpack.c.h.b16 %v1368
      %v2044 = vunpack.c.l.b16 %v1369
      %v2045 = vunpack.c.h.b16 %v1369
      %v2046 = vunpack.c.l.b16 %v1370
      %v2047 = vunpack.c.h.b16 %v1370
      %v2048 = vunpack.c.l.b16 %v1371
      %v2049 = vunpack.c.h.b16 %v1371
      %v2050 = vunpack.c.l.b16 %v1372
      %v2051 = vunpack.c.h.b16 %v1372
      %v2052 = vunpack.c.l.b16 %v1373
      %v2053 = vunpack.c.h.b16 %v1373
      %v2054 = vunpack.c.l.b16 %v1374
      %v2055 = vunpack.c.h.b16 %v1374
      %v2056 = vunpack.c.l.b16 %v1375
      %v2057 = vunpack.c.h.b16 %v1375
      %v2058 = vunpack.c.l.b16 %v1376
      %v2059 = vunpack.c.h.b16 %v1376
      %v2060 = vunpack.c.l.b16 %v1377
      %v2061 = vunpack.c.h.b16 %v1377
      %v2062 = vunpack.c.l.b16 %v1378
      %v2063 = vunpack.c.h.b16 %v1378
      %v2064 = vunpack.c.l.b16 %v1379
      %v2065 = vunpack.c.h.b16 %v1379
      %v2066 = vunpack.c.l.b16 %v1380
      %v2067 = vunpack.c.h.b16 %v1380
      %v2068 = vunpack.c.l.b16 %v1381
      %v2069 = vunpack.c.h.b16 %v1381
      %v2070 = vunpack.c.l.b16 %v1382
      %v2071 = vunpack.c.h.b16 %v1382
      %v2072 = vunpack.c.l.b16 %v1383
      %v2073 = vunpack.c.h.b16 %v1383
      %v2074 = vunpack.c.l.b16 %v1384
      %v2075 = vunpack.c.h.b16 %v1384
      %v2076 = vunpack.c.l.b16 %v1385
      %v2077 = vunpack.c.h.b16 %v1385
      %v2078 = vunpack.c.l.b16 %v1386
      %v2079 = vunpack.c.h.b16 %v1386
      %v2080 = vunpack.c.l.b16 %v1387
      %v2081 = vunpack.c.h.b16 %v1387
      %v2082 = vunpack.c.l.b16 %v1388
      %v2083 = vunpack.c.h.b16 %v1388
      %v2084 = vunpack.c.l.b16 %v1389
      %v2085 = vunpack.c.h.b16 %v1389
      %v2086 = vunpack.c.l.b16 %v1390
      %v2087 = vunpack.c.h.b16 %v1390
      %v2088 = vunpack.c.l.b16 %v1391
      %v2089 = vunpack.c.h.b16 %v1391
      %v2090 = vunpack.c.l.b16 %v1392
      %v2091 = vunpack.c.h.b16 %v1392
      %v2092 = vunpack.c.l.b16 %v1393
      %v2093 = vunpack.c.h.b16 %v1393
      %v2094 = vunpack.c.l.b16 %v1394
      %v2095 = vunpack.c.h.b16 %v1394
      %v2096 = vunpack.c.l.b16 %v1395
      %v2097 = vunpack.c.h.b16 %v1395
      %v2098 = vunpack.c.l.b16 %v1396
      %v2099 = vunpack.c.h.b16 %v1396
      %v2100 = vunpack.c.l.b16 %v1397
      %v2101 = vunpack.c.h.b16 %v1397
      %v2102 = vunpack.c.l.b16 %v1398
      %v2103 = vunpack.c.h.b16 %v1398
      %v2104 = vunpack.c.l.b16 %v1399
      %v2105 = vunpack.c.h.b16 %v1399
      %v2106 = vunpack.c.l.b16 %v1400
      %v2107 = vunpack.c.h.b16 %v1400
      %v2108 = vunpack.c.l.b16 %v1401
      %v2109 = vunpack.c.h.b16 %v1401
      %v2110 = vunpack.c.l.b16 %v1402
      %v2111 = vunpack.c.h.b16 %v1402
      %v2112 = vunpack.c.l.b16 %v1403
      %v2113 = vunpack.c.h.b16 %v1403
      %v2114 = vunpack.c.l.b16 %v1404
      %v2115 = vunpack.c.h.b16 %v1404
      %v2116 = vunpack.c.l.b16 %v1405
      %v2117 = vunpack.c.h.b16 %v1405
      %v2118 = vunpack.c.l.b16 %v1406
      %v2119 = vunpack.c.h.b16 %v1406
      %v2120 = vunpack.c.l.b16 %v1407
      %v2121 = vunpack.c.h.b16 %v1407
      %v2122 = vunpack.c.l.b16 %v1408
      %v2123 = vunpack.c.h.b16 %v1408
      %v2124 = vunpack.c.l.b16 %v1409
      %v2125 = vunpack.c.h.b16 %v1409
      %v2126 = vunpack.c.l.b16 %v1410
      %v2127 = vunpack.c.h.b16 %v1410
      %v2128 = vunpack.c.l.b16 %v1411
      %v2129 = vunpack.c.h.b16 %v1411
      %v2130 = vunpack.c.l.b16 %v1412
      %v2131 = vunpack.c.h.b16 %v1412
      %v2132 = vunpack.c.l.b16 %v1413
      %v2133 = vunpack.c.h.b16 %v1413
      %v2134 = vunpack.c.l.b16 %v1414
      %v2135 = vunpack.c.h.b16 %v1414
      %v2136 = vunpack.c.l.b16 %v1415
      %v2137 = vunpack.c.h.b16 %v1415
      %v2138 = vunpack.c.l.b16 %v1416
      %v2139 = vunpack.c.h.b16 %v1416
      %v2140 = vunpack.c.l.b16 %v1417
      %v2141 = vunpack.c.h.b16 %v1417
      %v2142 = vunpack.c.l.b16 %v1418
      %v2143 = vunpack.c.h.b16 %v1418
      %v2144 = vunpack.c.l.b16 %v1419
      %v2145 = vunpack.c.h.b16 %v1419
      %v2146 = vunpack.c.l.b16 %v1420
      %v2147 = vunpack.c.h.b16 %v1420
      %v2148 = vunpack.c.l.b16 %v1421
      %v2149 = vunpack.c.h.b16 %v1421
      %v2150 = vunpack.c.l.b16 %v1422
      %v2151 = vunpack.c.h.b16 %v1422
      %v2152 = vunpack.c.l.b16 %v1423
      %v2153 = vunpack.c.h.b16 %v1423
      %v2154 = vunpack.c.l.b16 %v1424
      %v2155 = vunpack.c.h.b16 %v1424
      %v2156 = vunpack.c.l.b16 %v1425
      %v2157 = vunpack.c.h.b16 %v1425
      %v2158 = vunpack.c.l.b16 %v1426
      %v2159 = vunpack.c.h.b16 %v1426
      %v2160 = vunpack.c.l.b16 %v1427
      %v2161 = vunpack.c.h.b16 %v1427
      %v2162 = vunpack.c.l.b16 %v1428
      %v2163 = vunpack.c.h.b16 %v1428
      %v2164 = vunpack.c.l.b16 %v1429
      %v2165 = vunpack.c.h.b16 %v1429
      %v2166 = vunpack.c.l.b16 %v1430
      %v2167 = vunpack.c.h.b16 %v1430
      %v2168 = vunpack.c.l.b16 %v1431
      %v2169 = vunpack.c.h.b16 %v1431
      %v2170 = vunpack.c.l.b16 %v1432
      %v2171 = vunpack.c.h.b16 %v1432
      %v2172 = vunpack.c.l.b16 %v1433
      %v2173 = vunpack.c.h.b16 %v1433
      %v2174 = vunpack.c.l.b16 %v1434
      %v2175 = vunpack.c.h.b16 %v1434
      %v2176 = vunpack.c.l.b16 %v1435
      %v2177 = vunpack.c.h.b16 %v1435
      %v2178 = vunpack.c.l.b16 %v1436
      %v2179 = vunpack.c.h.b16 %v1436
      %v2180 = vunpack.c.l.b16 %v1437
      %v2181 = vunpack.c.h.b16 %v1437
      %v2182 = vunpack.c.l.b16 %v1438
      %v2183 = vunpack.c.h.b16 %v1438
      %v2184 = vunpack.c.l.b16 %v1439
      %v2185 = vunpack.c.h.b16 %v1439
      %v2186 = vunpack.c.l.b16 %v1440
      %v2187 = vunpack.c.h.b16 %v1440
      %v2188 = vunpack.c.l.b16 %v1441
      %v2189 = vunpack.c.h.b16 %v1441
      %v2190 = vunpack.c.l.b16 %v1442
      %v2191 = vunpack.c.h.b16 %v1442
      %v2192 = vunpack.c.l.b16 %v1443
      %v2193 = vunpack.c.h.b16 %v1443
      %v2194 = vunpack.c.l.b16 %v1444
      %v2195 = vunpack.c.h.b16 %v1444
      %v2196 = vunpack.c.l.b16 %v1445
      %v2197 = vunpack.c.h.b16 %v1445
      %v2198 = vunpack.c.l.b16 %v1446
      %v2199 = vunpack.c.h.b16 %v1446
      %v2200 = vunpack.c.l.b16 %v1447
      %v2201 = vunpack.c.h.b16 %v1447
      %v2202 = vunpack.c.l.b16 %v1448
      %v2203 = vunpack.c.h.b16 %v1448
      %v2204 = vunpack.c.l.b16 %v1449
      %v2205 = vunpack.c.h.b16 %v1449
      %v2206 = vunpack.c.l.b16 %v1450
      %v2207 = vunpack.c.h.b16 %v1450
      %v2208 = vunpack.c.l.b16 %v1451
      %v2209 = vunpack.c.h.b16 %v1451
      %v2210 = vunpack.c.l.b16 %v1452
      %v2211 = vunpack.c.h.b16 %v1452
      %v2212 = vunpack.c.l.b16 %v1453
      %v2213 = vunpack.c.h.b16 %v1453
      %v2214 = vunpack.c.l.b16 %v1454
      %v2215 = vunpack.c.h.b16 %v1454
      %v2216 = vunpack.c.l.b16 %v1455
      %v2217 = vunpack.c.h.b16 %v1455
      %v2218 = vunpack.c.l.b16 %v1456
      %v2219 = vunpack.c.h.b16 %v1456
      %v2220 = vunpack.c.l.b16 %v1457
      %v2221 = vunpack.c.h.b16 %v1457
      %v2222 = vunpack.c.l.b16 %v1458
      %v2223 = vunpack.c.h.b16 %v1458
      %v2224 = vunpack.c.l.b16 %v1459
      %v2225 = vunpack.c.h.b16 %v1459
      %v2226 = vunpack.c.l.b16 %v1460
      %v2227 = vunpack.c.h.b16 %v1460
      %v2228 = vunpack.c.l.b16 %v1461
      %v2229 = vunpack.c.h.b16 %v1461
      %v2230 = vunpack.c.l.b16 %v1462
      %v2231 = vunpack.c.h.b16 %v1462
      %v2232 = vunpack.c.l.b16 %v1463
      %v2233 = vunpack.c.h.b16 %v1463
      %v2234 = vunpack.c.l.b16 %v1464
      %v2235 = vunpack.c.h.b16 %v1464
      %v2236 = vunpack.c.l.b16 %v1465
      %v2237 = vunpack.c.h.b16 %v1465
      %v2238 = vunpack.c.l.b16 %v1466
      %v2239 = vunpack.c.h.b16 %v1466
      %v2240 = vunpack.c.l.b16 %v1467
      %v2241 = vunpack.c.h.b16 %v1467
      %v2242 = vunpack.c.l.b16 %v1468
      %v2243 = vunpack.c.h.b16 %v1468
      %v2244 = vunpack.c.l.b16 %v1469
      %v2245 = vunpack.c.h.b16 %v1469
      %v2246 = vunpack.c.l.b16 %v1470
      %v2247 = vunpack.c.h.b16 %v1470
      %v2248 = vunpack.c.l.b16 %v1471
      %v2249 = vunpack.c.h.b16 %v1471
      %v2250 = vunpack.c.l.b16 %v1472
      %v2251 = vunpack.c.h.b16 %v1472
      %v2252 = vunpack.c.l.b16 %v1473
      %v2253 = vunpack.c.h.b16 %v1473
      %v2254 = vunpack.c.l.b16 %v1474
      %v2255 = vunpack.c.h.b16 %v1474
      %v2256 = vunpack.c.l.b16 %v1475
      %v2257 = vunpack.c.h.b16 %v1475
      %v2258 = vunpack.c.l.b16 %v1476
      %v2259 = vunpack.c.h.b16 %v1476
      %v2260 = vunpack.c.l.b16 %v1477
      %v2261 = vunpack.c.h.b16 %v1477
      %v2262 = vunpack.c.l.b16 %v1478
      %v2263 = vunpack.c.h.b16 %v1478
      %v2264 = vunpack.c.l.b16 %v1479
      %v2265 = vunpack.c.h.b16 %v1479
      %v2266 = vunpack.c.l.b16 %v1480
      %v2267 = vunpack.c.h.b16 %v1480
      %v2268 = vunpack.c.l.b16 %v1481
      %v2269 = vunpack.c.h.b16 %v1481
      %v2270 = vunpack.c.l.b16 %v1482
      %v2271 = vunpack.c.h.b16 %v1482
      %v2272 = vunpack.c.l.b16 %v1483
      %v2273 = vunpack.c.h.b16 %v1483
      %v2274 = vpack.c.b16 %v1766, %v1762
      %v2275 = vpack.c.b16 %v1767, %v1763
      %v2276 = vpack.c.b16 %v1768, %v1764
      %v2277 = vpack.c.b16 %v1769, %v1765
      %v2278 = vpack.c.b16 %v1774, %v1770
      %v2279 = vpack.c.b16 %v1775, %v1771
      %v2280 = vpack.c.b16 %v1776, %v1772
      %v2281 = vpack.c.b16 %v1777, %v1773
      %v2282 = vpack.c.b16 %v1782, %v1778
      %v2283 = vpack.c.b16 %v1783, %v1779
      %v2284 = vpack.c.b16 %v1784, %v1780
      %v2285 = vpack.c.b16 %v1785, %v1781
      %v2286 = vpack.c.b16 %v1790, %v1786
      %v2287 = vpack.c.b16 %v1791, %v1787
      %v2288 = vpack.c.b16 %v1792, %v1788
      %v2289 = vpack.c.b16 %v1793, %v1789
      %v2290 = vpack.c.b16 %v1798, %v1794
      %v2291 = vpack.c.b16 %v1799, %v1795
      %v2292 = vpack.c.b16 %v1800, %v1796
      %v2293 = vpack.c.b16 %v1801, %v1797
      %v2294 = vpack.c.b16 %v1806, %v1802
      %v2295 = vpack.c.b16 %v1807, %v1803
      %v2296 = vpack.c.b16 %v1808, %v1804
      %v2297 = vpack.c.b16 %v1809, %v1805
      %v2298 = vpack.c.b16 %v1814, %v1810
      %v2299 = vpack.c.b16 %v1815, %v1811
      %v2300 = vpack.c.b16 %v1816, %v1812
      %v2301 = vpack.c.b16 %v1817, %v1813
      %v2302 = vpack.c.b16 %v1822, %v1818
      %v2303 = vpack.c.b16 %v1823, %v1819
      %v2304 = vpack.c.b16 %v1824, %v1820
      %v2305 = vpack.c.b16 %v1825, %v1821
      %v2306 = vpack.c.b16 %v1830, %v1826
      %v2307 = vpack.c.b16 %v1831, %v1827
      %v2308 = vpack.c.b16 %v1832, %v1828
      %v2309 = vpack.c.b16 %v1833, %v1829
      %v2310 = vpack.c.b16 %v1838, %v1834
      %v2311 = vpack.c.b16 %v1839, %v1835
      %v2312 = vpack.c.b16 %v1840, %v1836
      %v2313 = vpack.c.b16 %v1841, %v1837
      %v2314 = vpack.c.b16 %v1846, %v1842
      %v2315 = vpack.c.b16 %v1847, %v1843
      %v2316 = vpack.c.b16 %v1848, %v1844
      %v2317 = vpack.c.b16 %v1849, %v1845
      %v2318 = vpack.c.b16 %v1854, %v1850
      %v2319 = vpack.c.b16 %v1855, %v1851
      %v2320 = vpack.c.b16 %v1856, %v1852
      %v2321 = vpack.c.b16 %v1857, %v1853
      %v2322 = vpack.c.b16 %v1862, %v1858
      %v2323 = vpack.c.b16 %v1863, %v1859
      %v2324 = vpack.c.b16 %v1864, %v1860
      %v2325 = vpack.c.b16 %v1865, %v1861
      %v2326 = vpack.c.b16 %v1870, %v1866
      %v2327 = vpack.c.b16 %v1871, %v1867
      %v2328 = vpack.c.b16 %v1872, %v1868
      %v2329 = vpack.c.b16 %v1873, %v1869
      %v2330 = vpack.c.b16 %v1878, %v1874
      %v2331 = vpack.c.b16 %v1879, %v1875
      %v2332 = vpack.c.b16 %v1880, %v1876
      %v2333 = vpack.c.b16 %v1881, %v1877
      %v2334 = vpack.c.b16 %v1886, %v1882
      %v2335 = vpack.c.b16 %v1887, %v1883
      %v2336 = vpack.c.b16 %v1888, %v1884
      %v2337 = vpack.c.b16 %v1889, %v1885
      %v2338 = vpack.c.b16 %v1894, %v1890
      %v2339 = vpack.c.b16 %v1895, %v1891
      %v2340 = vpack.c.b16 %v1896, %v1892
      %v2341 = vpack.c.b16 %v1897, %v1893
      %v2342 = vpack.c.b16 %v1902, %v1898
      %v2343 = vpack.c.b16 %v1903, %v1899
      %v2344 = vpack.c.b16 %v1904, %v1900
      %v2345 = vpack.c.b16 %v1905, %v1901
      %v2346 = vpack.c.b16 %v1910, %v1906
      %v2347 = vpack.c.b16 %v1911, %v1907
      %v2348 = vpack.c.b16 %v1912, %v1908
      %v2349 = vpack.c.b16 %v1913, %v1909
      %v2350 = vpack.c.b16 %v1918, %v1914
      %v2351 = vpack.c.b16 %v1919, %v1915
      %v2352 = vpack.c.b16 %v1920, %v1916
      %v2353 = vpack.c.b16 %v1921, %v1917
      %v2354 = vpack.c.b16 %v1926, %v1922
      %v2355 = vpack.c.b16 %v1927, %v1923
      %v2356 = vpack.c.b16 %v1928, %v1924
      %v2357 = vpack.c.b16 %v1929, %v1925
      %v2358 = vpack.c.b16 %v1934, %v1930
      %v2359 = vpack.c.b16 %v1935, %v1931
      %v2360 = vpack.c.b16 %v1936, %v1932
      %v2361 = vpack.c.b16 %v1937, %v1933
      %v2362 = vpack.c.b16 %v1942, %v1938
      %v2363 = vpack.c.b16 %v1943, %v1939
      %v2364 = vpack.c.b16 %v1944, %v1940
      %v2365 = vpack.c.b16 %v1945, %v1941
      %v2366 = vpack.c.b16 %v1950, %v1946
      %v2367 = vpack.c.b16 %v1951, %v1947
      %v2368 = vpack.c.b16 %v1952, %v1948
      %v2369 = vpack.c.b16 %v1953, %v1949
      %v2370 = vpack.c.b16 %v1958, %v1954
      %v2371 = vpack.c.b16 %v1959, %v1955
      %v2372 = vpack.c.b16 %v1960, %v1956
      %v2373 = vpack.c.b16 %v1961, %v1957
      %v2374 = vpack.c.b16 %v1966, %v1962
      %v2375 = vpack.c.b16 %v1967, %v1963
      %v2376 = vpack.c.b16 %v1968, %v1964
      %v2377 = vpack.c.b16 %v1969, %v1965
      %v2378 = vpack.c.b16 %v1974, %v1970
      %v2379 = vpack.c.b16 %v1975, %v1971
      %v2380 = vpack.c.b16 %v1976, %v1972
      %v2381 = vpack.c.b16 %v1977, %v1973
      %v2382 = vpack.c.b16 %v1982, %v1978
      %v2383 = vpack.c.b16 %v1983, %v1979
      %v2384 = vpack.c.b16 %v1984, %v1980
      %v2385 = vpack.c.b16 %v1985, %v1981
      %v2386 = vpack.c.b16 %v1990, %v1986
      %v2387 = vpack.c.b16 %v1991, %v1987
      %v2388 = vpack.c.b16 %v1992, %v1988
      %v2389 = vpack.c.b16 %v1993, %v1989
      %v2390 = vpack.c.b16 %v1998, %v1994
      %v2391 = vpack.c.b16 %v1999, %v1995
      %v2392 = vpack.c.b16 %v2000, %v1996
      %v2393 = vpack.c.b16 %v2001, %v1997
      %v2394 = vpack.c.b16 %v2006, %v2002
      %v2395 = vpack.c.b16 %v2007, %v2003
      %v2396 = vpack.c.b16 %v2008, %v2004
      %v2397 = vpack.c.b16 %v2009, %v2005
      %v2398 = vpack.c.b16 %v2014, %v2010
      %v2399 = vpack.c.b16 %v2015, %v2011
      %v2400 = vpack.c.b16 %v2016, %v2012
      %v2401 = vpack.c.b16 %v2017, %v2013
      %v2402 = vpack.c.b16 %v2022, %v2018
      %v2403 = vpack.c.b16 %v2023, %v2019
      %v2404 = vpack.c.b16 %v2024, %v2020
      %v2405 = vpack.c.b16 %v2025, %v2021
      %v2406 = vpack.c.b16 %v2030, %v2026
      %v2407 = vpack.c.b16 %v2031, %v2027
      %v2408 = vpack.c.b16 %v2032, %v2028
      %v2409 = vpack.c.b16 %v2033, %v2029
      %v2410 = vpack.c.b16 %v2038, %v2034
      %v2411 = vpack.c.b16 %v2039, %v2035
      %v2412 = vpack.c.b16 %v2040, %v2036
      %v2413 = vpack.c.b16 %v2041, %v2037
      %v2414 = vpack.c.b16 %v2046, %v2042
      %v2415 = vpack.c.b16 %v2047, %v2043
      %v2416 = vpack.c.b16 %v2048, %v2044
      %v2417 = vpack.c.b16 %v2049, %v2045
      %v2418 = vpack.c.b16 %v2054, %v2050
      %v2419 = vpack.c.b16 %v2055, %v2051
      %v2420 = vpack.c.b16 %v2056, %v2052
      %v2421 = vpack.c.b16 %v2057, %v2053
      %v2422 = vpack.c.b16 %v2062, %v2058
      %v2423 = vpack.c.b16 %v2063, %v2059
      %v2424 = vpack.c.b16 %v2064, %v2060
      %v2425 = vpack.c.b16 %v2065, %v2061
      %v2426 = vpack.c.b16 %v2070, %v2066
      %v2427 = vpack.c.b16 %v2071, %v2067
      %v2428 = vpack.c.b16 %v2072, %v2068
      %v2429 = vpack.c.b16 %v2073, %v2069
      %v2430 = vpack.c.b16 %v2078, %v2074
      %v2431 = vpack.c.b16 %v2079, %v2075
      %v2432 = vpack.c.b16 %v2080, %v2076
      %v2433 = vpack.c.b16 %v2081, %v2077
      %v2434 = vpack.c.b16 %v2086, %v2082
      %v2435 = vpack.c.b16 %v2087, %v2083
      %v2436 = vpack.c.b16 %v2088, %v2084
      %v2437 = vpack.c.b16 %v2089, %v2085
      %v2438 = vpack.c.b16 %v2094, %v2090
      %v2439 = vpack.c.b16 %v2095, %v2091
      %v2440 = vpack.c.b16 %v2096, %v2092
      %v2441 = vpack.c.b16 %v2097, %v2093
      %v2442 = vpack.c.b16 %v2102, %v2098
      %v2443 = vpack.c.b16 %v2103, %v2099
      %v2444 = vpack.c.b16 %v2104, %v2100
      %v2445 = vpack.c.b16 %v2105, %v2101
      %v2446 = vpack.c.b16 %v2110, %v2106
      %v2447 = vpack.c.b16 %v2111, %v2107
      %v2448 = vpack.c.b16 %v2112, %v2108
      %v2449 = vpack.c.b16 %v2113, %v2109
      %v2450 = vpack.c.b16 %v2118, %v2114
      %v2451 = vpack.c.b16 %v2119, %v2115
      %v2452 = vpack.c.b16 %v2120, %v2116
      %v2453 = vpack.c.b16 %v2121, %v2117
      %v2454 = vpack.c.b16 %v2126, %v2122
      %v2455 = vpack.c.b16 %v2127, %v2123
      %v2456 = vpack.c.b16 %v2128, %v2124
      %v2457 = vpack.c.b16 %v2129, %v2125
      %v2458 = vpack.c.b16 %v2134, %v2130
      %v2459 = vpack.c.b16 %v2135, %v2131
      %v2460 = vpack.c.b16 %v2136, %v2132
      %v2461 = vpack.c.b16 %v2137, %v2133
      %v2462 = vpack.c.b16 %v2142, %v2138
      %v2463 = vpack.c.b16 %v2143, %v2139
      %v2464 = vpack.c.b16 %v2144, %v2140
      %v2465 = vpack.c.b16 %v2145, %v2141
      %v2466 = vpack.c.b16 %v2150, %v2146
      %v2467 = vpack.c.b16 %v2151, %v2147
      %v2468 = vpack.c.b16 %v2152, %v2148
      %v2469 = vpack.c.b16 %v2153, %v2149
      %v2470 = vpack.c.b16 %v2158, %v2154
      %v2471 = vpack.c.b16 %v2159, %v2155
      %v2472 = vpack.c.b16 %v2160, %v2156
      %v2473 = vpack.c.b16 %v2161, %v2157
      %v2474 = vpack.c.b16 %v2166, %v2162
      %v2475 = vpack.c.b16 %v2167, %v2163
      %v2476 = vpack.c.b16 %v2168, %v2164
      %v2477 = vpack.c.b16 %v2169, %v2165
      %v2478 = vpack.c.b16 %v2174, %v2170
      %v2479 = vpack.c.b16 %v2175, %v2171
      %v2480 = vpack.c.b16 %v2176, %v2172
      %v2481 = vpack.c.b16 %v2177, %v2173
      %v2482 = vpack.c.b16 %v2182, %v2178
      %v2483 = vpack.c.b16 %v2183, %v2179
      %v2484 = vpack.c.b16 %v2184, %v2180
      %v2485 = vpack.c.b16 %v2185, %v2181
      %v2486 = vpack.c.b16 %v2190, %v2186
      %v2487 = vpack.c.b16 %v2191, %v2187
      %v2488 = vpack.c.b16 %v2192, %v2188
      %v2489 = vpack.c.b16 %v2193, %v2189
      %v2490 = vpack.c.b16 %v2198, %v2194
      %v2491 = vpack.c.b16 %v2199, %v2195
      %v2492 = vpack.c.b16 %v2200, %v2196
      %v2493 = vpack.c.b16 %v2201, %v2197
      %v2494 = vpack.c.b16 %v2206, %v2202
      %v2495 = vpack.c.b16 %v2207, %v2203
      %v2496 = vpack.c.b16 %v2208, %v2204
      %v2497 = vpack.c.b16 %v2209, %v2205
      %v2498 = vpack.c.b16 %v2214, %v2210
      %v2499 = vpack.c.b16 %v2215, %v2211
      %v2500 = vpack.c.b16 %v2216, %v2212
      %v2501 = vpack.c.b16 %v2217, %v2213
      %v2502 = vpack.c.b16 %v2222, %v2218
      %v2503 = vpack.c.b16 %v2223, %v2219
      %v2504 = vpack.c.b16 %v2224, %v2220
      %v2505 = vpack.c.b16 %v2225, %v2221
      %v2506 = vpack.c.b16 %v2230, %v2226
      %v2507 = vpack.c.b16 %v2231, %v2227
      %v2508 = vpack.c.b16 %v2232, %v2228
      %v2509 = vpack.c.b16 %v2233, %v2229
      %v2510 = vpack.c.b16 %v2238, %v2234
      %v2511 = vpack.c.b16 %v2239, %v2235
      %v2512 = vpack.c.b16 %v2240, %v2236
      %v2513 = vpack.c.b16 %v2241, %v2237
      %v2514 = vpack.c.b16 %v2246, %v2242
      %v2515 = vpack.c.b16 %v2247, %v2243
      %v2516 = vpack.c.b16 %v2248, %v2244
      %v2517 = vpack.c.b16 %v2249, %v2245
      %v2518 = vpack.c.b16 %v2254, %v2250
      %v2519 = vpack.c.b16 %v2255, %v2251
      %v2520 = vpack.c.b16 %v2256, %v2252
      %v2521 = vpack.c.b16 %v2257, %v2253
      %v2522 = vpack.c.b16 %v2262, %v2258
      %v2523 = vpack.c.b16 %v2263, %v2259
      %v2524 = vpack.c.b16 %v2264, %v2260
      %v2525 = vpack.c.b16 %v2265, %v2261
      %v2526 = vpack.c.b16 %v2270, %v2266
      %v2527 = vpack.c.b16 %v2271, %v2267
      %v2528 = vpack.c.b16 %v2272, %v2268
      %v2529 = vpack.c.b16 %v2273, %v2269
      %2786 = vmatprep.subr.bf16.mxu0 %v2275
      %2787 = vmatpush1.bf16.msra.mxu0 %v2274
      %2788 = vmatprep.subr.bf16.mxu0 %v2279
      %2789 = vmatpush1.bf16.msra.mxu0 %v2278
      %2790 = vmatprep.subr.bf16.mxu0 %v2283
      %2791 = vmatpush1.bf16.msra.mxu0 %v2282
      %2792 = vmatprep.subr.bf16.mxu0 %v2287
      %2793 = vmatpush1.bf16.msra.mxu0 %v2286
      %2794 = vmatprep.subr.bf16.mxu0 %v2291
      %2795 = vmatpush1.bf16.msra.mxu0 %v2290
      %2796 = vmatprep.subr.bf16.mxu0 %v2295
      %2797 = vmatpush1.bf16.msra.mxu0 %v2294
      %2798 = vmatprep.subr.bf16.mxu0 %v2299
      %2799 = vmatpush1.bf16.msra.mxu0 %v2298
      %2800 = vmatprep.subr.bf16.mxu0 %v2303
      %2801 = vmatpush1.bf16.msra.mxu0 %v2302
      %2802 = vmatprep.subr.bf16.mxu0 %v2307
      %2803 = vmatpush1.bf16.msra.mxu0 %v2306
      %2804 = vmatprep.subr.bf16.mxu0 %v2311
      %2805 = vmatpush1.bf16.msra.mxu0 %v2310
      %2806 = vmatprep.subr.bf16.mxu0 %v2315
      %2807 = vmatpush1.bf16.msra.mxu0 %v2314
      %2808 = vmatprep.subr.bf16.mxu0 %v2319
      %2809 = vmatpush1.bf16.msra.mxu0 %v2318
      %2810 = vmatprep.subr.bf16.mxu0 %v2323
      %2811 = vmatpush1.bf16.msra.mxu0 %v2322
      %2812 = vmatprep.subr.bf16.mxu0 %v2327
      %2813 = vmatpush1.bf16.msra.mxu0 %v2326
      %2814 = vmatprep.subr.bf16.mxu0 %v2331
      %2815 = vmatpush1.bf16.msra.mxu0 %v2330
      %2816 = vmatprep.subr.bf16.mxu0 %v2335
      %2817 = vmatpush1.bf16.msra.mxu0 %v2334
      %2818 = vmatprep.mubr.bf16.mxu0 %v1221
      %2819 = vmatmul.mubr.bf16.gmra.mrb[0].mxu0 %v1220
      %v2820 = vpop.f32.mrb[0].mxu0
      %v2821 = vadd.f32 %v1489, %v2820
      %v2822 = vpop.f32.mrb[0].mxu0
      %v2823 = vadd.f32 %v1493, %v2822
      %v2824 = vpop.f32.mrb[0].mxu0
      %v2825 = vpop.f32.mrb[0].mxu0
      %2826 = vdwg.mxu0
      %2827 = vmatprep.subr.bf16.mxu0 %v2339
      %2828 = vmatpush1.bf16.msra.mxu0 %v2338
      %2829 = vmatprep.subr.bf16.mxu0 %v2343
      %2830 = vmatpush1.bf16.msra.mxu0 %v2342
      %2831 = vmatprep.subr.bf16.mxu0 %v2347
      %2832 = vmatpush1.bf16.msra.mxu0 %v2346
      %2833 = vmatprep.subr.bf16.mxu0 %v2351
      %2834 = vmatpush1.bf16.msra.mxu0 %v2350
      %2835 = vmatprep.subr.bf16.mxu0 %v2355
      %2836 = vmatpush1.bf16.msra.mxu0 %v2354
      %2837 = vmatprep.subr.bf16.mxu0 %v2359
      %2838 = vmatpush1.bf16.msra.mxu0 %v2358
      %2839 = vmatprep.subr.bf16.mxu0 %v2363
      %2840 = vmatpush1.bf16.msra.mxu0 %v2362
      %2841 = vmatprep.subr.bf16.mxu0 %v2367
      %2842 = vmatpush1.bf16.msra.mxu0 %v2366
      %2843 = vmatprep.subr.bf16.mxu0 %v2371
      %2844 = vmatpush1.bf16.msra.mxu0 %v2370
      %2845 = vmatprep.subr.bf16.mxu0 %v2375
      %2846 = vmatpush1.bf16.msra.mxu0 %v2374
      %2847 = vmatprep.subr.bf16.mxu0 %v2379
      %2848 = vmatpush1.bf16.msra.mxu0 %v2378
      %2849 = vmatprep.subr.bf16.mxu0 %v2383
      %2850 = vmatpush1.bf16.msra.mxu0 %v2382
      %2851 = vmatprep.subr.bf16.mxu0 %v2387
      %2852 = vmatpush1.bf16.msra.mxu0 %v2386
      %2853 = vmatprep.subr.bf16.mxu0 %v2391
      %2854 = vmatpush1.bf16.msra.mxu0 %v2390
      %2855 = vmatprep.subr.bf16.mxu0 %v2395
      %2856 = vmatpush1.bf16.msra.mxu0 %v2394
      %2857 = vmatprep.subr.bf16.mxu0 %v2399
      %2858 = vmatpush1.bf16.msra.mxu0 %v2398
      %2859 = vmatprep.mubr.bf16.mxu0 %v1223
      %2860 = vmatmul.mubr.bf16.gmra.mrb[0].mxu0 %v1222
      %v2861 = vpop.f32.mrb[0].mxu0
      %v2862 = vadd.f32 %v2821, %v2861
      %v2863 = vpop.f32.mrb[0].mxu0
      %v2864 = vadd.f32 %v2823, %v2863
      %v2865 = vpop.f32.mrb[0].mxu0
      %v2866 = vpop.f32.mrb[0].mxu0
      %2867 = vdwg.mxu0
      %2868 = vmatprep.subr.bf16.mxu0 %v2403
      %2869 = vmatpush1.bf16.msra.mxu0 %v2402
      %2870 = vmatprep.subr.bf16.mxu0 %v2407
      %2871 = vmatpush1.bf16.msra.mxu0 %v2406
      %2872 = vmatprep.subr.bf16.mxu0 %v2411
      %2873 = vmatpush1.bf16.msra.mxu0 %v2410
      %2874 = vmatprep.subr.bf16.mxu0 %v2415
      %2875 = vmatpush1.bf16.msra.mxu0 %v2414
      %2876 = vmatprep.subr.bf16.mxu0 %v2419
      %2877 = vmatpush1.bf16.msra.mxu0 %v2418
      %2878 = vmatprep.subr.bf16.mxu0 %v2423
      %2879 = vmatpush1.bf16.msra.mxu0 %v2422
      %2880 = vmatprep.subr.bf16.mxu0 %v2427
      %2881 = vmatpush1.bf16.msra.mxu0 %v2426
      %2882 = vmatprep.subr.bf16.mxu0 %v2431
      %2883 = vmatpush1.bf16.msra.mxu0 %v2430
      %2884 = vmatprep.subr.bf16.mxu0 %v2435
      %2885 = vmatpush1.bf16.msra.mxu0 %v2434
      %2886 = vmatprep.subr.bf16.mxu0 %v2439
      %2887 = vmatpush1.bf16.msra.mxu0 %v2438
      %2888 = vmatprep.subr.bf16.mxu0 %v2443
      %2889 = vmatpush1.bf16.msra.mxu0 %v2442
      %2890 = vmatprep.subr.bf16.mxu0 %v2447
      %2891 = vmatpush1.bf16.msra.mxu0 %v2446
      %2892 = vmatprep.subr.bf16.mxu0 %v2451
      %2893 = vmatpush1.bf16.msra.mxu0 %v2450
      %2894 = vmatprep.subr.bf16.mxu0 %v2455
      %2895 = vmatpush1.bf16.msra.mxu0 %v2454
      %2896 = vmatprep.subr.bf16.mxu0 %v2459
      %2897 = vmatpush1.bf16.msra.mxu0 %v2458
      %2898 = vmatprep.subr.bf16.mxu0 %v2463
      %2899 = vmatpush1.bf16.msra.mxu0 %v2462
      %2900 = vmatprep.mubr.bf16.mxu0 %v1225
      %2901 = vmatmul.mubr.bf16.gmra.mrb[0].mxu0 %v1224
      %v2902 = vpop.f32.mrb[0].mxu0
      %v2903 = vadd.f32 %v2862, %v2902
      %v2904 = vpop.f32.mrb[0].mxu0
      %v2905 = vadd.f32 %v2864, %v2904
      %v2906 = vpop.f32.mrb[0].mxu0
      %v2907 = vpop.f32.mrb[0].mxu0
      %2908 = vdwg.mxu0
      %2909 = vmatprep.subr.bf16.mxu0 %v2467
      %2910 = vmatpush1.bf16.msra.mxu0 %v2466
      %2911 = vmatprep.subr.bf16.mxu0 %v2471
      %2912 = vmatpush1.bf16.msra.mxu0 %v2470
      %2913 = vmatprep.subr.bf16.mxu0 %v2475
      %2914 = vmatpush1.bf16.msra.mxu0 %v2474
      %2915 = vmatprep.subr.bf16.mxu0 %v2479
      %2916 = vmatpush1.bf16.msra.mxu0 %v2478
      %2917 = vmatprep.subr.bf16.mxu0 %v2483
      %2918 = vmatpush1.bf16.msra.mxu0 %v2482
      %2919 = vmatprep.subr.bf16.mxu0 %v2487
      %2920 = vmatpush1.bf16.msra.mxu0 %v2486
      %2921 = vmatprep.subr.bf16.mxu0 %v2491
      %2922 = vmatpush1.bf16.msra.mxu0 %v2490
      %2923 = vmatprep.subr.bf16.mxu0 %v2495
      %2924 = vmatpush1.bf16.msra.mxu0 %v2494
      %2925 = vmatprep.subr.bf16.mxu0 %v2499
      %2926 = vmatpush1.bf16.msra.mxu0 %v2498
      %2927 = vmatprep.subr.bf16.mxu0 %v2503
      %2928 = vmatpush1.bf16.msra.mxu0 %v2502
      %2929 = vmatprep.subr.bf16.mxu0 %v2507
      %2930 = vmatpush1.bf16.msra.mxu0 %v2506
      %2931 = vmatprep.subr.bf16.mxu0 %v2511
      %2932 = vmatpush1.bf16.msra.mxu0 %v2510
      %2933 = vmatprep.subr.bf16.mxu0 %v2515
      %2934 = vmatpush1.bf16.msra.mxu0 %v2514
      %2935 = vmatprep.subr.bf16.mxu0 %v2519
      %2936 = vmatpush1.bf16.msra.mxu0 %v2518
      %2937 = vmatprep.subr.bf16.mxu0 %v2523
      %2938 = vmatpush1.bf16.msra.mxu0 %v2522
      %2939 = vmatprep.subr.bf16.mxu0 %v2527
      %2940 = vmatpush1.bf16.msra.mxu0 %v2526
      %2941 = vmatprep.mubr.bf16.mxu0 %v1227
      %2942 = vmatmul.mubr.bf16.gmra.mrb[0].mxu0 %v1226
      %v2943 = vpop.f32.mrb[0].mxu0
      %v2944 = vadd.f32 %v2903, %v2943
      %v2945 = vpop.f32.mrb[0].mxu0
      %v2946 = vadd.f32 %v2905, %v2945
      %v2947 = vpop.f32.mrb[0].mxu0
      %v2948 = vpop.f32.mrb[0].mxu0
      %2949 = vdwg.mxu0
      %2950 = vmatprep.subr.bf16.mxu0 %v2277
      %2951 = vmatpush1.bf16.msra.mxu0 %v2276
      %2952 = vmatprep.subr.bf16.mxu0 %v2281
      %2953 = vmatpush1.bf16.msra.mxu0 %v2280
      %2954 = vmatprep.subr.bf16.mxu0 %v2285
      %2955 = vmatpush1.bf16.msra.mxu0 %v2284
      %2956 = vmatprep.subr.bf16.mxu0 %v2289
      %2957 = vmatpush1.bf16.msra.mxu0 %v2288
      %2958 = vmatprep.subr.bf16.mxu0 %v2293
      %2959 = vmatpush1.bf16.msra.mxu0 %v2292
      %2960 = vmatprep.subr.bf16.mxu0 %v2297
      %2961 = vmatpush1.bf16.msra.mxu0 %v2296
      %2962 = vmatprep.subr.bf16.mxu0 %v2301
      %2963 = vmatpush1.bf16.msra.mxu0 %v2300
      %2964 = vmatprep.subr.bf16.mxu0 %v2305
      %2965 = vmatpush1.bf16.msra.mxu0 %v2304
      %2966 = vmatprep.subr.bf16.mxu0 %v2309
      %2967 = vmatpush1.bf16.msra.mxu0 %v2308
      %2968 = vmatprep.subr.bf16.mxu0 %v2313
      %2969 = vmatpush1.bf16.msra.mxu0 %v2312
      %2970 = vmatprep.subr.bf16.mxu0 %v2317
      %2971 = vmatpush1.bf16.msra.mxu0 %v2316
      %2972 = vmatprep.subr.bf16.mxu0 %v2321
      %2973 = vmatpush1.bf16.msra.mxu0 %v2320
      %2974 = vmatprep.subr.bf16.mxu0 %v2325
      %2975 = vmatpush1.bf16.msra.mxu0 %v2324
      %2976 = vmatprep.subr.bf16.mxu0 %v2329
      %2977 = vmatpush1.bf16.msra.mxu0 %v2328
      %2978 = vmatprep.subr.bf16.mxu0 %v2333
      %2979 = vmatpush1.bf16.msra.mxu0 %v2332
      %2980 = vmatprep.subr.bf16.mxu0 %v2337
      %2981 = vmatpush1.bf16.msra.mxu0 %v2336
      %2982 = vmatprep.mubr.bf16.mxu0 %v1221
      %2983 = vmatmul.mubr.bf16.gmra.mrb[0].mxu0 %v1220
      %v2984 = vpop.f32.mrb[0].mxu0
      %v2985 = vadd.f32 %v1497, %v2984
      %v2986 = vpop.f32.mrb[0].mxu0
      %v2987 = vadd.f32 %v1501, %v2986
      %v2988 = vpop.f32.mrb[0].mxu0
      %v2989 = vpop.f32.mrb[0].mxu0
      %2990 = vdwg.mxu0
      %2991 = vmatprep.subr.bf16.mxu0 %v2341
      %2992 = vmatpush1.bf16.msra.mxu0 %v2340
      %2993 = vmatprep.subr.bf16.mxu0 %v2345
      %2994 = vmatpush1.bf16.msra.mxu0 %v2344
      %2995 = vmatprep.subr.bf16.mxu0 %v2349
      %2996 = vmatpush1.bf16.msra.mxu0 %v2348
      %2997 = vmatprep.subr.bf16.mxu0 %v2353
      %2998 = vmatpush1.bf16.msra.mxu0 %v2352
      %2999 = vmatprep.subr.bf16.mxu0 %v2357
      %3000 = vmatpush1.bf16.msra.mxu0 %v2356
      %3001 = vmatprep.subr.bf16.mxu0 %v2361
      %3002 = vmatpush1.bf16.msra.mxu0 %v2360
      %3003 = vmatprep.subr.bf16.mxu0 %v2365
      %3004 = vmatpush1.bf16.msra.mxu0 %v2364
      %3005 = vmatprep.subr.bf16.mxu0 %v2369
      %3006 = vmatpush1.bf16.msra.mxu0 %v2368
      %3007 = vmatprep.subr.bf16.mxu0 %v2373
      %3008 = vmatpush1.bf16.msra.mxu0 %v2372
      %3009 = vmatprep.subr.bf16.mxu0 %v2377
      %3010 = vmatpush1.bf16.msra.mxu0 %v2376
      %3011 = vmatprep.subr.bf16.mxu0 %v2381
      %3012 = vmatpush1.bf16.msra.mxu0 %v2380
      %3013 = vmatprep.subr.bf16.mxu0 %v2385
      %3014 = vmatpush1.bf16.msra.mxu0 %v2384
      %3015 = vmatprep.subr.bf16.mxu0 %v2389
      %3016 = vmatpush1.bf16.msra.mxu0 %v2388
      %3017 = vmatprep.subr.bf16.mxu0 %v2393
      %3018 = vmatpush1.bf16.msra.mxu0 %v2392
      %3019 = vmatprep.subr.bf16.mxu0 %v2397
      %3020 = vmatpush1.bf16.msra.mxu0 %v2396
      %3021 = vmatprep.subr.bf16.mxu0 %v2401
      %3022 = vmatpush1.bf16.msra.mxu0 %v2400
      %3023 = vmatprep.mubr.bf16.mxu0 %v1223
      %3024 = vmatmul.mubr.bf16.gmra.mrb[0].mxu0 %v1222
      %v3025 = vpop.f32.mrb[0].mxu0
      %v3026 = vadd.f32 %v2985, %v3025
      %v3027 = vpop.f32.mrb[0].mxu0
      %v3028 = vadd.f32 %v2987, %v3027
      %v3029 = vpop.f32.mrb[0].mxu0
      %v3030 = vpop.f32.mrb[0].mxu0
      %3031 = vdwg.mxu0
      %3032 = vmatprep.subr.bf16.mxu0 %v2405
      %3033 = vmatpush1.bf16.msra.mxu0 %v2404
      %3034 = vmatprep.subr.bf16.mxu0 %v2409
      %3035 = vmatpush1.bf16.msra.mxu0 %v2408
      %3036 = vmatprep.subr.bf16.mxu0 %v2413
      %3037 = vmatpush1.bf16.msra.mxu0 %v2412
      %3038 = vmatprep.subr.bf16.mxu0 %v2417
      %3039 = vmatpush1.bf16.msra.mxu0 %v2416
      %3040 = vmatprep.subr.bf16.mxu0 %v2421
      %3041 = vmatpush1.bf16.msra.mxu0 %v2420
      %3042 = vmatprep.subr.bf16.mxu0 %v2425
      %3043 = vmatpush1.bf16.msra.mxu0 %v2424
      %3044 = vmatprep.subr.bf16.mxu0 %v2429
      %3045 = vmatpush1.bf16.msra.mxu0 %v2428
      %3046 = vmatprep.subr.bf16.mxu0 %v2433
      %3047 = vmatpush1.bf16.msra.mxu0 %v2432
      %3048 = vmatprep.subr.bf16.mxu0 %v2437
      %3049 = vmatpush1.bf16.msra.mxu0 %v2436
      %3050 = vmatprep.subr.bf16.mxu0 %v2441
      %3051 = vmatpush1.bf16.msra.mxu0 %v2440
      %3052 = vmatprep.subr.bf16.mxu0 %v2445
      %3053 = vmatpush1.bf16.msra.mxu0 %v2444
      %3054 = vmatprep.subr.bf16.mxu0 %v2449
      %3055 = vmatpush1.bf16.msra.mxu0 %v2448
      %3056 = vmatprep.subr.bf16.mxu0 %v2453
      %3057 = vmatpush1.bf16.msra.mxu0 %v2452
      %3058 = vmatprep.subr.bf16.mxu0 %v2457
      %3059 = vmatpush1.bf16.msra.mxu0 %v2456
      %3060 = vmatprep.subr.bf16.mxu0 %v2461
      %3061 = vmatpush1.bf16.msra.mxu0 %v2460
      %3062 = vmatprep.subr.bf16.mxu0 %v2465
      %3063 = vmatpush1.bf16.msra.mxu0 %v2464
      %3064 = vmatprep.mubr.bf16.mxu0 %v1225
      %3065 = vmatmul.mubr.bf16.gmra.mrb[0].mxu0 %v1224
      %v3066 = vpop.f32.mrb[0].mxu0
      %v3067 = vadd.f32 %v3026, %v3066
      %v3068 = vpop.f32.mrb[0].mxu0
      %v3069 = vadd.f32 %v3028, %v3068
      %v3070 = vpop.f32.mrb[0].mxu0
      %v3071 = vpop.f32.mrb[0].mxu0
      %3072 = vdwg.mxu0
      %3073 = vmatprep.subr.bf16.mxu0 %v2469
      %3074 = vmatpush1.bf16.msra.mxu0 %v2468
      %3075 = vmatprep.subr.bf16.mxu0 %v2473
      %3076 = vmatpush1.bf16.msra.mxu0 %v2472
      %3077 = vmatprep.subr.bf16.mxu0 %v2477
      %3078 = vmatpush1.bf16.msra.mxu0 %v2476
      %3079 = vmatprep.subr.bf16.mxu0 %v2481
      %3080 = vmatpush1.bf16.msra.mxu0 %v2480
      %3081 = vmatprep.subr.bf16.mxu0 %v2485
      %3082 = vmatpush1.bf16.msra.mxu0 %v2484
      %3083 = vmatprep.subr.bf16.mxu0 %v2489
      %3084 = vmatpush1.bf16.msra.mxu0 %v2488
      %3085 = vmatprep.subr.bf16.mxu0 %v2493
      %3086 = vmatpush1.bf16.msra.mxu0 %v2492
      %3087 = vmatprep.subr.bf16.mxu0 %v2497
      %3088 = vmatpush1.bf16.msra.mxu0 %v2496
      %3089 = vmatprep.subr.bf16.mxu0 %v2501
      %3090 = vmatpush1.bf16.msra.mxu0 %v2500
      %3091 = vmatprep.subr.bf16.mxu0 %v2505
      %3092 = vmatpush1.bf16.msra.mxu0 %v2504
      %3093 = vmatprep.subr.bf16.mxu0 %v2509
      %3094 = vmatpush1.bf16.msra.mxu0 %v2508
      %3095 = vmatprep.subr.bf16.mxu0 %v2513
      %3096 = vmatpush1.bf16.msra.mxu0 %v2512
      %3097 = vmatprep.subr.bf16.mxu0 %v2517
      %3098 = vmatpush1.bf16.msra.mxu0 %v2516
      %3099 = vmatprep.subr.bf16.mxu0 %v2521
      %3100 = vmatpush1.bf16.msra.mxu0 %v2520
      %3101 = vmatprep.subr.bf16.mxu0 %v2525
      %3102 = vmatpush1.bf16.msra.mxu0 %v2524
      %3103 = vmatprep.subr.bf16.mxu0 %v2529
      %3104 = vmatpush1.bf16.msra.mxu0 %v2528
      %3105 = vmatprep.mubr.bf16.mxu0 %v1227
      %3106 = vmatmul.mubr.bf16.gmra.mrb[0].mxu0 %v1226
      %v3107 = vpop.f32.mrb[0].mxu0
      %v3108 = vadd.f32 %v3067, %v3107
      %v3109 = vpop.f32.mrb[0].mxu0
      %v3110 = vadd.f32 %v3069, %v3109
      %v3111 = vpop.f32.mrb[0].mxu0
      %v3112 = vpop.f32.mrb[0].mxu0
      %3113 = vdwg.mxu0
      %v3114 = vmax.f32 %v2944, 0.0
      %v3115 = vmax.f32 %v2946, 0.0
      %v3116 = vmax.f32 %v3108, 0.0
      %v3117 = vmax.f32 %v3110, 0.0
      %v3118 = vpack.c.bf16 %v3114, %v3114
      %v3119 = vpack.c.bf16 %v3115, %v3115
      %v3120 = vpack.c.bf16 %v3116, %v3116
      %v3121 = vpack.c.bf16 %v3117, %v3117
      %v3122 = vld [vmem:[#allocation8] sm:$0xf]
      %v3123 = vld [vmem:[#allocation8 + $0x4] sm:$0xf]
      %v3124 = vld [vmem:[#allocation8 + $0x8] sm:$0xf]
      %v3125 = vld [vmem:[#allocation8 + $0xc] sm:$0xf]
      %v3126 = vld [vmem:[#allocation8 + $0x10] sm:$0xf]
      %v3127 = vld [vmem:[#allocation8 + $0x14] sm:$0xf]
      %v3128 = vld [vmem:[#allocation8 + $0x18] sm:$0xf]
      %v3129 = vld [vmem:[#allocation8 + $0x1c] sm:$0xf]
      %v3130 = vld [vmem:[#allocation8 + $0x20] sm:$0xf]
      %v3131 = vld [vmem:[#allocation8 + $0x24] sm:$0xf]
      %v3132 = vld [vmem:[#allocation8 + $0x28] sm:$0xf]
      %v3133 = vld [vmem:[#allocation8 + $0x2c] sm:$0xf]
      %v3134 = vld [vmem:[#allocation8 + $0x30] sm:$0xf]
      %v3135 = vld [vmem:[#allocation8 + $0x34] sm:$0xf]
      %v3136 = vld [vmem:[#allocation8 + $0x38] sm:$0xf]
      %v3137 = vld [vmem:[#allocation8 + $0x3c] sm:$0xf]
      %v3138 = vld [vmem:[#allocation8 + $0x40] sm:$0xf]
      %v3139 = vld [vmem:[#allocation8 + $0x44] sm:$0xf]
      %v3140 = vld [vmem:[#allocation8 + $0x48] sm:$0xf]
      %v3141 = vld [vmem:[#allocation8 + $0x4c] sm:$0xf]
      %v3142 = vld [vmem:[#allocation8 + $0x50] sm:$0xf]
      %v3143 = vld [vmem:[#allocation8 + $0x54] sm:$0xf]
      %v3144 = vld [vmem:[#allocation8 + $0x58] sm:$0xf]
      %v3145 = vld [vmem:[#allocation8 + $0x5c] sm:$0xf]
      %v3146 = vld [vmem:[#allocation8 + $0x60] sm:$0xf]
      %v3147 = vld [vmem:[#allocation8 + $0x64] sm:$0xf]
      %v3148 = vld [vmem:[#allocation8 + $0x68] sm:$0xf]
      %v3149 = vld [vmem:[#allocation8 + $0x6c] sm:$0xf]
      %v3150 = vld [vmem:[#allocation8 + $0x70] sm:$0xf]
      %v3151 = vld [vmem:[#allocation8 + $0x74] sm:$0xf]
      %v3152 = vld [vmem:[#allocation8 + $0x78] sm:$0xf]
      %v3153 = vld [vmem:[#allocation8 + $0x7c] sm:$0xf]
      %v3154 = vld [vmem:[#allocation8 + $0x80] sm:$0xf]
      %v3155 = vld [vmem:[#allocation8 + $0x84] sm:$0xf]
      %v3156 = vld [vmem:[#allocation8 + $0x88] sm:$0xf]
      %v3157 = vld [vmem:[#allocation8 + $0x8c] sm:$0xf]
      %v3158 = vld [vmem:[#allocation8 + $0x90] sm:$0xf]
      %v3159 = vld [vmem:[#allocation8 + $0x94] sm:$0xf]
      %v3160 = vld [vmem:[#allocation8 + $0x98] sm:$0xf]
      %v3161 = vld [vmem:[#allocation8 + $0x9c] sm:$0xf]
      %v3162 = vld [vmem:[#allocation8 + $0xa0] sm:$0xf]
      %v3163 = vld [vmem:[#allocation8 + $0xa4] sm:$0xf]
      %v3164 = vld [vmem:[#allocation8 + $0xa8] sm:$0xf]
      %v3165 = vld [vmem:[#allocation8 + $0xac] sm:$0xf]
      %v3166 = vld [vmem:[#allocation8 + $0xb0] sm:$0xf]
      %v3167 = vld [vmem:[#allocation8 + $0xb4] sm:$0xf]
      %v3168 = vld [vmem:[#allocation8 + $0xb8] sm:$0xf]
      %v3169 = vld [vmem:[#allocation8 + $0xbc] sm:$0xf]
      %v3170 = vld [vmem:[#allocation8 + $0xc0] sm:$0xf]
      %v3171 = vld [vmem:[#allocation8 + $0xc4] sm:$0xf]
      %v3172 = vld [vmem:[#allocation8 + $0xc8] sm:$0xf]
      %v3173 = vld [vmem:[#allocation8 + $0xcc] sm:$0xf]
      %v3174 = vld [vmem:[#allocation8 + $0xd0] sm:$0xf]
      %v3175 = vld [vmem:[#allocation8 + $0xd4] sm:$0xf]
      %v3176 = vld [vmem:[#allocation8 + $0xd8] sm:$0xf]
      %v3177 = vld [vmem:[#allocation8 + $0xdc] sm:$0xf]
      %v3178 = vld [vmem:[#allocation8 + $0xe0] sm:$0xf]
      %v3179 = vld [vmem:[#allocation8 + $0xe4] sm:$0xf]
      %v3180 = vld [vmem:[#allocation8 + $0xe8] sm:$0xf]
      %v3181 = vld [vmem:[#allocation8 + $0xec] sm:$0xf]
      %v3182 = vld [vmem:[#allocation8 + $0xf0] sm:$0xf]
      %v3183 = vld [vmem:[#allocation8 + $0xf4] sm:$0xf]
      %v3184 = vld [vmem:[#allocation8 + $0xf8] sm:$0xf]
      %v3185 = vld [vmem:[#allocation8 + $0xfc] sm:$0xf]
      %v3186 = vld [vmem:[%s10] sm:$0x1]
      %v3188 = vlaneseq
      %v3189 = vshrl.u32 %v3188, 7
      %v3190 = vsub.s32 0, %v3189
      %v3191 = vrot.slane %v3186, %v3190
      %v3257 = vunpack.c.l.b16 %v3122
      %v3258 = vunpack.c.l.b16 %v3123
      %v3259 = vunpack.c.l.b16 %v3124
      %v3260 = vunpack.c.l.b16 %v3125
      %v3261 = vunpack.c.l.b16 %v3126
      %v3262 = vunpack.c.l.b16 %v3127
      %v3263 = vunpack.c.l.b16 %v3128
      %v3264 = vunpack.c.l.b16 %v3129
      %v3265 = vunpack.c.l.b16 %v3130
      %v3266 = vunpack.c.l.b16 %v3131
      %v3267 = vunpack.c.l.b16 %v3132
      %v3268 = vunpack.c.l.b16 %v3133
      %v3269 = vunpack.c.l.b16 %v3134
      %v3270 = vunpack.c.l.b16 %v3135
      %v3271 = vunpack.c.l.b16 %v3136
      %v3272 = vunpack.c.l.b16 %v3137
      %v3273 = vunpack.c.l.b16 %v3138
      %v3274 = vunpack.c.l.b16 %v3139
      %v3275 = vunpack.c.l.b16 %v3140
      %v3276 = vunpack.c.l.b16 %v3141
      %v3277 = vunpack.c.l.b16 %v3142
      %v3278 = vunpack.c.l.b16 %v3143
      %v3279 = vunpack.c.l.b16 %v3144
      %v3280 = vunpack.c.l.b16 %v3145
      %v3281 = vunpack.c.l.b16 %v3146
      %v3282 = vunpack.c.l.b16 %v3147
      %v3283 = vunpack.c.l.b16 %v3148
      %v3284 = vunpack.c.l.b16 %v3149
      %v3285 = vunpack.c.l.b16 %v3150
      %v3286 = vunpack.c.l.b16 %v3151
      %v3287 = vunpack.c.l.b16 %v3152
      %v3288 = vunpack.c.l.b16 %v3153
      %v3289 = vunpack.c.l.b16 %v3154
      %v3290 = vunpack.c.l.b16 %v3155
      %v3291 = vunpack.c.l.b16 %v3156
      %v3292 = vunpack.c.l.b16 %v3157
      %v3293 = vunpack.c.l.b16 %v3158
      %v3294 = vunpack.c.l.b16 %v3159
      %v3295 = vunpack.c.l.b16 %v3160
      %v3296 = vunpack.c.l.b16 %v3161
      %v3297 = vunpack.c.l.b16 %v3162
      %v3298 = vunpack.c.l.b16 %v3163
      %v3299 = vunpack.c.l.b16 %v3164
      %v3300 = vunpack.c.l.b16 %v3165
      %v3301 = vunpack.c.l.b16 %v3166
      %v3302 = vunpack.c.l.b16 %v3167
      %v3303 = vunpack.c.l.b16 %v3168
      %v3304 = vunpack.c.l.b16 %v3169
      %v3305 = vunpack.c.l.b16 %v3170
      %v3306 = vunpack.c.l.b16 %v3171
      %v3307 = vunpack.c.l.b16 %v3172
      %v3308 = vunpack.c.l.b16 %v3173
      %v3309 = vunpack.c.l.b16 %v3174
      %v3310 = vunpack.c.l.b16 %v3175
      %v3311 = vunpack.c.l.b16 %v3176
      %v3312 = vunpack.c.l.b16 %v3177
      %v3313 = vunpack.c.l.b16 %v3178
      %v3314 = vunpack.c.l.b16 %v3179
      %v3315 = vunpack.c.l.b16 %v3180
      %v3316 = vunpack.c.l.b16 %v3181
      %v3317 = vunpack.c.l.b16 %v3182
      %v3318 = vunpack.c.l.b16 %v3183
      %v3319 = vunpack.c.l.b16 %v3184
      %v3320 = vunpack.c.l.b16 %v3185
      %v3321 = vpack.c.b16 %v3258, %v3257
      %v3322 = vpack.c.b16 %v3260, %v3259
      %v3323 = vpack.c.b16 %v3262, %v3261
      %v3324 = vpack.c.b16 %v3264, %v3263
      %v3325 = vpack.c.b16 %v3266, %v3265
      %v3326 = vpack.c.b16 %v3268, %v3267
      %v3327 = vpack.c.b16 %v3270, %v3269
      %v3328 = vpack.c.b16 %v3272, %v3271
      %v3329 = vpack.c.b16 %v3274, %v3273
      %v3330 = vpack.c.b16 %v3276, %v3275
      %v3331 = vpack.c.b16 %v3278, %v3277
      %v3332 = vpack.c.b16 %v3280, %v3279
      %v3333 = vpack.c.b16 %v3282, %v3281
      %v3334 = vpack.c.b16 %v3284, %v3283
      %v3335 = vpack.c.b16 %v3286, %v3285
      %v3336 = vpack.c.b16 %v3288, %v3287
      %v3337 = vpack.c.b16 %v3290, %v3289
      %v3338 = vpack.c.b16 %v3292, %v3291
      %v3339 = vpack.c.b16 %v3294, %v3293
      %v3340 = vpack.c.b16 %v3296, %v3295
      %v3341 = vpack.c.b16 %v3298, %v3297
      %v3342 = vpack.c.b16 %v3300, %v3299
      %v3343 = vpack.c.b16 %v3302, %v3301
      %v3344 = vpack.c.b16 %v3304, %v3303
      %v3345 = vpack.c.b16 %v3306, %v3305
      %v3346 = vpack.c.b16 %v3308, %v3307
      %v3347 = vpack.c.b16 %v3310, %v3309
      %v3348 = vpack.c.b16 %v3312, %v3311
      %v3349 = vpack.c.b16 %v3314, %v3313
      %v3350 = vpack.c.b16 %v3316, %v3315
      %v3351 = vpack.c.b16 %v3318, %v3317
      %v3352 = vpack.c.b16 %v3320, %v3319
      %3385 = vmatprep.subr.bf16.mxu0 0
      %3386 = vmatpush1.bf16.msra.mxu0 %v3321
      %3387 = vmatprep.subr.bf16.mxu0 0
      %3388 = vmatpush1.bf16.msra.mxu0 %v3322
      %3389 = vmatprep.subr.bf16.mxu0 0
      %3390 = vmatpush1.bf16.msra.mxu0 %v3323
      %3391 = vmatprep.subr.bf16.mxu0 0
      %3392 = vmatpush1.bf16.msra.mxu0 %v3324
      %3393 = vmatprep.subr.bf16.mxu0 0
      %3394 = vmatpush1.bf16.msra.mxu0 %v3325
      %3395 = vmatprep.subr.bf16.mxu0 0
      %3396 = vmatpush1.bf16.msra.mxu0 %v3326
      %3397 = vmatprep.subr.bf16.mxu0 0
      %3398 = vmatpush1.bf16.msra.mxu0 %v3327
      %3399 = vmatprep.subr.bf16.mxu0 0
      %3400 = vmatpush1.bf16.msra.mxu0 %v3328
      %3401 = vmatprep.subr.bf16.mxu0 0
      %3402 = vmatpush1.bf16.msra.mxu0 %v3329
      %3403 = vmatprep.subr.bf16.mxu0 0
      %3404 = vmatpush1.bf16.msra.mxu0 %v3330
      %3405 = vmatprep.subr.bf16.mxu0 0
      %3406 = vmatpush1.bf16.msra.mxu0 %v3331
      %3407 = vmatprep.subr.bf16.mxu0 0
      %3408 = vmatpush1.bf16.msra.mxu0 %v3332
      %3409 = vmatprep.subr.bf16.mxu0 0
      %3410 = vmatpush1.bf16.msra.mxu0 %v3333
      %3411 = vmatprep.subr.bf16.mxu0 0
      %3412 = vmatpush1.bf16.msra.mxu0 %v3334
      %3413 = vmatprep.subr.bf16.mxu0 0
      %3414 = vmatpush1.bf16.msra.mxu0 %v3335
      %3415 = vmatprep.subr.bf16.mxu0 0
      %3416 = vmatpush1.bf16.msra.mxu0 %v3336
      %3417 = vmatprep.mubr.bf16.mxu0 %v3119
      %3418 = vmatmul.mubr.bf16.gmra.mrb[0].mxu0 %v3118
      %v3419 = vpop.f32.mrb[0].mxu0
      %v3420 = vadd.f32 %v3191, %v3419
      %v3421 = vpop.f32.mrb[0].mxu0
      %v3422 = vpop.f32.mrb[0].mxu0
      %v3423 = vpop.f32.mrb[0].mxu0
      %3424 = vdwg.mxu0
      %3425 = vmatprep.subr.bf16.mxu0 0
      %3426 = vmatpush1.bf16.msra.mxu0 %v3337
      %3427 = vmatprep.subr.bf16.mxu0 0
      %3428 = vmatpush1.bf16.msra.mxu0 %v3338
      %3429 = vmatprep.subr.bf16.mxu0 0
      %3430 = vmatpush1.bf16.msra.mxu0 %v3339
      %3431 = vmatprep.subr.bf16.mxu0 0
      %3432 = vmatpush1.bf16.msra.mxu0 %v3340
      %3433 = vmatprep.subr.bf16.mxu0 0
      %3434 = vmatpush1.bf16.msra.mxu0 %v3341
      %3435 = vmatprep.subr.bf16.mxu0 0
      %3436 = vmatpush1.bf16.msra.mxu0 %v3342
      %3437 = vmatprep.subr.bf16.mxu0 0
      %3438 = vmatpush1.bf16.msra.mxu0 %v3343
      %3439 = vmatprep.subr.bf16.mxu0 0
      %3440 = vmatpush1.bf16.msra.mxu0 %v3344
      %3441 = vmatprep.subr.bf16.mxu0 0
      %3442 = vmatpush1.bf16.msra.mxu0 %v3345
      %3443 = vmatprep.subr.bf16.mxu0 0
      %3444 = vmatpush1.bf16.msra.mxu0 %v3346
      %3445 = vmatprep.subr.bf16.mxu0 0
      %3446 = vmatpush1.bf16.msra.mxu0 %v3347
      %3447 = vmatprep.subr.bf16.mxu0 0
      %3448 = vmatpush1.bf16.msra.mxu0 %v3348
      %3449 = vmatprep.subr.bf16.mxu0 0
      %3450 = vmatpush1.bf16.msra.mxu0 %v3349
      %3451 = vmatprep.subr.bf16.mxu0 0
      %3452 = vmatpush1.bf16.msra.mxu0 %v3350
      %3453 = vmatprep.subr.bf16.mxu0 0
      %3454 = vmatpush1.bf16.msra.mxu0 %v3351
      %3455 = vmatprep.subr.bf16.mxu0 0
      %3456 = vmatpush1.bf16.msra.mxu0 %v3352
      %3457 = vmatprep.mubr.bf16.mxu0 %v3121
      %3458 = vmatmul.mubr.bf16.gmra.mrb[0].mxu0 %v3120
      %v3459 = vpop.f32.mrb[0].mxu0
      %v3460 = vadd.f32 %v3420, %v3459
      %v3461 = vpop.f32.mrb[0].mxu0
      %v3462 = vpop.f32.mrb[0].mxu0
      %v3463 = vpop.f32.mrb[0].mxu0
      %3464 = vdwg.mxu0
      %v3465 = vmax.f32 %v3460, 0.0
      %v3466 = vpack.c.bf16 %v3465, %v3465
      %v3467 = vld [vmem:[%s11] sm:$0xf]
      %v3468 = vld [vmem:[%s11 + $0x4] sm:$0xf]
      %v3469 = vld [vmem:[%s11 + $0x8] sm:$0xf]
      %v3470 = vld [vmem:[%s11 + $0xc] sm:$0xf]
      %v3471 = vld [vmem:[%s11 + $0x10] sm:$0xf]
      %v3472 = vld [vmem:[%s11 + $0x14] sm:$0xf]
      %v3473 = vld [vmem:[%s11 + $0x18] sm:$0xf]
      %v3474 = vld [vmem:[%s11 + $0x1c] sm:$0xf]
      %v3475 = vld [vmem:[%s11 + $0x20] sm:$0xf]
      %v3476 = vld [vmem:[%s11 + $0x24] sm:$0xf]
      %v3477 = vld [vmem:[%s11 + $0x28] sm:$0xf]
      %v3478 = vld [vmem:[%s11 + $0x2c] sm:$0xf]
      %v3479 = vld [vmem:[%s11 + $0x30] sm:$0xf]
      %v3480 = vld [vmem:[%s11 + $0x34] sm:$0xf]
      %v3481 = vld [vmem:[%s11 + $0x38] sm:$0xf]
      %v3482 = vld [vmem:[%s11 + $0x3c] sm:$0xf]
      %v3483 = vld [vmem:[%s12] sm:$0x1]
      %v3485 = vlaneseq
      %v3486 = vshrl.u32 %v3485, 7
      %v3487 = vsub.s32 0, %v3486
      %v3488 = vrot.slane %v3483, %v3487
      %v3506 = vunpack.c.l.b16 %v3467
      %v3507 = vunpack.c.l.b16 %v3468
      %v3508 = vunpack.c.l.b16 %v3469
      %v3509 = vunpack.c.l.b16 %v3470
      %v3510 = vunpack.c.l.b16 %v3471
      %v3511 = vunpack.c.l.b16 %v3472
      %v3512 = vunpack.c.l.b16 %v3473
      %v3513 = vunpack.c.l.b16 %v3474
      %v3514 = vunpack.c.l.b16 %v3475
      %v3515 = vunpack.c.l.b16 %v3476
      %v3516 = vunpack.c.l.b16 %v3477
      %v3517 = vunpack.c.l.b16 %v3478
      %v3518 = vunpack.c.l.b16 %v3479
      %v3519 = vunpack.c.l.b16 %v3480
      %v3520 = vunpack.c.l.b16 %v3481
      %v3521 = vunpack.c.l.b16 %v3482
      %v3522 = vpack.c.b16 %v3507, %v3506
      %v3523 = vpack.c.b16 %v3509, %v3508
      %v3524 = vpack.c.b16 %v3511, %v3510
      %v3525 = vpack.c.b16 %v3513, %v3512
      %v3526 = vpack.c.b16 %v3515, %v3514
      %v3527 = vpack.c.b16 %v3517, %v3516
      %v3528 = vpack.c.b16 %v3519, %v3518
      %v3529 = vpack.c.b16 %v3521, %v3520
      %3538 = vmatprep.subr.bf16.mxu0 0
      %3539 = vmatpush1.bf16.msra.mxu0 %v3522
      %3540 = vmatprep.subr.bf16.mxu0 0
      %3541 = vmatpush1.bf16.msra.mxu0 %v3523
      %3542 = vmatprep.subr.bf16.mxu0 0
      %3543 = vmatpush1.bf16.msra.mxu0 %v3524
      %3544 = vmatprep.subr.bf16.mxu0 0
      %3545 = vmatpush1.bf16.msra.mxu0 %v3525
      %3546 = vmatprep.subr.bf16.mxu0 0
      %3547 = vmatpush1.bf16.msra.mxu0 %v3526
      %3548 = vmatprep.subr.bf16.mxu0 0
      %3549 = vmatpush1.bf16.msra.mxu0 %v3527
      %3550 = vmatprep.subr.bf16.mxu0 0
      %3551 = vmatpush1.bf16.msra.mxu0 %v3528
      %3552 = vmatprep.subr.bf16.mxu0 0
      %3553 = vmatpush1.bf16.msra.mxu0 %v3529
      %3554 = vmatprep.subr.bf16.mxu0 0
      %3555 = vmatpush1.bf16.msra.mxu0 0
      %3556 = vmatprep.subr.bf16.mxu0 0
      %3557 = vmatpush1.bf16.msra.mxu0 0
      %3558 = vmatprep.subr.bf16.mxu0 0
      %3559 = vmatpush1.bf16.msra.mxu0 0
      %3560 = vmatprep.subr.bf16.mxu0 0
      %3561 = vmatpush1.bf16.msra.mxu0 0
      %3562 = vmatprep.subr.bf16.mxu0 0
      %3563 = vmatpush1.bf16.msra.mxu0 0
      %3564 = vmatprep.subr.bf16.mxu0 0
      %3565 = vmatpush1.bf16.msra.mxu0 0
      %3566 = vmatprep.subr.bf16.mxu0 0
      %3567 = vmatpush1.bf16.msra.mxu0 0
      %3568 = vmatprep.subr.bf16.mxu0 0
      %3569 = vmatpush1.bf16.msra.mxu0 0
      %3570 = vmatprep.mubr.bf16.mxu0 0
      %3571 = vmatmul.mubr.bf16.gmra.mrb[0].mxu0 %v3466
      %v3572 = vpop.f32.mrb[0].mxu0
      %v3573 = vadd.f32 %v3488, %v3572
      %v3574 = vpop.f32.mrb[0].mxu0
      %v3575 = vpop.f32.mrb[0].mxu0
      %v3576 = vpop.f32.mrb[0].mxu0
      %3577 = vdwg.mxu0
      %vm3578 = vcmask 66560
      %3579 = vst.msk [vmem:[#allocation9] sm:$0x3] %vm3578, %v3573
    $region73: #{tpu_custom_call.1} parent=1 // pred_fallthru
      _
    // Predicated region
    $region74: #{tpu_custom_call.1} parent=1 // pred_check
      _
    $region75: #{tpu_custom_call.1} parent=1 // pred_check_branch
      %3581 = sbr.rel (0) target = $region77
    $region76: #{tpu_custom_call.1} parent=1 // pred_region
      %s3583 = ssub.s32 32, 32
      %3584 = vsyncadd [#allocation5], %s3583
      %s3586 = sshll.u32 [#allocation9], 4
      %s3587 = int_to_ptr.vmem [resolvable:$true] %s3586
      %3589 = dma.vmem_to_hbm [thread:$0]  %s3587, 32, %s13, [#allocation5]
    $region77: #{tpu_custom_call.1} parent=1 // pred_fallthru
      _
    // Predicated region
    $region78: #{tpu_custom_call.1} parent=1 // pred_check
      _
    $region79: #{tpu_custom_call.1} parent=1 // pred_check_branch
      %3591 = sbr.rel (0) target = $region81
    $region80: #{tpu_custom_call.1} parent=1 // pred_region
      %3592 = dma.done [#allocation5], 32
    $region81: #{tpu_custom_call.1} parent=1 // pred_fallthru
      _
    %3593 = vsyncpa [#allocation4], 1
    %3594 = vsyncpa [#allocation7], 1
    %3595 = vsyncpa [#allocation5], 1

</llo_original>
